<compile_context>
chip_gen: v6e
topology: v6e:2x2x1
jax: 0.10.0
libtpu: 0.0.40
codegen_flags: <defaults>
</compile_context>

<pallas_src>
import jax
import jax.numpy as jnp
from jax.experimental import pallas as pl
from jax.experimental.pallas import tpu as pltpu


# ------------------------------ Pallas kernel --------------------------------
def _pbilstm_kernel(xp_ref, whh_ref, out_ref, h_scr, c_scr):
    """Fused bidirectional LSTM over the full sequence.

    xp_ref  : (T, B, 8H)  precomputed x@W_ih + b for both directions,
                          columns ordered [i_f,i_b,f_f,f_b,g_f,g_b,o_f,o_b];
                          the backward-direction columns are already
                          time-reversed so step s reads input T-1-s for bwd.
    whh_ref : (2H, 8H)    block-diagonal recurrent weights (rows: [h_f | h_b]).
    out_ref : (T, B, 2H)  hidden states, [h_fwd(t) | h_bwd(t)] per timestep.
    h_scr   : (B, 2H)     recurrent hidden state [h_f | h_b]  (VMEM scratch).
    c_scr   : (B, 2H)     recurrent cell state   [c_f | c_b]  (VMEM scratch).
    """
    T = xp_ref.shape[0]
    H2 = h_scr.shape[1]          # 2H  (both directions)
    H = H2 // 2

    h_scr[...] = jnp.zeros_like(h_scr)
    c_scr[...] = jnp.zeros_like(c_scr)

    whh = whh_ref[...]           # hoist: resident for the whole time loop

    def step(s, carry):
        gates = xp_ref[s] + jnp.dot(h_scr[...], whh,
                                    preferred_element_type=jnp.float32)
        # Each gate slice is (B, 2H) = [fwd | bwd]; one set of elementwise ops
        # (VPU/EUP) updates both directions at once.
        i = jax.nn.sigmoid(gates[:, 0 * H2:1 * H2])
        f = jax.nn.sigmoid(gates[:, 1 * H2:2 * H2])
        g = jnp.tanh(gates[:, 2 * H2:3 * H2])
        o = jax.nn.sigmoid(gates[:, 3 * H2:4 * H2])

        c_new = f * c_scr[...] + i * g
        h_new = o * jnp.tanh(c_new)
        c_scr[...] = c_new
        h_scr[...] = h_new

        # fwd hidden belongs to time s, bwd hidden belongs to time T-1-s.
        out_ref[pl.ds(s, 1), :, 0:H] = h_new[None, :, 0:H]
        out_ref[pl.ds(T - 1 - s, 1), :, H:H2] = h_new[None, :, H:H2]
        return carry

    jax.lax.fori_loop(0, T, step, 0, unroll=(T <= 32))


# --------------------------- pBLSTM layer wrapper -----------------------------
def pblstm_layer(x_btf, packed):
    """pBLSTMLayer.forward: fused BiLSTM kernel, then halve time resolution."""
    wih_f, b_f, wih_b, b_b, whh_blk = packed
    B, T, _ = x_btf.shape
    H = whh_blk.shape[0] // 2
    x_tbf = jnp.transpose(x_btf, (1, 0, 2))                       # (T, B, F)

    # Batched input projection for the whole sequence (one big MXU op each).
    xp_f = x_tbf @ wih_f + b_f                                    # (T, B, 4H)
    xp_b = (x_tbf @ wih_b + b_b)[::-1]                            # time-reversed
    # Interleave per gate: columns [i_f,i_b,f_f,f_b,g_f,g_b,o_f,o_b].
    xp = jnp.stack([xp_f.reshape(T, B, 4, H),
                    xp_b.reshape(T, B, 4, H)], axis=3)            # (T,B,4,2,H)
    xp = xp.reshape(T, B, 8 * H)

    out = pl.pallas_call(
        _pbilstm_kernel,
        out_shape=jax.ShapeDtypeStruct((T, B, 2 * H), jnp.float32),
        grid_spec=pltpu.PrefetchScalarGridSpec(
            num_scalar_prefetch=0,
            # Single batch-block; at larger B, block batch in multiples of 8
            # to shard this "parallel" axis across v7x's two TensorCores.
            grid=(1,),
            in_specs=[
                pl.BlockSpec((T, B, 8 * H), lambda i: (0, i, 0)),
                pl.BlockSpec((2 * H, 8 * H), lambda i: (0, 0)),
            ],
            out_specs=pl.BlockSpec((T, B, 2 * H), lambda i: (0, i, 0)),
            scratch_shapes=[
                pltpu.VMEM((B, 2 * H), jnp.float32),   # h state [fwd | bwd]
                pltpu.VMEM((B, 2 * H), jnp.float32),   # c state [fwd | bwd]
            ],
        ),
        compiler_params=pltpu.CompilerParams(
            dimension_semantics=("parallel",)),
    )(xp, whh_blk)

    out = jnp.transpose(out, (1, 0, 2))                           # (B, T, 2H)
    # PyTorch: output.view(batch, T/2, hidden_dim)   (hidden_dim == 4H)
    return out.reshape(B, T // 2, 4 * H)


def listener_forward(x_btf, packed_params):
    out = x_btf
    for layer in packed_params:
        out = pblstm_layer(out, layer)
    return out


# ------------------------- parameter init & packing ---------------------------
def init_listener_params(key, input_feature_dim, listener_hidden_dim,
                         listener_layer):
    """PyTorch-shaped LSTM weights (transposed), per layer per direction."""
    assert listener_hidden_dim % 4 == 0
    H = listener_hidden_dim // 4
    raw = []
    in_dim = input_feature_dim
    for _ in range(listener_layer):
        dirs = []
        for _d in range(2):  # forward, backward
            key, k1, k2, k3, k4 = jax.random.split(key, 5)
            scale = 1.0 / (H ** 0.5)
            w_ih = jax.random.uniform(k1, (4 * H, in_dim), jnp.float32, -scale, scale)
            w_hh = jax.random.uniform(k2, (4 * H, H), jnp.float32, -scale, scale)
            b_ih = jax.random.uniform(k3, (4 * H,), jnp.float32, -scale, scale)
            b_hh = jax.random.uniform(k4, (4 * H,), jnp.float32, -scale, scale)
            # kernel layout: (F,4H), (H,4H), combined bias (1,4H); gate order i,f,g,o
            dirs.append((w_ih.T, w_hh.T, (b_ih + b_hh).reshape(1, 4 * H)))
        raw.append(tuple(dirs))
        in_dim = listener_hidden_dim
    return raw


def pack_layer(raw_layer):
    """Pack raw per-direction weights into the fused-kernel layout (done once)."""
    (wih_f, whh_f, b_f), (wih_b, whh_b, b_b) = raw_layer
    H = whh_f.shape[0]
    # Block-diagonal recurrent matrix with gate-interleaved columns:
    # rows 0:H = h_fwd, rows H:2H = h_bwd; cols [i_f,i_b,f_f,f_b,g_f,g_b,o_f,o_b].
    whh_blk = jnp.zeros((2 * H, 8 * H), jnp.float32)
    for k in range(4):
        whh_blk = whh_blk.at[0:H, (2 * k) * H:(2 * k + 1) * H].set(
            whh_f[:, k * H:(k + 1) * H])
        whh_blk = whh_blk.at[H:2 * H, (2 * k + 1) * H:(2 * k + 2) * H].set(
            whh_b[:, k * H:(k + 1) * H])
    return (wih_f, b_f, wih_b, b_b, whh_blk)


# ------------------------------ pure-JAX reference ----------------------------
def _ref_lstm_dir(x_tbf, w_ih_t, w_hh_t, b, reverse):
    T, B, _ = x_tbf.shape
    H = w_hh_t.shape[0]
    xs = x_tbf[::-1] if reverse else x_tbf

    def step(carry, x):
        h, c = carry
        gates = x @ w_ih_t + h @ w_hh_t + b
        i = jax.nn.sigmoid(gates[:, :H])
        f = jax.nn.sigmoid(gates[:, H:2 * H])
        g = jnp.tanh(gates[:, 2 * H:3 * H])
        o = jax.nn.sigmoid(gates[:, 3 * H:])
        c = f * c + i * g
        h = o * jnp.tanh(c)
        return (h, c), h

    init = (jnp.zeros((B, H), jnp.float32), jnp.zeros((B, H), jnp.float32))
    _, hs = jax.lax.scan(step, init, xs)
    return hs[::-1] if reverse else hs


def _ref_listener(x_btf, raw_params):
    out = x_btf
    for (fwd, bwd) in raw_params:
        B, T, _ = out.shape
        x_tbf = jnp.transpose(out, (1, 0, 2))
        hf = _ref_lstm_dir(x_tbf, *fwd, reverse=False)
        hb = _ref_lstm_dir(x_tbf, *bwd, reverse=True)
        y = jnp.transpose(jnp.concatenate([hf, hb], axis=-1), (1, 0, 2))
        out = y.reshape(B, T // 2, 2 * y.shape[-1])
    return out


# ----------------------------------- main -------------------------------------
if __name__ == "__main__":
    # Listener(input_feature_dim=32, listener_hidden_dim=32, listener_layer=3)
    # NOTE: T must be divisible by 2**listener_layer (same constraint as the
    # PyTorch .view in pBLSTMLayer.forward).
    B, T, F = 2, 16, 32
    listener_hidden_dim = 32
    listener_layer = 3

    key = jax.random.PRNGKey(0)
    key, xk = jax.random.split(key)
    x = jax.random.normal(xk, (B, T, F), dtype=jnp.float32)

    raw_params = init_listener_params(key, F, listener_hidden_dim, listener_layer)
    packed_params = [pack_layer(lp) for lp in raw_params]

    out = jax.jit(listener_forward)(x, packed_params)
    out = jax.block_until_ready(out)

    expected_shape = (B, T // (2 ** listener_layer), listener_hidden_dim)
    assert out.shape == expected_shape, (out.shape, expected_shape)

    ref = jax.block_until_ready(_ref_listener(x, raw_params))
    assert jnp.allclose(out, ref, atol=1e-4, rtol=1e-4), float(
        jnp.max(jnp.abs(out - ref)))

    print("KERNEL_OK")
</pallas_src>

<mosaic_0001>
module attributes {stable_mosaic.version = 11 : i64} {
  func.func @_pbilstm_kernel(%arg0: i32, %arg1: memref<8x2x64xf32, #tpu.memory_space<vmem>>, %arg2: memref<16x64xf32, #tpu.memory_space<vmem>>, %arg3: memref<8x2x16xf32, #tpu.memory_space<vmem>>, %arg4: memref<2x16xf32, #tpu.memory_space<vmem>>, %arg5: memref<2x16xf32, #tpu.memory_space<vmem>>) attributes {dimension_semantics = [#tpu.dimension_semantics<parallel>], iteration_bounds = array<i64: 1>, scalar_prefetch = 0 : i64, scratch_operands = 2 : i64, tpu.core_type = #tpu.core_type<tc>, window_params = [{transform_indices = @transform_0, window_bounds = array<i64: 8, 2, 64>}, {pipeline_mode = #tpu.pipeline_mode<synchronous>, transform_indices = @transform_1, window_bounds = array<i64: 16, 64>}, {transform_indices = @transform_2, window_bounds = array<i64: 8, 2, 16>}]} {
    %cst = arith.constant 0.000000e+00 : f32
    %0 = vector.broadcast %cst : f32 to vector<2x16xf32>
    %c0 = arith.constant 0 : index
    %c0_0 = arith.constant 0 : index
    %1 = vector.load %arg4[%c0, %c0_0] : memref<2x16xf32, #tpu.memory_space<vmem>>, vector<2x16xf32>
    tpu.vector_store %arg4[%c0, %c0_0], %0 {strides = array<i32>} : memref<2x16xf32, #tpu.memory_space<vmem>>, vector<2x16xf32>,
    %cst_1 = arith.constant 0.000000e+00 : f32
    %2 = vector.broadcast %cst_1 : f32 to vector<2x16xf32>
    %c0_2 = arith.constant 0 : index
    %c0_3 = arith.constant 0 : index
    %3 = vector.load %arg5[%c0_2, %c0_3] : memref<2x16xf32, #tpu.memory_space<vmem>>, vector<2x16xf32>
    tpu.vector_store %arg5[%c0_2, %c0_3], %2 {strides = array<i32>} : memref<2x16xf32, #tpu.memory_space<vmem>>, vector<2x16xf32>,
    %c0_4 = arith.constant 0 : index
    %c0_5 = arith.constant 0 : index
    %4 = vector.load %arg2[%c0_4, %c0_5] : memref<16x64xf32, #tpu.memory_space<vmem>>, vector<16x64xf32>
    %c0_i32 = arith.constant 0 : i32
    %5 = arith.index_cast %c0_i32 : i32 to index
    %c0_6 = arith.constant 0 : index
    %c0_7 = arith.constant 0 : index
    %6 = vector.load %arg1[%5, %c0_6, %c0_7] : memref<8x2x64xf32, #tpu.memory_space<vmem>>, vector<1x2x64xf32>
    %7 = vector.shape_cast %6 : vector<1x2x64xf32> to vector<2x64xf32>
    %c0_8 = arith.constant 0 : index
    %c0_9 = arith.constant 0 : index
    %8 = vector.load %arg4[%c0_8, %c0_9] : memref<2x16xf32, #tpu.memory_space<vmem>>, vector<2x16xf32>
    %cst_10 = arith.constant dense<0.000000e+00> : vector<2x64xf32>
    %9 = tpu.matmul %8, %4, %cst_10 {dimension_numbers = #tpu.dot_dimension_numbers<[1], [0], [0], [1], [0, 0, 1, 1], [], []>} : vector<2x16xf32>, vector<16x64xf32>, vector<2x64xf32> -> vector<2x64xf32>
    %10 = arith.addf %7, %9 : vector<2x64xf32>
    %11 = vector.extract_strided_slice %10 {offsets = [0, 0], sizes = [2, 16], strides = [1, 1]} : vector<2x64xf32> to vector<2x16xf32>
    %12 = arith.negf %11 : vector<2x16xf32>
    %13 = math.exp %12 : vector<2x16xf32>
    %cst_11 = arith.constant 1.000000e+00 : f32
    %14 = vector.broadcast %cst_11 : f32 to vector<2x16xf32>
    %15 = arith.addf %14, %13 : vector<2x16xf32>
    %16 = arith.divf %14, %15 : vector<2x16xf32>
    %17 = vector.extract_strided_slice %10 {offsets = [0, 16], sizes = [2, 16], strides = [1, 1]} : vector<2x64xf32> to vector<2x16xf32>
    %18 = arith.negf %17 : vector<2x16xf32>
    %19 = math.exp %18 : vector<2x16xf32>
    %cst_12 = arith.constant 1.000000e+00 : f32
    %20 = vector.broadcast %cst_12 : f32 to vector<2x16xf32>
    %21 = arith.addf %20, %19 : vector<2x16xf32>
    %22 = arith.divf %20, %21 : vector<2x16xf32>
    %23 = vector.extract_strided_slice %10 {offsets = [0, 32], sizes = [2, 16], strides = [1, 1]} : vector<2x64xf32> to vector<2x16xf32>
    %24 = math.tanh %23 : vector<2x16xf32>
    %25 = vector.extract_strided_slice %10 {offsets = [0, 48], sizes = [2, 16], strides = [1, 1]} : vector<2x64xf32> to vector<2x16xf32>
    %26 = arith.negf %25 : vector<2x16xf32>
    %27 = math.exp %26 : vector<2x16xf32>
    %cst_13 = arith.constant 1.000000e+00 : f32
    %28 = vector.broadcast %cst_13 : f32 to vector<2x16xf32>
    %29 = arith.addf %28, %27 : vector<2x16xf32>
    %30 = arith.divf %28, %29 : vector<2x16xf32>
    %c0_14 = arith.constant 0 : index
    %c0_15 = arith.constant 0 : index
    %31 = vector.load %arg5[%c0_14, %c0_15] : memref<2x16xf32, #tpu.memory_space<vmem>>, vector<2x16xf32>
    %32 = arith.mulf %22, %31 : vector<2x16xf32>
    %33 = arith.mulf %16, %24 : vector<2x16xf32>
    %34 = arith.addf %32, %33 : vector<2x16xf32>
    %35 = math.tanh %34 : vector<2x16xf32>
    %36 = arith.mulf %30, %35 : vector<2x16xf32>
    %c0_16 = arith.constant 0 : index
    %c0_17 = arith.constant 0 : index
    %37 = vector.load %arg5[%c0_16, %c0_17] : memref<2x16xf32, #tpu.memory_space<vmem>>, vector<2x16xf32>
    tpu.vector_store %arg5[%c0_16, %c0_17], %34 {strides = array<i32>} : memref<2x16xf32, #tpu.memory_space<vmem>>, vector<2x16xf32>,
    %c0_18 = arith.constant 0 : index
    %c0_19 = arith.constant 0 : index
    %38 = vector.load %arg4[%c0_18, %c0_19] : memref<2x16xf32, #tpu.memory_space<vmem>>, vector<2x16xf32>
    tpu.vector_store %arg4[%c0_18, %c0_19], %36 {strides = array<i32>} : memref<2x16xf32, #tpu.memory_space<vmem>>, vector<2x16xf32>,
    %39 = vector.extract_strided_slice %36 {offsets = [0, 0], sizes = [2, 8], strides = [1, 1]} : vector<2x16xf32> to vector<2x8xf32>
    %40 = vector.shape_cast %39 : vector<2x8xf32> to vector<1x2x8xf32>
    %41 = arith.index_cast %c0_i32 : i32 to index
    %c0_20 = arith.constant 0 : index
    %c0_21 = arith.constant 0 : index
    %42 = vector.load %arg3[%41, %c0_20, %c0_21] : memref<8x2x16xf32, #tpu.memory_space<vmem>>, vector<1x2x8xf32>
    tpu.vector_store %arg3[%41, %c0_20, %c0_21], %40 {strides = array<i32>} : memref<8x2x16xf32, #tpu.memory_space<vmem>>, vector<1x2x8xf32>,
    %43 = vector.extract_strided_slice %36 {offsets = [0, 8], sizes = [2, 8], strides = [1, 1]} : vector<2x16xf32> to vector<2x8xf32>
    %44 = vector.shape_cast %43 : vector<2x8xf32> to vector<1x2x8xf32>
    %c7_i32 = arith.constant 7 : i32
    %45 = arith.subi %c7_i32, %c0_i32 : i32
    %46 = arith.index_cast %45 : i32 to index
    %c0_22 = arith.constant 0 : index
    %c8 = arith.constant 8 : index
    %47 = vector.load %arg3[%46, %c0_22, %c8] : memref<8x2x16xf32, #tpu.memory_space<vmem>>, vector<1x2x8xf32>
    tpu.vector_store %arg3[%46, %c0_22, %c8], %44 {strides = array<i32>} : memref<8x2x16xf32, #tpu.memory_space<vmem>>, vector<1x2x8xf32>,
    %c1_i32 = arith.constant 1 : i32
    %48 = arith.index_cast %c1_i32 : i32 to index
    %c0_23 = arith.constant 0 : index
    %c0_24 = arith.constant 0 : index
    %49 = vector.load %arg1[%48, %c0_23, %c0_24] : memref<8x2x64xf32, #tpu.memory_space<vmem>>, vector<1x2x64xf32>
    %50 = vector.shape_cast %49 : vector<1x2x64xf32> to vector<2x64xf32>
    %c0_25 = arith.constant 0 : index
    %c0_26 = arith.constant 0 : index
    %51 = vector.load %arg4[%c0_25, %c0_26] : memref<2x16xf32, #tpu.memory_space<vmem>>, vector<2x16xf32>
    %cst_27 = arith.constant dense<0.000000e+00> : vector<2x64xf32>
    %52 = tpu.matmul %51, %4, %cst_27 {dimension_numbers = #tpu.dot_dimension_numbers<[1], [0], [0], [1], [0, 0, 1, 1], [], []>} : vector<2x16xf32>, vector<16x64xf32>, vector<2x64xf32> -> vector<2x64xf32>
    %53 = arith.addf %50, %52 : vector<2x64xf32>
    %54 = vector.extract_strided_slice %53 {offsets = [0, 0], sizes = [2, 16], strides = [1, 1]} : vector<2x64xf32> to vector<2x16xf32>
    %55 = arith.negf %54 : vector<2x16xf32>
    %56 = math.exp %55 : vector<2x16xf32>
    %cst_28 = arith.constant 1.000000e+00 : f32
    %57 = vector.broadcast %cst_28 : f32 to vector<2x16xf32>
    %58 = arith.addf %57, %56 : vector<2x16xf32>
    %59 = arith.divf %57, %58 : vector<2x16xf32>
    %60 = vector.extract_strided_slice %53 {offsets = [0, 16], sizes = [2, 16], strides = [1, 1]} : vector<2x64xf32> to vector<2x16xf32>
    %61 = arith.negf %60 : vector<2x16xf32>
    %62 = math.exp %61 : vector<2x16xf32>
    %cst_29 = arith.constant 1.000000e+00 : f32
    %63 = vector.broadcast %cst_29 : f32 to vector<2x16xf32>
    %64 = arith.addf %63, %62 : vector<2x16xf32>
    %65 = arith.divf %63, %64 : vector<2x16xf32>
    %66 = vector.extract_strided_slice %53 {offsets = [0, 32], sizes = [2, 16], strides = [1, 1]} : vector<2x64xf32> to vector<2x16xf32>
    %67 = math.tanh %66 : vector<2x16xf32>
    %68 = vector.extract_strided_slice %53 {offsets = [0, 48], sizes = [2, 16], strides = [1, 1]} : vector<2x64xf32> to vector<2x16xf32>
    %69 = arith.negf %68 : vector<2x16xf32>
    %70 = math.exp %69 : vector<2x16xf32>
    %cst_30 = arith.constant 1.000000e+00 : f32
    %71 = vector.broadcast %cst_30 : f32 to vector<2x16xf32>
    %72 = arith.addf %71, %70 : vector<2x16xf32>
    %73 = arith.divf %71, %72 : vector<2x16xf32>
    %c0_31 = arith.constant 0 : index
    %c0_32 = arith.constant 0 : index
    %74 = vector.load %arg5[%c0_31, %c0_32] : memref<2x16xf32, #tpu.memory_space<vmem>>, vector<2x16xf32>
    %75 = arith.mulf %65, %74 : vector<2x16xf32>
    %76 = arith.mulf %59, %67 : vector<2x16xf32>
    %77 = arith.addf %75, %76 : vector<2x16xf32>
    %78 = math.tanh %77 : vector<2x16xf32>
    %79 = arith.mulf %73, %78 : vector<2x16xf32>
    %c0_33 = arith.constant 0 : index
    %c0_34 = arith.constant 0 : index
    %80 = vector.load %arg5[%c0_33, %c0_34] : memref<2x16xf32, #tpu.memory_space<vmem>>, vector<2x16xf32>
    tpu.vector_store %arg5[%c0_33, %c0_34], %77 {strides = array<i32>} : memref<2x16xf32, #tpu.memory_space<vmem>>, vector<2x16xf32>,
    %c0_35 = arith.constant 0 : index
    %c0_36 = arith.constant 0 : index
    %81 = vector.load %arg4[%c0_35, %c0_36] : memref<2x16xf32, #tpu.memory_space<vmem>>, vector<2x16xf32>
    tpu.vector_store %arg4[%c0_35, %c0_36], %79 {strides = array<i32>} : memref<2x16xf32, #tpu.memory_space<vmem>>, vector<2x16xf32>,
    %82 = vector.extract_strided_slice %79 {offsets = [0, 0], sizes = [2, 8], strides = [1, 1]} : vector<2x16xf32> to vector<2x8xf32>
    %83 = vector.shape_cast %82 : vector<2x8xf32> to vector<1x2x8xf32>
    %84 = arith.index_cast %c1_i32 : i32 to index
    %c0_37 = arith.constant 0 : index
    %c0_38 = arith.constant 0 : index
    %85 = vector.load %arg3[%84, %c0_37, %c0_38] : memref<8x2x16xf32, #tpu.memory_space<vmem>>, vector<1x2x8xf32>
    tpu.vector_store %arg3[%84, %c0_37, %c0_38], %83 {strides = array<i32>} : memref<8x2x16xf32, #tpu.memory_space<vmem>>, vector<1x2x8xf32>,
    %86 = vector.extract_strided_slice %79 {offsets = [0, 8], sizes = [2, 8], strides = [1, 1]} : vector<2x16xf32> to vector<2x8xf32>
    %87 = vector.shape_cast %86 : vector<2x8xf32> to vector<1x2x8xf32>
    %c7_i32_39 = arith.constant 7 : i32
    %88 = arith.subi %c7_i32_39, %c1_i32 : i32
    %89 = arith.index_cast %88 : i32 to index
    %c0_40 = arith.constant 0 : index
    %c8_41 = arith.constant 8 : index
    %90 = vector.load %arg3[%89, %c0_40, %c8_41] : memref<8x2x16xf32, #tpu.memory_space<vmem>>, vector<1x2x8xf32>
    tpu.vector_store %arg3[%89, %c0_40, %c8_41], %87 {strides = array<i32>} : memref<8x2x16xf32, #tpu.memory_space<vmem>>, vector<1x2x8xf32>,
    %c2_i32 = arith.constant 2 : i32
    %91 = arith.index_cast %c2_i32 : i32 to index
    %c0_42 = arith.constant 0 : index
    %c0_43 = arith.constant 0 : index
    %92 = vector.load %arg1[%91, %c0_42, %c0_43] : memref<8x2x64xf32, #tpu.memory_space<vmem>>, vector<1x2x64xf32>
    %93 = vector.shape_cast %92 : vector<1x2x64xf32> to vector<2x64xf32>
    %c0_44 = arith.constant 0 : index
    %c0_45 = arith.constant 0 : index
    %94 = vector.load %arg4[%c0_44, %c0_45] : memref<2x16xf32, #tpu.memory_space<vmem>>, vector<2x16xf32>
    %cst_46 = arith.constant dense<0.000000e+00> : vector<2x64xf32>
    %95 = tpu.matmul %94, %4, %cst_46 {dimension_numbers = #tpu.dot_dimension_numbers<[1], [0], [0], [1], [0, 0, 1, 1], [], []>} : vector<2x16xf32>, vector<16x64xf32>, vector<2x64xf32> -> vector<2x64xf32>
    %96 = arith.addf %93, %95 : vector<2x64xf32>
    %97 = vector.extract_strided_slice %96 {offsets = [0, 0], sizes = [2, 16], strides = [1, 1]} : vector<2x64xf32> to vector<2x16xf32>
    %98 = arith.negf %97 : vector<2x16xf32>
    %99 = math.exp %98 : vector<2x16xf32>
    %cst_47 = arith.constant 1.000000e+00 : f32
    %100 = vector.broadcast %cst_47 : f32 to vector<2x16xf32>
    %101 = arith.addf %100, %99 : vector<2x16xf32>
    %102 = arith.divf %100, %101 : vector<2x16xf32>
    %103 = vector.extract_strided_slice %96 {offsets = [0, 16], sizes = [2, 16], strides = [1, 1]} : vector<2x64xf32> to vector<2x16xf32>
    %104 = arith.negf %103 : vector<2x16xf32>
    %105 = math.exp %104 : vector<2x16xf32>
    %cst_48 = arith.constant 1.000000e+00 : f32
    %106 = vector.broadcast %cst_48 : f32 to vector<2x16xf32>
    %107 = arith.addf %106, %105 : vector<2x16xf32>
    %108 = arith.divf %106, %107 : vector<2x16xf32>
    %109 = vector.extract_strided_slice %96 {offsets = [0, 32], sizes = [2, 16], strides = [1, 1]} : vector<2x64xf32> to vector<2x16xf32>
    %110 = math.tanh %109 : vector<2x16xf32>
    %111 = vector.extract_strided_slice %96 {offsets = [0, 48], sizes = [2, 16], strides = [1, 1]} : vector<2x64xf32> to vector<2x16xf32>
    %112 = arith.negf %111 : vector<2x16xf32>
    %113 = math.exp %112 : vector<2x16xf32>
    %cst_49 = arith.constant 1.000000e+00 : f32
    %114 = vector.broadcast %cst_49 : f32 to vector<2x16xf32>
    %115 = arith.addf %114, %113 : vector<2x16xf32>
    %116 = arith.divf %114, %115 : vector<2x16xf32>
    %c0_50 = arith.constant 0 : index
    %c0_51 = arith.constant 0 : index
    %117 = vector.load %arg5[%c0_50, %c0_51] : memref<2x16xf32, #tpu.memory_space<vmem>>, vector<2x16xf32>
    %118 = arith.mulf %108, %117 : vector<2x16xf32>
    %119 = arith.mulf %102, %110 : vector<2x16xf32>
    %120 = arith.addf %118, %119 : vector<2x16xf32>
    %121 = math.tanh %120 : vector<2x16xf32>
    %122 = arith.mulf %116, %121 : vector<2x16xf32>
    %c0_52 = arith.constant 0 : index
    %c0_53 = arith.constant 0 : index
    %123 = vector.load %arg5[%c0_52, %c0_53] : memref<2x16xf32, #tpu.memory_space<vmem>>, vector<2x16xf32>
    tpu.vector_store %arg5[%c0_52, %c0_53], %120 {strides = array<i32>} : memref<2x16xf32, #tpu.memory_space<vmem>>, vector<2x16xf32>,
    %c0_54 = arith.constant 0 : index
    %c0_55 = arith.constant 0 : index
    %124 = vector.load %arg4[%c0_54, %c0_55] : memref<2x16xf32, #tpu.memory_space<vmem>>, vector<2x16xf32>
    tpu.vector_store %arg4[%c0_54, %c0_55], %122 {strides = array<i32>} : memref<2x16xf32, #tpu.memory_space<vmem>>, vector<2x16xf32>,
    %125 = vector.extract_strided_slice %122 {offsets = [0, 0], sizes = [2, 8], strides = [1, 1]} : vector<2x16xf32> to vector<2x8xf32>
    %126 = vector.shape_cast %125 : vector<2x8xf32> to vector<1x2x8xf32>
    %127 = arith.index_cast %c2_i32 : i32 to index
    %c0_56 = arith.constant 0 : index
    %c0_57 = arith.constant 0 : index
    %128 = vector.load %arg3[%127, %c0_56, %c0_57] : memref<8x2x16xf32, #tpu.memory_space<vmem>>, vector<1x2x8xf32>
    tpu.vector_store %arg3[%127, %c0_56, %c0_57], %126 {strides = array<i32>} : memref<8x2x16xf32, #tpu.memory_space<vmem>>, vector<1x2x8xf32>,
    %129 = vector.extract_strided_slice %122 {offsets = [0, 8], sizes = [2, 8], strides = [1, 1]} : vector<2x16xf32> to vector<2x8xf32>
    %130 = vector.shape_cast %129 : vector<2x8xf32> to vector<1x2x8xf32>
    %c7_i32_58 = arith.constant 7 : i32
    %131 = arith.subi %c7_i32_58, %c2_i32 : i32
    %132 = arith.index_cast %131 : i32 to index
    %c0_59 = arith.constant 0 : index
    %c8_60 = arith.constant 8 : index
    %133 = vector.load %arg3[%132, %c0_59, %c8_60] : memref<8x2x16xf32, #tpu.memory_space<vmem>>, vector<1x2x8xf32>
    tpu.vector_store %arg3[%132, %c0_59, %c8_60], %130 {strides = array<i32>} : memref<8x2x16xf32, #tpu.memory_space<vmem>>, vector<1x2x8xf32>,
    %c3_i32 = arith.constant 3 : i32
    %134 = arith.index_cast %c3_i32 : i32 to index
    %c0_61 = arith.constant 0 : index
    %c0_62 = arith.constant 0 : index
    %135 = vector.load %arg1[%134, %c0_61, %c0_62] : memref<8x2x64xf32, #tpu.memory_space<vmem>>, vector<1x2x64xf32>
    %136 = vector.shape_cast %135 : vector<1x2x64xf32> to vector<2x64xf32>
    %c0_63 = arith.constant 0 : index
    %c0_64 = arith.constant 0 : index
    %137 = vector.load %arg4[%c0_63, %c0_64] : memref<2x16xf32, #tpu.memory_space<vmem>>, vector<2x16xf32>
    %cst_65 = arith.constant dense<0.000000e+00> : vector<2x64xf32>
    %138 = tpu.matmul %137, %4, %cst_65 {dimension_numbers = #tpu.dot_dimension_numbers<[1], [0], [0], [1], [0, 0, 1, 1], [], []>} : vector<2x16xf32>, vector<16x64xf32>, vector<2x64xf32> -> vector<2x64xf32>
    %139 = arith.addf %136, %138 : vector<2x64xf32>
    %140 = vector.extract_strided_slice %139 {offsets = [0, 0], sizes = [2, 16], strides = [1, 1]} : vector<2x64xf32> to vector<2x16xf32>
    %141 = arith.negf %140 : vector<2x16xf32>
    %142 = math.exp %141 : vector<2x16xf32>
    %cst_66 = arith.constant 1.000000e+00 : f32
    %143 = vector.broadcast %cst_66 : f32 to vector<2x16xf32>
    %144 = arith.addf %143, %142 : vector<2x16xf32>
    %145 = arith.divf %143, %144 : vector<2x16xf32>
    %146 = vector.extract_strided_slice %139 {offsets = [0, 16], sizes = [2, 16], strides = [1, 1]} : vector<2x64xf32> to vector<2x16xf32>
    %147 = arith.negf %146 : vector<2x16xf32>
    %148 = math.exp %147 : vector<2x16xf32>
    %cst_67 = arith.constant 1.000000e+00 : f32
    %149 = vector.broadcast %cst_67 : f32 to vector<2x16xf32>
    %150 = arith.addf %149, %148 : vector<2x16xf32>
    %151 = arith.divf %149, %150 : vector<2x16xf32>
    %152 = vector.extract_strided_slice %139 {offsets = [0, 32], sizes = [2, 16], strides = [1, 1]} : vector<2x64xf32> to vector<2x16xf32>
    %153 = math.tanh %152 : vector<2x16xf32>
    %154 = vector.extract_strided_slice %139 {offsets = [0, 48], sizes = [2, 16], strides = [1, 1]} : vector<2x64xf32> to vector<2x16xf32>
    %155 = arith.negf %154 : vector<2x16xf32>
    %156 = math.exp %155 : vector<2x16xf32>
    %cst_68 = arith.constant 1.000000e+00 : f32
    %157 = vector.broadcast %cst_68 : f32 to vector<2x16xf32>
    %158 = arith.addf %157, %156 : vector<2x16xf32>
    %159 = arith.divf %157, %158 : vector<2x16xf32>
    %c0_69 = arith.constant 0 : index
    %c0_70 = arith.constant 0 : index
    %160 = vector.load %arg5[%c0_69, %c0_70] : memref<2x16xf32, #tpu.memory_space<vmem>>, vector<2x16xf32>
    %161 = arith.mulf %151, %160 : vector<2x16xf32>
    %162 = arith.mulf %145, %153 : vector<2x16xf32>
    %163 = arith.addf %161, %162 : vector<2x16xf32>
    %164 = math.tanh %163 : vector<2x16xf32>
    %165 = arith.mulf %159, %164 : vector<2x16xf32>
    %c0_71 = arith.constant 0 : index
    %c0_72 = arith.constant 0 : index
    %166 = vector.load %arg5[%c0_71, %c0_72] : memref<2x16xf32, #tpu.memory_space<vmem>>, vector<2x16xf32>
    tpu.vector_store %arg5[%c0_71, %c0_72], %163 {strides = array<i32>} : memref<2x16xf32, #tpu.memory_space<vmem>>, vector<2x16xf32>,
    %c0_73 = arith.constant 0 : index
    %c0_74 = arith.constant 0 : index
    %167 = vector.load %arg4[%c0_73, %c0_74] : memref<2x16xf32, #tpu.memory_space<vmem>>, vector<2x16xf32>
    tpu.vector_store %arg4[%c0_73, %c0_74], %165 {strides = array<i32>} : memref<2x16xf32, #tpu.memory_space<vmem>>, vector<2x16xf32>,
    %168 = vector.extract_strided_slice %165 {offsets = [0, 0], sizes = [2, 8], strides = [1, 1]} : vector<2x16xf32> to vector<2x8xf32>
    %169 = vector.shape_cast %168 : vector<2x8xf32> to vector<1x2x8xf32>
    %170 = arith.index_cast %c3_i32 : i32 to index
    %c0_75 = arith.constant 0 : index
    %c0_76 = arith.constant 0 : index
    %171 = vector.load %arg3[%170, %c0_75, %c0_76] : memref<8x2x16xf32, #tpu.memory_space<vmem>>, vector<1x2x8xf32>
    tpu.vector_store %arg3[%170, %c0_75, %c0_76], %169 {strides = array<i32>} : memref<8x2x16xf32, #tpu.memory_space<vmem>>, vector<1x2x8xf32>,
    %172 = vector.extract_strided_slice %165 {offsets = [0, 8], sizes = [2, 8], strides = [1, 1]} : vector<2x16xf32> to vector<2x8xf32>
    %173 = vector.shape_cast %172 : vector<2x8xf32> to vector<1x2x8xf32>
    %c7_i32_77 = arith.constant 7 : i32
    %174 = arith.subi %c7_i32_77, %c3_i32 : i32
    %175 = arith.index_cast %174 : i32 to index
    %c0_78 = arith.constant 0 : index
    %c8_79 = arith.constant 8 : index
    %176 = vector.load %arg3[%175, %c0_78, %c8_79] : memref<8x2x16xf32, #tpu.memory_space<vmem>>, vector<1x2x8xf32>
    tpu.vector_store %arg3[%175, %c0_78, %c8_79], %173 {strides = array<i32>} : memref<8x2x16xf32, #tpu.memory_space<vmem>>, vector<1x2x8xf32>,
    %c4_i32 = arith.constant 4 : i32
    %177 = arith.index_cast %c4_i32 : i32 to index
    %c0_80 = arith.constant 0 : index
    %c0_81 = arith.constant 0 : index
    %178 = vector.load %arg1[%177, %c0_80, %c0_81] : memref<8x2x64xf32, #tpu.memory_space<vmem>>, vector<1x2x64xf32>
    %179 = vector.shape_cast %178 : vector<1x2x64xf32> to vector<2x64xf32>
    %c0_82 = arith.constant 0 : index
    %c0_83 = arith.constant 0 : index
    %180 = vector.load %arg4[%c0_82, %c0_83] : memref<2x16xf32, #tpu.memory_space<vmem>>, vector<2x16xf32>
    %cst_84 = arith.constant dense<0.000000e+00> : vector<2x64xf32>
    %181 = tpu.matmul %180, %4, %cst_84 {dimension_numbers = #tpu.dot_dimension_numbers<[1], [0], [0], [1], [0, 0, 1, 1], [], []>} : vector<2x16xf32>, vector<16x64xf32>, vector<2x64xf32> -> vector<2x64xf32>
    %182 = arith.addf %179, %181 : vector<2x64xf32>
    %183 = vector.extract_strided_slice %182 {offsets = [0, 0], sizes = [2, 16], strides = [1, 1]} : vector<2x64xf32> to vector<2x16xf32>
    %184 = arith.negf %183 : vector<2x16xf32>
    %185 = math.exp %184 : vector<2x16xf32>
    %cst_85 = arith.constant 1.000000e+00 : f32
    %186 = vector.broadcast %cst_85 : f32 to vector<2x16xf32>
    %187 = arith.addf %186, %185 : vector<2x16xf32>
    %188 = arith.divf %186, %187 : vector<2x16xf32>
    %189 = vector.extract_strided_slice %182 {offsets = [0, 16], sizes = [2, 16], strides = [1, 1]} : vector<2x64xf32> to vector<2x16xf32>
    %190 = arith.negf %189 : vector<2x16xf32>
    %191 = math.exp %190 : vector<2x16xf32>
    %cst_86 = arith.constant 1.000000e+00 : f32
    %192 = vector.broadcast %cst_86 : f32 to vector<2x16xf32>
    %193 = arith.addf %192, %191 : vector<2x16xf32>
    %194 = arith.divf %192, %193 : vector<2x16xf32>
    %195 = vector.extract_strided_slice %182 {offsets = [0, 32], sizes = [2, 16], strides = [1, 1]} : vector<2x64xf32> to vector<2x16xf32>
    %196 = math.tanh %195 : vector<2x16xf32>
    %197 = vector.extract_strided_slice %182 {offsets = [0, 48], sizes = [2, 16], strides = [1, 1]} : vector<2x64xf32> to vector<2x16xf32>
    %198 = arith.negf %197 : vector<2x16xf32>
    %199 = math.exp %198 : vector<2x16xf32>
    %cst_87 = arith.constant 1.000000e+00 : f32
    %200 = vector.broadcast %cst_87 : f32 to vector<2x16xf32>
    %201 = arith.addf %200, %199 : vector<2x16xf32>
    %202 = arith.divf %200, %201 : vector<2x16xf32>
    %c0_88 = arith.constant 0 : index
    %c0_89 = arith.constant 0 : index
    %203 = vector.load %arg5[%c0_88, %c0_89] : memref<2x16xf32, #tpu.memory_space<vmem>>, vector<2x16xf32>
    %204 = arith.mulf %194, %203 : vector<2x16xf32>
    %205 = arith.mulf %188, %196 : vector<2x16xf32>
    %206 = arith.addf %204, %205 : vector<2x16xf32>
    %207 = math.tanh %206 : vector<2x16xf32>
    %208 = arith.mulf %202, %207 : vector<2x16xf32>
    %c0_90 = arith.constant 0 : index
    %c0_91 = arith.constant 0 : index
    %209 = vector.load %arg5[%c0_90, %c0_91] : memref<2x16xf32, #tpu.memory_space<vmem>>, vector<2x16xf32>
    tpu.vector_store %arg5[%c0_90, %c0_91], %206 {strides = array<i32>} : memref<2x16xf32, #tpu.memory_space<vmem>>, vector<2x16xf32>,
    %c0_92 = arith.constant 0 : index
    %c0_93 = arith.constant 0 : index
    %210 = vector.load %arg4[%c0_92, %c0_93] : memref<2x16xf32, #tpu.memory_space<vmem>>, vector<2x16xf32>
    tpu.vector_store %arg4[%c0_92, %c0_93], %208 {strides = array<i32>} : memref<2x16xf32, #tpu.memory_space<vmem>>, vector<2x16xf32>,
    %211 = vector.extract_strided_slice %208 {offsets = [0, 0], sizes = [2, 8], strides = [1, 1]} : vector<2x16xf32> to vector<2x8xf32>
    %212 = vector.shape_cast %211 : vector<2x8xf32> to vector<1x2x8xf32>
    %213 = arith.index_cast %c4_i32 : i32 to index
    %c0_94 = arith.constant 0 : index
    %c0_95 = arith.constant 0 : index
    %214 = vector.load %arg3[%213, %c0_94, %c0_95] : memref<8x2x16xf32, #tpu.memory_space<vmem>>, vector<1x2x8xf32>
    tpu.vector_store %arg3[%213, %c0_94, %c0_95], %212 {strides = array<i32>} : memref<8x2x16xf32, #tpu.memory_space<vmem>>, vector<1x2x8xf32>,
    %215 = vector.extract_strided_slice %208 {offsets = [0, 8], sizes = [2, 8], strides = [1, 1]} : vector<2x16xf32> to vector<2x8xf32>
    %216 = vector.shape_cast %215 : vector<2x8xf32> to vector<1x2x8xf32>
    %c7_i32_96 = arith.constant 7 : i32
    %217 = arith.subi %c7_i32_96, %c4_i32 : i32
    %218 = arith.index_cast %217 : i32 to index
    %c0_97 = arith.constant 0 : index
    %c8_98 = arith.constant 8 : index
    %219 = vector.load %arg3[%218, %c0_97, %c8_98] : memref<8x2x16xf32, #tpu.memory_space<vmem>>, vector<1x2x8xf32>
    tpu.vector_store %arg3[%218, %c0_97, %c8_98], %216 {strides = array<i32>} : memref<8x2x16xf32, #tpu.memory_space<vmem>>, vector<1x2x8xf32>,
    %c5_i32 = arith.constant 5 : i32
    %220 = arith.index_cast %c5_i32 : i32 to index
    %c0_99 = arith.constant 0 : index
    %c0_100 = arith.constant 0 : index
    %221 = vector.load %arg1[%220, %c0_99, %c0_100] : memref<8x2x64xf32, #tpu.memory_space<vmem>>, vector<1x2x64xf32>
    %222 = vector.shape_cast %221 : vector<1x2x64xf32> to vector<2x64xf32>
    %c0_101 = arith.constant 0 : index
    %c0_102 = arith.constant 0 : index
    %223 = vector.load %arg4[%c0_101, %c0_102] : memref<2x16xf32, #tpu.memory_space<vmem>>, vector<2x16xf32>
    %cst_103 = arith.constant dense<0.000000e+00> : vector<2x64xf32>
    %224 = tpu.matmul %223, %4, %cst_103 {dimension_numbers = #tpu.dot_dimension_numbers<[1], [0], [0], [1], [0, 0, 1, 1], [], []>} : vector<2x16xf32>, vector<16x64xf32>, vector<2x64xf32> -> vector<2x64xf32>
    %225 = arith.addf %222, %224 : vector<2x64xf32>
    %226 = vector.extract_strided_slice %225 {offsets = [0, 0], sizes = [2, 16], strides = [1, 1]} : vector<2x64xf32> to vector<2x16xf32>
    %227 = arith.negf %226 : vector<2x16xf32>
    %228 = math.exp %227 : vector<2x16xf32>
    %cst_104 = arith.constant 1.000000e+00 : f32
    %229 = vector.broadcast %cst_104 : f32 to vector<2x16xf32>
    %230 = arith.addf %229, %228 : vector<2x16xf32>
    %231 = arith.divf %229, %230 : vector<2x16xf32>
    %232 = vector.extract_strided_slice %225 {offsets = [0, 16], sizes = [2, 16], strides = [1, 1]} : vector<2x64xf32> to vector<2x16xf32>
    %233 = arith.negf %232 : vector<2x16xf32>
    %234 = math.exp %233 : vector<2x16xf32>
    %cst_105 = arith.constant 1.000000e+00 : f32
    %235 = vector.broadcast %cst_105 : f32 to vector<2x16xf32>
    %236 = arith.addf %235, %234 : vector<2x16xf32>
    %237 = arith.divf %235, %236 : vector<2x16xf32>
    %238 = vector.extract_strided_slice %225 {offsets = [0, 32], sizes = [2, 16], strides = [1, 1]} : vector<2x64xf32> to vector<2x16xf32>
    %239 = math.tanh %238 : vector<2x16xf32>
    %240 = vector.extract_strided_slice %225 {offsets = [0, 48], sizes = [2, 16], strides = [1, 1]} : vector<2x64xf32> to vector<2x16xf32>
    %241 = arith.negf %240 : vector<2x16xf32>
    %242 = math.exp %241 : vector<2x16xf32>
    %cst_106 = arith.constant 1.000000e+00 : f32
    %243 = vector.broadcast %cst_106 : f32 to vector<2x16xf32>
    %244 = arith.addf %243, %242 : vector<2x16xf32>
    %245 = arith.divf %243, %244 : vector<2x16xf32>
    %c0_107 = arith.constant 0 : index
    %c0_108 = arith.constant 0 : index
    %246 = vector.load %arg5[%c0_107, %c0_108] : memref<2x16xf32, #tpu.memory_space<vmem>>, vector<2x16xf32>
    %247 = arith.mulf %237, %246 : vector<2x16xf32>
    %248 = arith.mulf %231, %239 : vector<2x16xf32>
    %249 = arith.addf %247, %248 : vector<2x16xf32>
    %250 = math.tanh %249 : vector<2x16xf32>
    %251 = arith.mulf %245, %250 : vector<2x16xf32>
    %c0_109 = arith.constant 0 : index
    %c0_110 = arith.constant 0 : index
    %252 = vector.load %arg5[%c0_109, %c0_110] : memref<2x16xf32, #tpu.memory_space<vmem>>, vector<2x16xf32>
    tpu.vector_store %arg5[%c0_109, %c0_110], %249 {strides = array<i32>} : memref<2x16xf32, #tpu.memory_space<vmem>>, vector<2x16xf32>,
    %c0_111 = arith.constant 0 : index
    %c0_112 = arith.constant 0 : index
    %253 = vector.load %arg4[%c0_111, %c0_112] : memref<2x16xf32, #tpu.memory_space<vmem>>, vector<2x16xf32>
    tpu.vector_store %arg4[%c0_111, %c0_112], %251 {strides = array<i32>} : memref<2x16xf32, #tpu.memory_space<vmem>>, vector<2x16xf32>,
    %254 = vector.extract_strided_slice %251 {offsets = [0, 0], sizes = [2, 8], strides = [1, 1]} : vector<2x16xf32> to vector<2x8xf32>
    %255 = vector.shape_cast %254 : vector<2x8xf32> to vector<1x2x8xf32>
    %256 = arith.index_cast %c5_i32 : i32 to index
    %c0_113 = arith.constant 0 : index
    %c0_114 = arith.constant 0 : index
    %257 = vector.load %arg3[%256, %c0_113, %c0_114] : memref<8x2x16xf32, #tpu.memory_space<vmem>>, vector<1x2x8xf32>
    tpu.vector_store %arg3[%256, %c0_113, %c0_114], %255 {strides = array<i32>} : memref<8x2x16xf32, #tpu.memory_space<vmem>>, vector<1x2x8xf32>,
    %258 = vector.extract_strided_slice %251 {offsets = [0, 8], sizes = [2, 8], strides = [1, 1]} : vector<2x16xf32> to vector<2x8xf32>
    %259 = vector.shape_cast %258 : vector<2x8xf32> to vector<1x2x8xf32>
    %c7_i32_115 = arith.constant 7 : i32
    %260 = arith.subi %c7_i32_115, %c5_i32 : i32
    %261 = arith.index_cast %260 : i32 to index
    %c0_116 = arith.constant 0 : index
    %c8_117 = arith.constant 8 : index
    %262 = vector.load %arg3[%261, %c0_116, %c8_117] : memref<8x2x16xf32, #tpu.memory_space<vmem>>, vector<1x2x8xf32>
    tpu.vector_store %arg3[%261, %c0_116, %c8_117], %259 {strides = array<i32>} : memref<8x2x16xf32, #tpu.memory_space<vmem>>, vector<1x2x8xf32>,
    %c6_i32 = arith.constant 6 : i32
    %263 = arith.index_cast %c6_i32 : i32 to index
    %c0_118 = arith.constant 0 : index
    %c0_119 = arith.constant 0 : index
    %264 = vector.load %arg1[%263, %c0_118, %c0_119] : memref<8x2x64xf32, #tpu.memory_space<vmem>>, vector<1x2x64xf32>
    %265 = vector.shape_cast %264 : vector<1x2x64xf32> to vector<2x64xf32>
    %c0_120 = arith.constant 0 : index
    %c0_121 = arith.constant 0 : index
    %266 = vector.load %arg4[%c0_120, %c0_121] : memref<2x16xf32, #tpu.memory_space<vmem>>, vector<2x16xf32>
    %cst_122 = arith.constant dense<0.000000e+00> : vector<2x64xf32>
    %267 = tpu.matmul %266, %4, %cst_122 {dimension_numbers = #tpu.dot_dimension_numbers<[1], [0], [0], [1], [0, 0, 1, 1], [], []>} : vector<2x16xf32>, vector<16x64xf32>, vector<2x64xf32> -> vector<2x64xf32>
    %268 = arith.addf %265, %267 : vector<2x64xf32>
    %269 = vector.extract_strided_slice %268 {offsets = [0, 0], sizes = [2, 16], strides = [1, 1]} : vector<2x64xf32> to vector<2x16xf32>
    %270 = arith.negf %269 : vector<2x16xf32>
    %271 = math.exp %270 : vector<2x16xf32>
    %cst_123 = arith.constant 1.000000e+00 : f32
    %272 = vector.broadcast %cst_123 : f32 to vector<2x16xf32>
    %273 = arith.addf %272, %271 : vector<2x16xf32>
    %274 = arith.divf %272, %273 : vector<2x16xf32>
    %275 = vector.extract_strided_slice %268 {offsets = [0, 16], sizes = [2, 16], strides = [1, 1]} : vector<2x64xf32> to vector<2x16xf32>
    %276 = arith.negf %275 : vector<2x16xf32>
    %277 = math.exp %276 : vector<2x16xf32>
    %cst_124 = arith.constant 1.000000e+00 : f32
    %278 = vector.broadcast %cst_124 : f32 to vector<2x16xf32>
    %279 = arith.addf %278, %277 : vector<2x16xf32>
    %280 = arith.divf %278, %279 : vector<2x16xf32>
    %281 = vector.extract_strided_slice %268 {offsets = [0, 32], sizes = [2, 16], strides = [1, 1]} : vector<2x64xf32> to vector<2x16xf32>
    %282 = math.tanh %281 : vector<2x16xf32>
    %283 = vector.extract_strided_slice %268 {offsets = [0, 48], sizes = [2, 16], strides = [1, 1]} : vector<2x64xf32> to vector<2x16xf32>
    %284 = arith.negf %283 : vector<2x16xf32>
    %285 = math.exp %284 : vector<2x16xf32>
    %cst_125 = arith.constant 1.000000e+00 : f32
    %286 = vector.broadcast %cst_125 : f32 to vector<2x16xf32>
    %287 = arith.addf %286, %285 : vector<2x16xf32>
    %288 = arith.divf %286, %287 : vector<2x16xf32>
    %c0_126 = arith.constant 0 : index
    %c0_127 = arith.constant 0 : index
    %289 = vector.load %arg5[%c0_126, %c0_127] : memref<2x16xf32, #tpu.memory_space<vmem>>, vector<2x16xf32>
    %290 = arith.mulf %280, %289 : vector<2x16xf32>
    %291 = arith.mulf %274, %282 : vector<2x16xf32>
    %292 = arith.addf %290, %291 : vector<2x16xf32>
    %293 = math.tanh %292 : vector<2x16xf32>
    %294 = arith.mulf %288, %293 : vector<2x16xf32>
    %c0_128 = arith.constant 0 : index
    %c0_129 = arith.constant 0 : index
    %295 = vector.load %arg5[%c0_128, %c0_129] : memref<2x16xf32, #tpu.memory_space<vmem>>, vector<2x16xf32>
    tpu.vector_store %arg5[%c0_128, %c0_129], %292 {strides = array<i32>} : memref<2x16xf32, #tpu.memory_space<vmem>>, vector<2x16xf32>,
    %c0_130 = arith.constant 0 : index
    %c0_131 = arith.constant 0 : index
    %296 = vector.load %arg4[%c0_130, %c0_131] : memref<2x16xf32, #tpu.memory_space<vmem>>, vector<2x16xf32>
    tpu.vector_store %arg4[%c0_130, %c0_131], %294 {strides = array<i32>} : memref<2x16xf32, #tpu.memory_space<vmem>>, vector<2x16xf32>,
    %297 = vector.extract_strided_slice %294 {offsets = [0, 0], sizes = [2, 8], strides = [1, 1]} : vector<2x16xf32> to vector<2x8xf32>
    %298 = vector.shape_cast %297 : vector<2x8xf32> to vector<1x2x8xf32>
    %299 = arith.index_cast %c6_i32 : i32 to index
    %c0_132 = arith.constant 0 : index
    %c0_133 = arith.constant 0 : index
    %300 = vector.load %arg3[%299, %c0_132, %c0_133] : memref<8x2x16xf32, #tpu.memory_space<vmem>>, vector<1x2x8xf32>
    tpu.vector_store %arg3[%299, %c0_132, %c0_133], %298 {strides = array<i32>} : memref<8x2x16xf32, #tpu.memory_space<vmem>>, vector<1x2x8xf32>,
    %301 = vector.extract_strided_slice %294 {offsets = [0, 8], sizes = [2, 8], strides = [1, 1]} : vector<2x16xf32> to vector<2x8xf32>
    %302 = vector.shape_cast %301 : vector<2x8xf32> to vector<1x2x8xf32>
    %c7_i32_134 = arith.constant 7 : i32
    %303 = arith.subi %c7_i32_134, %c6_i32 : i32
    %304 = arith.index_cast %303 : i32 to index
    %c0_135 = arith.constant 0 : index
    %c8_136 = arith.constant 8 : index
    %305 = vector.load %arg3[%304, %c0_135, %c8_136] : memref<8x2x16xf32, #tpu.memory_space<vmem>>, vector<1x2x8xf32>
    tpu.vector_store %arg3[%304, %c0_135, %c8_136], %302 {strides = array<i32>} : memref<8x2x16xf32, #tpu.memory_space<vmem>>, vector<1x2x8xf32>,
    %c7_i32_137 = arith.constant 7 : i32
    %306 = arith.index_cast %c7_i32_137 : i32 to index
    %c0_138 = arith.constant 0 : index
    %c0_139 = arith.constant 0 : index
    %307 = vector.load %arg1[%306, %c0_138, %c0_139] : memref<8x2x64xf32, #tpu.memory_space<vmem>>, vector<1x2x64xf32>
    %308 = vector.shape_cast %307 : vector<1x2x64xf32> to vector<2x64xf32>
    %c0_140 = arith.constant 0 : index
    %c0_141 = arith.constant 0 : index
    %309 = vector.load %arg4[%c0_140, %c0_141] : memref<2x16xf32, #tpu.memory_space<vmem>>, vector<2x16xf32>
    %cst_142 = arith.constant dense<0.000000e+00> : vector<2x64xf32>
    %310 = tpu.matmul %309, %4, %cst_142 {dimension_numbers = #tpu.dot_dimension_numbers<[1], [0], [0], [1], [0, 0, 1, 1], [], []>} : vector<2x16xf32>, vector<16x64xf32>, vector<2x64xf32> -> vector<2x64xf32>
    %311 = arith.addf %308, %310 : vector<2x64xf32>
    %312 = vector.extract_strided_slice %311 {offsets = [0, 0], sizes = [2, 16], strides = [1, 1]} : vector<2x64xf32> to vector<2x16xf32>
    %313 = arith.negf %312 : vector<2x16xf32>
    %314 = math.exp %313 : vector<2x16xf32>
    %cst_143 = arith.constant 1.000000e+00 : f32
    %315 = vector.broadcast %cst_143 : f32 to vector<2x16xf32>
    %316 = arith.addf %315, %314 : vector<2x16xf32>
    %317 = arith.divf %315, %316 : vector<2x16xf32>
    %318 = vector.extract_strided_slice %311 {offsets = [0, 16], sizes = [2, 16], strides = [1, 1]} : vector<2x64xf32> to vector<2x16xf32>
    %319 = arith.negf %318 : vector<2x16xf32>
    %320 = math.exp %319 : vector<2x16xf32>
    %cst_144 = arith.constant 1.000000e+00 : f32
    %321 = vector.broadcast %cst_144 : f32 to vector<2x16xf32>
    %322 = arith.addf %321, %320 : vector<2x16xf32>
    %323 = arith.divf %321, %322 : vector<2x16xf32>
    %324 = vector.extract_strided_slice %311 {offsets = [0, 32], sizes = [2, 16], strides = [1, 1]} : vector<2x64xf32> to vector<2x16xf32>
    %325 = math.tanh %324 : vector<2x16xf32>
    %326 = vector.extract_strided_slice %311 {offsets = [0, 48], sizes = [2, 16], strides = [1, 1]} : vector<2x64xf32> to vector<2x16xf32>
    %327 = arith.negf %326 : vector<2x16xf32>
    %328 = math.exp %327 : vector<2x16xf32>
    %cst_145 = arith.constant 1.000000e+00 : f32
    %329 = vector.broadcast %cst_145 : f32 to vector<2x16xf32>
    %330 = arith.addf %329, %328 : vector<2x16xf32>
    %331 = arith.divf %329, %330 : vector<2x16xf32>
    %c0_146 = arith.constant 0 : index
    %c0_147 = arith.constant 0 : index
    %332 = vector.load %arg5[%c0_146, %c0_147] : memref<2x16xf32, #tpu.memory_space<vmem>>, vector<2x16xf32>
    %333 = arith.mulf %323, %332 : vector<2x16xf32>
    %334 = arith.mulf %317, %325 : vector<2x16xf32>
    %335 = arith.addf %333, %334 : vector<2x16xf32>
    %336 = math.tanh %335 : vector<2x16xf32>
    %337 = arith.mulf %331, %336 : vector<2x16xf32>
    %c0_148 = arith.constant 0 : index
    %c0_149 = arith.constant 0 : index
    %338 = vector.load %arg5[%c0_148, %c0_149] : memref<2x16xf32, #tpu.memory_space<vmem>>, vector<2x16xf32>
    tpu.vector_store %arg5[%c0_148, %c0_149], %335 {strides = array<i32>} : memref<2x16xf32, #tpu.memory_space<vmem>>, vector<2x16xf32>,
    %c0_150 = arith.constant 0 : index
    %c0_151 = arith.constant 0 : index
    %339 = vector.load %arg4[%c0_150, %c0_151] : memref<2x16xf32, #tpu.memory_space<vmem>>, vector<2x16xf32>
    tpu.vector_store %arg4[%c0_150, %c0_151], %337 {strides = array<i32>} : memref<2x16xf32, #tpu.memory_space<vmem>>, vector<2x16xf32>,
    %340 = vector.extract_strided_slice %337 {offsets = [0, 0], sizes = [2, 8], strides = [1, 1]} : vector<2x16xf32> to vector<2x8xf32>
    %341 = vector.shape_cast %340 : vector<2x8xf32> to vector<1x2x8xf32>
    %342 = arith.index_cast %c7_i32_137 : i32 to index
    %c0_152 = arith.constant 0 : index
    %c0_153 = arith.constant 0 : index
    %343 = vector.load %arg3[%342, %c0_152, %c0_153] : memref<8x2x16xf32, #tpu.memory_space<vmem>>, vector<1x2x8xf32>
    tpu.vector_store %arg3[%342, %c0_152, %c0_153], %341 {strides = array<i32>} : memref<8x2x16xf32, #tpu.memory_space<vmem>>, vector<1x2x8xf32>,
    %344 = vector.extract_strided_slice %337 {offsets = [0, 8], sizes = [2, 8], strides = [1, 1]} : vector<2x16xf32> to vector<2x8xf32>
    %345 = vector.shape_cast %344 : vector<2x8xf32> to vector<1x2x8xf32>
    %c7_i32_154 = arith.constant 7 : i32
    %346 = arith.subi %c7_i32_154, %c7_i32_137 : i32
    %347 = arith.index_cast %346 : i32 to index
    %c0_155 = arith.constant 0 : index
    %c8_156 = arith.constant 8 : index
    %348 = vector.load %arg3[%347, %c0_155, %c8_156] : memref<8x2x16xf32, #tpu.memory_space<vmem>>, vector<1x2x8xf32>
    tpu.vector_store %arg3[%347, %c0_155, %c8_156], %345 {strides = array<i32>} : memref<8x2x16xf32, #tpu.memory_space<vmem>>, vector<1x2x8xf32>,
    %c8_i32 = arith.constant 8 : i32
    return
  }
  func.func @transform_0(%arg0: i32) -> (i32, i32, i32) {
    %c0_i32 = arith.constant 0 : i32
    %c0_i32_0 = arith.constant 0 : i32
    %c0_i32_1 = arith.constant 0 : i32
    return %c0_i32, %arg0, %c0_i32_0 : i32, i32, i32
  }
  func.func @transform_1(%arg0: i32) -> (i32, i32) {
    %c0_i32 = arith.constant 0 : i32
    %c0_i32_0 = arith.constant 0 : i32
    %c0_i32_1 = arith.constant 0 : i32
    return %c0_i32, %c0_i32_0 : i32, i32
  }
  func.func @transform_2(%arg0: i32) -> (i32, i32, i32) {
    %c0_i32 = arith.constant 0 : i32
    %c0_i32_0 = arith.constant 0 : i32
    %c0_i32_1 = arith.constant 0 : i32
    return %c0_i32, %arg0, %c0_i32_0 : i32, i32, i32
  }
}

module attributes {stable_mosaic.version = 11 : i64} {
  func.func @_pbilstm_kernel(%arg0: i32, %arg1: memref<16x2x64xf32, #tpu.memory_space<vmem>>, %arg2: memref<16x64xf32, #tpu.memory_space<vmem>>, %arg3: memref<16x2x16xf32, #tpu.memory_space<vmem>>, %arg4: memref<2x16xf32, #tpu.memory_space<vmem>>, %arg5: memref<2x16xf32, #tpu.memory_space<vmem>>) attributes {dimension_semantics = [#tpu.dimension_semantics<parallel>], iteration_bounds = array<i64: 1>, scalar_prefetch = 0 : i64, scratch_operands = 2 : i64, tpu.core_type = #tpu.core_type<tc>, window_params = [{transform_indices = @transform_0, window_bounds = array<i64: 16, 2, 64>}, {pipeline_mode = #tpu.pipeline_mode<synchronous>, transform_indices = @transform_1, window_bounds = array<i64: 16, 64>}, {transform_indices = @transform_2, window_bounds = array<i64: 16, 2, 16>}]} {
    %cst = arith.constant 0.000000e+00 : f32
    %0 = vector.broadcast %cst : f32 to vector<2x16xf32>
    %c0 = arith.constant 0 : index
    %c0_0 = arith.constant 0 : index
    %1 = vector.load %arg4[%c0, %c0_0] : memref<2x16xf32, #tpu.memory_space<vmem>>, vector<2x16xf32>
    tpu.vector_store %arg4[%c0, %c0_0], %0 {strides = array<i32>} : memref<2x16xf32, #tpu.memory_space<vmem>>, vector<2x16xf32>,
    %cst_1 = arith.constant 0.000000e+00 : f32
    %2 = vector.broadcast %cst_1 : f32 to vector<2x16xf32>
    %c0_2 = arith.constant 0 : index
    %c0_3 = arith.constant 0 : index
    %3 = vector.load %arg5[%c0_2, %c0_3] : memref<2x16xf32, #tpu.memory_space<vmem>>, vector<2x16xf32>
    tpu.vector_store %arg5[%c0_2, %c0_3], %2 {strides = array<i32>} : memref<2x16xf32, #tpu.memory_space<vmem>>, vector<2x16xf32>,
    %c0_4 = arith.constant 0 : index
    %c0_5 = arith.constant 0 : index
    %4 = vector.load %arg2[%c0_4, %c0_5] : memref<16x64xf32, #tpu.memory_space<vmem>>, vector<16x64xf32>
    %c0_i32 = arith.constant 0 : i32
    %5 = arith.index_cast %c0_i32 : i32 to index
    %c0_6 = arith.constant 0 : index
    %c0_7 = arith.constant 0 : index
    %6 = vector.load %arg1[%5, %c0_6, %c0_7] : memref<16x2x64xf32, #tpu.memory_space<vmem>>, vector<1x2x64xf32>
    %7 = vector.shape_cast %6 : vector<1x2x64xf32> to vector<2x64xf32>
    %c0_8 = arith.constant 0 : index
    %c0_9 = arith.constant 0 : index
    %8 = vector.load %arg4[%c0_8, %c0_9] : memref<2x16xf32, #tpu.memory_space<vmem>>, vector<2x16xf32>
    %cst_10 = arith.constant dense<0.000000e+00> : vector<2x64xf32>
    %9 = tpu.matmul %8, %4, %cst_10 {dimension_numbers = #tpu.dot_dimension_numbers<[1], [0], [0], [1], [0, 0, 1, 1], [], []>} : vector<2x16xf32>, vector<16x64xf32>, vector<2x64xf32> -> vector<2x64xf32>
    %10 = arith.addf %7, %9 : vector<2x64xf32>
    %11 = vector.extract_strided_slice %10 {offsets = [0, 0], sizes = [2, 16], strides = [1, 1]} : vector<2x64xf32> to vector<2x16xf32>
    %12 = arith.negf %11 : vector<2x16xf32>
    %13 = math.exp %12 : vector<2x16xf32>
    %cst_11 = arith.constant 1.000000e+00 : f32
    %14 = vector.broadcast %cst_11 : f32 to vector<2x16xf32>
    %15 = arith.addf %14, %13 : vector<2x16xf32>
    %16 = arith.divf %14, %15 : vector<2x16xf32>
    %17 = vector.extract_strided_slice %10 {offsets = [0, 16], sizes = [2, 16], strides = [1, 1]} : vector<2x64xf32> to vector<2x16xf32>
    %18 = arith.negf %17 : vector<2x16xf32>
    %19 = math.exp %18 : vector<2x16xf32>
    %cst_12 = arith.constant 1.000000e+00 : f32
    %20 = vector.broadcast %cst_12 : f32 to vector<2x16xf32>
    %21 = arith.addf %20, %19 : vector<2x16xf32>
    %22 = arith.divf %20, %21 : vector<2x16xf32>
    %23 = vector.extract_strided_slice %10 {offsets = [0, 32], sizes = [2, 16], strides = [1, 1]} : vector<2x64xf32> to vector<2x16xf32>
    %24 = math.tanh %23 : vector<2x16xf32>
    %25 = vector.extract_strided_slice %10 {offsets = [0, 48], sizes = [2, 16], strides = [1, 1]} : vector<2x64xf32> to vector<2x16xf32>
    %26 = arith.negf %25 : vector<2x16xf32>
    %27 = math.exp %26 : vector<2x16xf32>
    %cst_13 = arith.constant 1.000000e+00 : f32
    %28 = vector.broadcast %cst_13 : f32 to vector<2x16xf32>
    %29 = arith.addf %28, %27 : vector<2x16xf32>
    %30 = arith.divf %28, %29 : vector<2x16xf32>
    %c0_14 = arith.constant 0 : index
    %c0_15 = arith.constant 0 : index
    %31 = vector.load %arg5[%c0_14, %c0_15] : memref<2x16xf32, #tpu.memory_space<vmem>>, vector<2x16xf32>
    %32 = arith.mulf %22, %31 : vector<2x16xf32>
    %33 = arith.mulf %16, %24 : vector<2x16xf32>
    %34 = arith.addf %32, %33 : vector<2x16xf32>
    %35 = math.tanh %34 : vector<2x16xf32>
    %36 = arith.mulf %30, %35 : vector<2x16xf32>
    %c0_16 = arith.constant 0 : index
    %c0_17 = arith.constant 0 : index
    %37 = vector.load %arg5[%c0_16, %c0_17] : memref<2x16xf32, #tpu.memory_space<vmem>>, vector<2x16xf32>
    tpu.vector_store %arg5[%c0_16, %c0_17], %34 {strides = array<i32>} : memref<2x16xf32, #tpu.memory_space<vmem>>, vector<2x16xf32>,
    %c0_18 = arith.constant 0 : index
    %c0_19 = arith.constant 0 : index
    %38 = vector.load %arg4[%c0_18, %c0_19] : memref<2x16xf32, #tpu.memory_space<vmem>>, vector<2x16xf32>
    tpu.vector_store %arg4[%c0_18, %c0_19], %36 {strides = array<i32>} : memref<2x16xf32, #tpu.memory_space<vmem>>, vector<2x16xf32>,
    %39 = vector.extract_strided_slice %36 {offsets = [0, 0], sizes = [2, 8], strides = [1, 1]} : vector<2x16xf32> to vector<2x8xf32>
    %40 = vector.shape_cast %39 : vector<2x8xf32> to vector<1x2x8xf32>
    %41 = arith.index_cast %c0_i32 : i32 to index
    %c0_20 = arith.constant 0 : index
    %c0_21 = arith.constant 0 : index
    %42 = vector.load %arg3[%41, %c0_20, %c0_21] : memref<16x2x16xf32, #tpu.memory_space<vmem>>, vector<1x2x8xf32>
    tpu.vector_store %arg3[%41, %c0_20, %c0_21], %40 {strides = array<i32>} : memref<16x2x16xf32, #tpu.memory_space<vmem>>, vector<1x2x8xf32>,
    %43 = vector.extract_strided_slice %36 {offsets = [0, 8], sizes = [2, 8], strides = [1, 1]} : vector<2x16xf32> to vector<2x8xf32>
    %44 = vector.shape_cast %43 : vector<2x8xf32> to vector<1x2x8xf32>
    %c15_i32 = arith.constant 15 : i32
    %45 = arith.subi %c15_i32, %c0_i32 : i32
    %46 = arith.index_cast %45 : i32 to index
    %c0_22 = arith.constant 0 : index
    %c8 = arith.constant 8 : index
    %47 = vector.load %arg3[%46, %c0_22, %c8] : memref<16x2x16xf32, #tpu.memory_space<vmem>>, vector<1x2x8xf32>
    tpu.vector_store %arg3[%46, %c0_22, %c8], %44 {strides = array<i32>} : memref<16x2x16xf32, #tpu.memory_space<vmem>>, vector<1x2x8xf32>,
    %c1_i32 = arith.constant 1 : i32
    %48 = arith.index_cast %c1_i32 : i32 to index
    %c0_23 = arith.constant 0 : index
    %c0_24 = arith.constant 0 : index
    %49 = vector.load %arg1[%48, %c0_23, %c0_24] : memref<16x2x64xf32, #tpu.memory_space<vmem>>, vector<1x2x64xf32>
    %50 = vector.shape_cast %49 : vector<1x2x64xf32> to vector<2x64xf32>
    %c0_25 = arith.constant 0 : index
    %c0_26 = arith.constant 0 : index
    %51 = vector.load %arg4[%c0_25, %c0_26] : memref<2x16xf32, #tpu.memory_space<vmem>>, vector<2x16xf32>
    %cst_27 = arith.constant dense<0.000000e+00> : vector<2x64xf32>
    %52 = tpu.matmul %51, %4, %cst_27 {dimension_numbers = #tpu.dot_dimension_numbers<[1], [0], [0], [1], [0, 0, 1, 1], [], []>} : vector<2x16xf32>, vector<16x64xf32>, vector<2x64xf32> -> vector<2x64xf32>
    %53 = arith.addf %50, %52 : vector<2x64xf32>
    %54 = vector.extract_strided_slice %53 {offsets = [0, 0], sizes = [2, 16], strides = [1, 1]} : vector<2x64xf32> to vector<2x16xf32>
    %55 = arith.negf %54 : vector<2x16xf32>
    %56 = math.exp %55 : vector<2x16xf32>
    %cst_28 = arith.constant 1.000000e+00 : f32
    %57 = vector.broadcast %cst_28 : f32 to vector<2x16xf32>
    %58 = arith.addf %57, %56 : vector<2x16xf32>
    %59 = arith.divf %57, %58 : vector<2x16xf32>
    %60 = vector.extract_strided_slice %53 {offsets = [0, 16], sizes = [2, 16], strides = [1, 1]} : vector<2x64xf32> to vector<2x16xf32>
    %61 = arith.negf %60 : vector<2x16xf32>
    %62 = math.exp %61 : vector<2x16xf32>
    %cst_29 = arith.constant 1.000000e+00 : f32
    %63 = vector.broadcast %cst_29 : f32 to vector<2x16xf32>
    %64 = arith.addf %63, %62 : vector<2x16xf32>
    %65 = arith.divf %63, %64 : vector<2x16xf32>
    %66 = vector.extract_strided_slice %53 {offsets = [0, 32], sizes = [2, 16], strides = [1, 1]} : vector<2x64xf32> to vector<2x16xf32>
    %67 = math.tanh %66 : vector<2x16xf32>
    %68 = vector.extract_strided_slice %53 {offsets = [0, 48], sizes = [2, 16], strides = [1, 1]} : vector<2x64xf32> to vector<2x16xf32>
    %69 = arith.negf %68 : vector<2x16xf32>
    %70 = math.exp %69 : vector<2x16xf32>
    %cst_30 = arith.constant 1.000000e+00 : f32
    %71 = vector.broadcast %cst_30 : f32 to vector<2x16xf32>
    %72 = arith.addf %71, %70 : vector<2x16xf32>
    %73 = arith.divf %71, %72 : vector<2x16xf32>
    %c0_31 = arith.constant 0 : index
    %c0_32 = arith.constant 0 : index
    %74 = vector.load %arg5[%c0_31, %c0_32] : memref<2x16xf32, #tpu.memory_space<vmem>>, vector<2x16xf32>
    %75 = arith.mulf %65, %74 : vector<2x16xf32>
    %76 = arith.mulf %59, %67 : vector<2x16xf32>
    %77 = arith.addf %75, %76 : vector<2x16xf32>
    %78 = math.tanh %77 : vector<2x16xf32>
    %79 = arith.mulf %73, %78 : vector<2x16xf32>
    %c0_33 = arith.constant 0 : index
    %c0_34 = arith.constant 0 : index
    %80 = vector.load %arg5[%c0_33, %c0_34] : memref<2x16xf32, #tpu.memory_space<vmem>>, vector<2x16xf32>
    tpu.vector_store %arg5[%c0_33, %c0_34], %77 {strides = array<i32>} : memref<2x16xf32, #tpu.memory_space<vmem>>, vector<2x16xf32>,
    %c0_35 = arith.constant 0 : index
    %c0_36 = arith.constant 0 : index
    %81 = vector.load %arg4[%c0_35, %c0_36] : memref<2x16xf32, #tpu.memory_space<vmem>>, vector<2x16xf32>
    tpu.vector_store %arg4[%c0_35, %c0_36], %79 {strides = array<i32>} : memref<2x16xf32, #tpu.memory_space<vmem>>, vector<2x16xf32>,
    %82 = vector.extract_strided_slice %79 {offsets = [0, 0], sizes = [2, 8], strides = [1, 1]} : vector<2x16xf32> to vector<2x8xf32>
    %83 = vector.shape_cast %82 : vector<2x8xf32> to vector<1x2x8xf32>
    %84 = arith.index_cast %c1_i32 : i32 to index
    %c0_37 = arith.constant 0 : index
    %c0_38 = arith.constant 0 : index
    %85 = vector.load %arg3[%84, %c0_37, %c0_38] : memref<16x2x16xf32, #tpu.memory_space<vmem>>, vector<1x2x8xf32>
    tpu.vector_store %arg3[%84, %c0_37, %c0_38], %83 {strides = array<i32>} : memref<16x2x16xf32, #tpu.memory_space<vmem>>, vector<1x2x8xf32>,
    %86 = vector.extract_strided_slice %79 {offsets = [0, 8], sizes = [2, 8], strides = [1, 1]} : vector<2x16xf32> to vector<2x8xf32>
    %87 = vector.shape_cast %86 : vector<2x8xf32> to vector<1x2x8xf32>
    %c15_i32_39 = arith.constant 15 : i32
    %88 = arith.subi %c15_i32_39, %c1_i32 : i32
    %89 = arith.index_cast %88 : i32 to index
    %c0_40 = arith.constant 0 : index
    %c8_41 = arith.constant 8 : index
    %90 = vector.load %arg3[%89, %c0_40, %c8_41] : memref<16x2x16xf32, #tpu.memory_space<vmem>>, vector<1x2x8xf32>
    tpu.vector_store %arg3[%89, %c0_40, %c8_41], %87 {strides = array<i32>} : memref<16x2x16xf32, #tpu.memory_space<vmem>>, vector<1x2x8xf32>,
    %c2_i32 = arith.constant 2 : i32
    %91 = arith.index_cast %c2_i32 : i32 to index
    %c0_42 = arith.constant 0 : index
    %c0_43 = arith.constant 0 : index
    %92 = vector.load %arg1[%91, %c0_42, %c0_43] : memref<16x2x64xf32, #tpu.memory_space<vmem>>, vector<1x2x64xf32>
    %93 = vector.shape_cast %92 : vector<1x2x64xf32> to vector<2x64xf32>
    %c0_44 = arith.constant 0 : index
    %c0_45 = arith.constant 0 : index
    %94 = vector.load %arg4[%c0_44, %c0_45] : memref<2x16xf32, #tpu.memory_space<vmem>>, vector<2x16xf32>
    %cst_46 = arith.constant dense<0.000000e+00> : vector<2x64xf32>
    %95 = tpu.matmul %94, %4, %cst_46 {dimension_numbers = #tpu.dot_dimension_numbers<[1], [0], [0], [1], [0, 0, 1, 1], [], []>} : vector<2x16xf32>, vector<16x64xf32>, vector<2x64xf32> -> vector<2x64xf32>
    %96 = arith.addf %93, %95 : vector<2x64xf32>
    %97 = vector.extract_strided_slice %96 {offsets = [0, 0], sizes = [2, 16], strides = [1, 1]} : vector<2x64xf32> to vector<2x16xf32>
    %98 = arith.negf %97 : vector<2x16xf32>
    %99 = math.exp %98 : vector<2x16xf32>
    %cst_47 = arith.constant 1.000000e+00 : f32
    %100 = vector.broadcast %cst_47 : f32 to vector<2x16xf32>
    %101 = arith.addf %100, %99 : vector<2x16xf32>
    %102 = arith.divf %100, %101 : vector<2x16xf32>
    %103 = vector.extract_strided_slice %96 {offsets = [0, 16], sizes = [2, 16], strides = [1, 1]} : vector<2x64xf32> to vector<2x16xf32>
    %104 = arith.negf %103 : vector<2x16xf32>
    %105 = math.exp %104 : vector<2x16xf32>
    %cst_48 = arith.constant 1.000000e+00 : f32
    %106 = vector.broadcast %cst_48 : f32 to vector<2x16xf32>
    %107 = arith.addf %106, %105 : vector<2x16xf32>
    %108 = arith.divf %106, %107 : vector<2x16xf32>
    %109 = vector.extract_strided_slice %96 {offsets = [0, 32], sizes = [2, 16], strides = [1, 1]} : vector<2x64xf32> to vector<2x16xf32>
    %110 = math.tanh %109 : vector<2x16xf32>
    %111 = vector.extract_strided_slice %96 {offsets = [0, 48], sizes = [2, 16], strides = [1, 1]} : vector<2x64xf32> to vector<2x16xf32>
    %112 = arith.negf %111 : vector<2x16xf32>
    %113 = math.exp %112 : vector<2x16xf32>
    %cst_49 = arith.constant 1.000000e+00 : f32
    %114 = vector.broadcast %cst_49 : f32 to vector<2x16xf32>
    %115 = arith.addf %114, %113 : vector<2x16xf32>
    %116 = arith.divf %114, %115 : vector<2x16xf32>
    %c0_50 = arith.constant 0 : index
    %c0_51 = arith.constant 0 : index
    %117 = vector.load %arg5[%c0_50, %c0_51] : memref<2x16xf32, #tpu.memory_space<vmem>>, vector<2x16xf32>
    %118 = arith.mulf %108, %117 : vector<2x16xf32>
    %119 = arith.mulf %102, %110 : vector<2x16xf32>
    %120 = arith.addf %118, %119 : vector<2x16xf32>
    %121 = math.tanh %120 : vector<2x16xf32>
    %122 = arith.mulf %116, %121 : vector<2x16xf32>
    %c0_52 = arith.constant 0 : index
    %c0_53 = arith.constant 0 : index
    %123 = vector.load %arg5[%c0_52, %c0_53] : memref<2x16xf32, #tpu.memory_space<vmem>>, vector<2x16xf32>
    tpu.vector_store %arg5[%c0_52, %c0_53], %120 {strides = array<i32>} : memref<2x16xf32, #tpu.memory_space<vmem>>, vector<2x16xf32>,
    %c0_54 = arith.constant 0 : index
    %c0_55 = arith.constant 0 : index
    %124 = vector.load %arg4[%c0_54, %c0_55] : memref<2x16xf32, #tpu.memory_space<vmem>>, vector<2x16xf32>
    tpu.vector_store %arg4[%c0_54, %c0_55], %122 {strides = array<i32>} : memref<2x16xf32, #tpu.memory_space<vmem>>, vector<2x16xf32>,
    %125 = vector.extract_strided_slice %122 {offsets = [0, 0], sizes = [2, 8], strides = [1, 1]} : vector<2x16xf32> to vector<2x8xf32>
    %126 = vector.shape_cast %125 : vector<2x8xf32> to vector<1x2x8xf32>
    %127 = arith.index_cast %c2_i32 : i32 to index
    %c0_56 = arith.constant 0 : index
    %c0_57 = arith.constant 0 : index
    %128 = vector.load %arg3[%127, %c0_56, %c0_57] : memref<16x2x16xf32, #tpu.memory_space<vmem>>, vector<1x2x8xf32>
    tpu.vector_store %arg3[%127, %c0_56, %c0_57], %126 {strides = array<i32>} : memref<16x2x16xf32, #tpu.memory_space<vmem>>, vector<1x2x8xf32>,
    %129 = vector.extract_strided_slice %122 {offsets = [0, 8], sizes = [2, 8], strides = [1, 1]} : vector<2x16xf32> to vector<2x8xf32>
    %130 = vector.shape_cast %129 : vector<2x8xf32> to vector<1x2x8xf32>
    %c15_i32_58 = arith.constant 15 : i32
    %131 = arith.subi %c15_i32_58, %c2_i32 : i32
    %132 = arith.index_cast %131 : i32 to index
    %c0_59 = arith.constant 0 : index
    %c8_60 = arith.constant 8 : index
    %133 = vector.load %arg3[%132, %c0_59, %c8_60] : memref<16x2x16xf32, #tpu.memory_space<vmem>>, vector<1x2x8xf32>
    tpu.vector_store %arg3[%132, %c0_59, %c8_60], %130 {strides = array<i32>} : memref<16x2x16xf32, #tpu.memory_space<vmem>>, vector<1x2x8xf32>,
    %c3_i32 = arith.constant 3 : i32
    %134 = arith.index_cast %c3_i32 : i32 to index
    %c0_61 = arith.constant 0 : index
    %c0_62 = arith.constant 0 : index
    %135 = vector.load %arg1[%134, %c0_61, %c0_62] : memref<16x2x64xf32, #tpu.memory_space<vmem>>, vector<1x2x64xf32>
    %136 = vector.shape_cast %135 : vector<1x2x64xf32> to vector<2x64xf32>
    %c0_63 = arith.constant 0 : index
    %c0_64 = arith.constant 0 : index
    %137 = vector.load %arg4[%c0_63, %c0_64] : memref<2x16xf32, #tpu.memory_space<vmem>>, vector<2x16xf32>
    %cst_65 = arith.constant dense<0.000000e+00> : vector<2x64xf32>
    %138 = tpu.matmul %137, %4, %cst_65 {dimension_numbers = #tpu.dot_dimension_numbers<[1], [0], [0], [1], [0, 0, 1, 1], [], []>} : vector<2x16xf32>, vector<16x64xf32>, vector<2x64xf32> -> vector<2x64xf32>
    %139 = arith.addf %136, %138 : vector<2x64xf32>
    %140 = vector.extract_strided_slice %139 {offsets = [0, 0], sizes = [2, 16], strides = [1, 1]} : vector<2x64xf32> to vector<2x16xf32>
    %141 = arith.negf %140 : vector<2x16xf32>
    %142 = math.exp %141 : vector<2x16xf32>
    %cst_66 = arith.constant 1.000000e+00 : f32
    %143 = vector.broadcast %cst_66 : f32 to vector<2x16xf32>
    %144 = arith.addf %143, %142 : vector<2x16xf32>
    %145 = arith.divf %143, %144 : vector<2x16xf32>
    %146 = vector.extract_strided_slice %139 {offsets = [0, 16], sizes = [2, 16], strides = [1, 1]} : vector<2x64xf32> to vector<2x16xf32>
    %147 = arith.negf %146 : vector<2x16xf32>
    %148 = math.exp %147 : vector<2x16xf32>
    %cst_67 = arith.constant 1.000000e+00 : f32
    %149 = vector.broadcast %cst_67 : f32 to vector<2x16xf32>
    %150 = arith.addf %149, %148 : vector<2x16xf32>
    %151 = arith.divf %149, %150 : vector<2x16xf32>
    %152 = vector.extract_strided_slice %139 {offsets = [0, 32], sizes = [2, 16], strides = [1, 1]} : vector<2x64xf32> to vector<2x16xf32>
    %153 = math.tanh %152 : vector<2x16xf32>
    %154 = vector.extract_strided_slice %139 {offsets = [0, 48], sizes = [2, 16], strides = [1, 1]} : vector<2x64xf32> to vector<2x16xf32>
    %155 = arith.negf %154 : vector<2x16xf32>
    %156 = math.exp %155 : vector<2x16xf32>
    %cst_68 = arith.constant 1.000000e+00 : f32
    %157 = vector.broadcast %cst_68 : f32 to vector<2x16xf32>
    %158 = arith.addf %157, %156 : vector<2x16xf32>
    %159 = arith.divf %157, %158 : vector<2x16xf32>
    %c0_69 = arith.constant 0 : index
    %c0_70 = arith.constant 0 : index
    %160 = vector.load %arg5[%c0_69, %c0_70] : memref<2x16xf32, #tpu.memory_space<vmem>>, vector<2x16xf32>
    %161 = arith.mulf %151, %160 : vector<2x16xf32>
    %162 = arith.mulf %145, %153 : vector<2x16xf32>
    %163 = arith.addf %161, %162 : vector<2x16xf32>
    %164 = math.tanh %163 : vector<2x16xf32>
    %165 = arith.mulf %159, %164 : vector<2x16xf32>
    %c0_71 = arith.constant 0 : index
    %c0_72 = arith.constant 0 : index
    %166 = vector.load %arg5[%c0_71, %c0_72] : memref<2x16xf32, #tpu.memory_space<vmem>>, vector<2x16xf32>
    tpu.vector_store %arg5[%c0_71, %c0_72], %163 {strides = array<i32>} : memref<2x16xf32, #tpu.memory_space<vmem>>, vector<2x16xf32>,
    %c0_73 = arith.constant 0 : index
    %c0_74 = arith.constant 0 : index
    %167 = vector.load %arg4[%c0_73, %c0_74] : memref<2x16xf32, #tpu.memory_space<vmem>>, vector<2x16xf32>
    tpu.vector_store %arg4[%c0_73, %c0_74], %165 {strides = array<i32>} : memref<2x16xf32, #tpu.memory_space<vmem>>, vector<2x16xf32>,
    %168 = vector.extract_strided_slice %165 {offsets = [0, 0], sizes = [2, 8], strides = [1, 1]} : vector<2x16xf32> to vector<2x8xf32>
    %169 = vector.shape_cast %168 : vector<2x8xf32> to vector<1x2x8xf32>
    %170 = arith.index_cast %c3_i32 : i32 to index
    %c0_75 = arith.constant 0 : index
    %c0_76 = arith.constant 0 : index
    %171 = vector.load %arg3[%170, %c0_75, %c0_76] : memref<16x2x16xf32, #tpu.memory_space<vmem>>, vector<1x2x8xf32>
    tpu.vector_store %arg3[%170, %c0_75, %c0_76], %169 {strides = array<i32>} : memref<16x2x16xf32, #tpu.memory_space<vmem>>, vector<1x2x8xf32>,
    %172 = vector.extract_strided_slice %165 {offsets = [0, 8], sizes = [2, 8], strides = [1, 1]} : vector<2x16xf32> to vector<2x8xf32>
    %173 = vector.shape_cast %172 : vector<2x8xf32> to vector<1x2x8xf32>
    %c15_i32_77 = arith.constant 15 : i32
    %174 = arith.subi %c15_i32_77, %c3_i32 : i32
    %175 = arith.index_cast %174 : i32 to index
    %c0_78 = arith.constant 0 : index
    %c8_79 = arith.constant 8 : index
    %176 = vector.load %arg3[%175, %c0_78, %c8_79] : memref<16x2x16xf32, #tpu.memory_space<vmem>>, vector<1x2x8xf32>
    tpu.vector_store %arg3[%175, %c0_78, %c8_79], %173 {strides = array<i32>} : memref<16x2x16xf32, #tpu.memory_space<vmem>>, vector<1x2x8xf32>,
    %c4_i32 = arith.constant 4 : i32
    %177 = arith.index_cast %c4_i32 : i32 to index
    %c0_80 = arith.constant 0 : index
    %c0_81 = arith.constant 0 : index
    %178 = vector.load %arg1[%177, %c0_80, %c0_81] : memref<16x2x64xf32, #tpu.memory_space<vmem>>, vector<1x2x64xf32>
    %179 = vector.shape_cast %178 : vector<1x2x64xf32> to vector<2x64xf32>
    %c0_82 = arith.constant 0 : index
    %c0_83 = arith.constant 0 : index
    %180 = vector.load %arg4[%c0_82, %c0_83] : memref<2x16xf32, #tpu.memory_space<vmem>>, vector<2x16xf32>
    %cst_84 = arith.constant dense<0.000000e+00> : vector<2x64xf32>
    %181 = tpu.matmul %180, %4, %cst_84 {dimension_numbers = #tpu.dot_dimension_numbers<[1], [0], [0], [1], [0, 0, 1, 1], [], []>} : vector<2x16xf32>, vector<16x64xf32>, vector<2x64xf32> -> vector<2x64xf32>
    %182 = arith.addf %179, %181 : vector<2x64xf32>
    %183 = vector.extract_strided_slice %182 {offsets = [0, 0], sizes = [2, 16], strides = [1, 1]} : vector<2x64xf32> to vector<2x16xf32>
    %184 = arith.negf %183 : vector<2x16xf32>
    %185 = math.exp %184 : vector<2x16xf32>
    %cst_85 = arith.constant 1.000000e+00 : f32
    %186 = vector.broadcast %cst_85 : f32 to vector<2x16xf32>
    %187 = arith.addf %186, %185 : vector<2x16xf32>
    %188 = arith.divf %186, %187 : vector<2x16xf32>
    %189 = vector.extract_strided_slice %182 {offsets = [0, 16], sizes = [2, 16], strides = [1, 1]} : vector<2x64xf32> to vector<2x16xf32>
    %190 = arith.negf %189 : vector<2x16xf32>
    %191 = math.exp %190 : vector<2x16xf32>
    %cst_86 = arith.constant 1.000000e+00 : f32
    %192 = vector.broadcast %cst_86 : f32 to vector<2x16xf32>
    %193 = arith.addf %192, %191 : vector<2x16xf32>
    %194 = arith.divf %192, %193 : vector<2x16xf32>
    %195 = vector.extract_strided_slice %182 {offsets = [0, 32], sizes = [2, 16], strides = [1, 1]} : vector<2x64xf32> to vector<2x16xf32>
    %196 = math.tanh %195 : vector<2x16xf32>
    %197 = vector.extract_strided_slice %182 {offsets = [0, 48], sizes = [2, 16], strides = [1, 1]} : vector<2x64xf32> to vector<2x16xf32>
    %198 = arith.negf %197 : vector<2x16xf32>
    %199 = math.exp %198 : vector<2x16xf32>
    %cst_87 = arith.constant 1.000000e+00 : f32
    %200 = vector.broadcast %cst_87 : f32 to vector<2x16xf32>
    %201 = arith.addf %200, %199 : vector<2x16xf32>
    %202 = arith.divf %200, %201 : vector<2x16xf32>
    %c0_88 = arith.constant 0 : index
    %c0_89 = arith.constant 0 : index
    %203 = vector.load %arg5[%c0_88, %c0_89] : memref<2x16xf32, #tpu.memory_space<vmem>>, vector<2x16xf32>
    %204 = arith.mulf %194, %203 : vector<2x16xf32>
    %205 = arith.mulf %188, %196 : vector<2x16xf32>
    %206 = arith.addf %204, %205 : vector<2x16xf32>
    %207 = math.tanh %206 : vector<2x16xf32>
    %208 = arith.mulf %202, %207 : vector<2x16xf32>
    %c0_90 = arith.constant 0 : index
    %c0_91 = arith.constant 0 : index
    %209 = vector.load %arg5[%c0_90, %c0_91] : memref<2x16xf32, #tpu.memory_space<vmem>>, vector<2x16xf32>
    tpu.vector_store %arg5[%c0_90, %c0_91], %206 {strides = array<i32>} : memref<2x16xf32, #tpu.memory_space<vmem>>, vector<2x16xf32>,
    %c0_92 = arith.constant 0 : index
    %c0_93 = arith.constant 0 : index
    %210 = vector.load %arg4[%c0_92, %c0_93] : memref<2x16xf32, #tpu.memory_space<vmem>>, vector<2x16xf32>
    tpu.vector_store %arg4[%c0_92, %c0_93], %208 {strides = array<i32>} : memref<2x16xf32, #tpu.memory_space<vmem>>, vector<2x16xf32>,
    %211 = vector.extract_strided_slice %208 {offsets = [0, 0], sizes = [2, 8], strides = [1, 1]} : vector<2x16xf32> to vector<2x8xf32>
    %212 = vector.shape_cast %211 : vector<2x8xf32> to vector<1x2x8xf32>
    %213 = arith.index_cast %c4_i32 : i32 to index
    %c0_94 = arith.constant 0 : index
    %c0_95 = arith.constant 0 : index
    %214 = vector.load %arg3[%213, %c0_94, %c0_95] : memref<16x2x16xf32, #tpu.memory_space<vmem>>, vector<1x2x8xf32>
    tpu.vector_store %arg3[%213, %c0_94, %c0_95], %212 {strides = array<i32>} : memref<16x2x16xf32, #tpu.memory_space<vmem>>, vector<1x2x8xf32>,
    %215 = vector.extract_strided_slice %208 {offsets = [0, 8], sizes = [2, 8], strides = [1, 1]} : vector<2x16xf32> to vector<2x8xf32>
    %216 = vector.shape_cast %215 : vector<2x8xf32> to vector<1x2x8xf32>
    %c15_i32_96 = arith.constant 15 : i32
    %217 = arith.subi %c15_i32_96, %c4_i32 : i32
    %218 = arith.index_cast %217 : i32 to index
    %c0_97 = arith.constant 0 : index
    %c8_98 = arith.constant 8 : index
    %219 = vector.load %arg3[%218, %c0_97, %c8_98] : memref<16x2x16xf32, #tpu.memory_space<vmem>>, vector<1x2x8xf32>
    tpu.vector_store %arg3[%218, %c0_97, %c8_98], %216 {strides = array<i32>} : memref<16x2x16xf32, #tpu.memory_space<vmem>>, vector<1x2x8xf32>,
    %c5_i32 = arith.constant 5 : i32
    %220 = arith.index_cast %c5_i32 : i32 to index
    %c0_99 = arith.constant 0 : index
    %c0_100 = arith.constant 0 : index
    %221 = vector.load %arg1[%220, %c0_99, %c0_100] : memref<16x2x64xf32, #tpu.memory_space<vmem>>, vector<1x2x64xf32>
    %222 = vector.shape_cast %221 : vector<1x2x64xf32> to vector<2x64xf32>
    %c0_101 = arith.constant 0 : index
    %c0_102 = arith.constant 0 : index
    %223 = vector.load %arg4[%c0_101, %c0_102] : memref<2x16xf32, #tpu.memory_space<vmem>>, vector<2x16xf32>
    %cst_103 = arith.constant dense<0.000000e+00> : vector<2x64xf32>
    %224 = tpu.matmul %223, %4, %cst_103 {dimension_numbers = #tpu.dot_dimension_numbers<[1], [0], [0], [1], [0, 0, 1, 1], [], []>} : vector<2x16xf32>, vector<16x64xf32>, vector<2x64xf32> -> vector<2x64xf32>
    %225 = arith.addf %222, %224 : vector<2x64xf32>
    %226 = vector.extract_strided_slice %225 {offsets = [0, 0], sizes = [2, 16], strides = [1, 1]} : vector<2x64xf32> to vector<2x16xf32>
    %227 = arith.negf %226 : vector<2x16xf32>
    %228 = math.exp %227 : vector<2x16xf32>
    %cst_104 = arith.constant 1.000000e+00 : f32
    %229 = vector.broadcast %cst_104 : f32 to vector<2x16xf32>
    %230 = arith.addf %229, %228 : vector<2x16xf32>
    %231 = arith.divf %229, %230 : vector<2x16xf32>
    %232 = vector.extract_strided_slice %225 {offsets = [0, 16], sizes = [2, 16], strides = [1, 1]} : vector<2x64xf32> to vector<2x16xf32>
    %233 = arith.negf %232 : vector<2x16xf32>
    %234 = math.exp %233 : vector<2x16xf32>
    %cst_105 = arith.constant 1.000000e+00 : f32
    %235 = vector.broadcast %cst_105 : f32 to vector<2x16xf32>
    %236 = arith.addf %235, %234 : vector<2x16xf32>
    %237 = arith.divf %235, %236 : vector<2x16xf32>
    %238 = vector.extract_strided_slice %225 {offsets = [0, 32], sizes = [2, 16], strides = [1, 1]} : vector<2x64xf32> to vector<2x16xf32>
    %239 = math.tanh %238 : vector<2x16xf32>
    %240 = vector.extract_strided_slice %225 {offsets = [0, 48], sizes = [2, 16], strides = [1, 1]} : vector<2x64xf32> to vector<2x16xf32>
    %241 = arith.negf %240 : vector<2x16xf32>
    %242 = math.exp %241 : vector<2x16xf32>
    %cst_106 = arith.constant 1.000000e+00 : f32
    %243 = vector.broadcast %cst_106 : f32 to vector<2x16xf32>
    %244 = arith.addf %243, %242 : vector<2x16xf32>
    %245 = arith.divf %243, %244 : vector<2x16xf32>
    %c0_107 = arith.constant 0 : index
    %c0_108 = arith.constant 0 : index
    %246 = vector.load %arg5[%c0_107, %c0_108] : memref<2x16xf32, #tpu.memory_space<vmem>>, vector<2x16xf32>
    %247 = arith.mulf %237, %246 : vector<2x16xf32>
    %248 = arith.mulf %231, %239 : vector<2x16xf32>
    %249 = arith.addf %247, %248 : vector<2x16xf32>
    %250 = math.tanh %249 : vector<2x16xf32>
    %251 = arith.mulf %245, %250 : vector<2x16xf32>
    %c0_109 = arith.constant 0 : index
    %c0_110 = arith.constant 0 : index
    %252 = vector.load %arg5[%c0_109, %c0_110] : memref<2x16xf32, #tpu.memory_space<vmem>>, vector<2x16xf32>
    tpu.vector_store %arg5[%c0_109, %c0_110], %249 {strides = array<i32>} : memref<2x16xf32, #tpu.memory_space<vmem>>, vector<2x16xf32>,
    %c0_111 = arith.constant 0 : index
    %c0_112 = arith.constant 0 : index
    %253 = vector.load %arg4[%c0_111, %c0_112] : memref<2x16xf32, #tpu.memory_space<vmem>>, vector<2x16xf32>
    tpu.vector_store %arg4[%c0_111, %c0_112], %251 {strides = array<i32>} : memref<2x16xf32, #tpu.memory_space<vmem>>, vector<2x16xf32>,
    %254 = vector.extract_strided_slice %251 {offsets = [0, 0], sizes = [2, 8], strides = [1, 1]} : vector<2x16xf32> to vector<2x8xf32>
    %255 = vector.shape_cast %254 : vector<2x8xf32> to vector<1x2x8xf32>
    %256 = arith.index_cast %c5_i32 : i32 to index
    %c0_113 = arith.constant 0 : index
    %c0_114 = arith.constant 0 : index
    %257 = vector.load %arg3[%256, %c0_113, %c0_114] : memref<16x2x16xf32, #tpu.memory_space<vmem>>, vector<1x2x8xf32>
    tpu.vector_store %arg3[%256, %c0_113, %c0_114], %255 {strides = array<i32>} : memref<16x2x16xf32, #tpu.memory_space<vmem>>, vector<1x2x8xf32>,
    %258 = vector.extract_strided_slice %251 {offsets = [0, 8], sizes = [2, 8], strides = [1, 1]} : vector<2x16xf32> to vector<2x8xf32>
    %259 = vector.shape_cast %258 : vector<2x8xf32> to vector<1x2x8xf32>
    %c15_i32_115 = arith.constant 15 : i32
    %260 = arith.subi %c15_i32_115, %c5_i32 : i32
    %261 = arith.index_cast %260 : i32 to index
    %c0_116 = arith.constant 0 : index
    %c8_117 = arith.constant 8 : index
    %262 = vector.load %arg3[%261, %c0_116, %c8_117] : memref<16x2x16xf32, #tpu.memory_space<vmem>>, vector<1x2x8xf32>
    tpu.vector_store %arg3[%261, %c0_116, %c8_117], %259 {strides = array<i32>} : memref<16x2x16xf32, #tpu.memory_space<vmem>>, vector<1x2x8xf32>,
    %c6_i32 = arith.constant 6 : i32
    %263 = arith.index_cast %c6_i32 : i32 to index
    %c0_118 = arith.constant 0 : index
    %c0_119 = arith.constant 0 : index
    %264 = vector.load %arg1[%263, %c0_118, %c0_119] : memref<16x2x64xf32, #tpu.memory_space<vmem>>, vector<1x2x64xf32>
    %265 = vector.shape_cast %264 : vector<1x2x64xf32> to vector<2x64xf32>
    %c0_120 = arith.constant 0 : index
    %c0_121 = arith.constant 0 : index
    %266 = vector.load %arg4[%c0_120, %c0_121] : memref<2x16xf32, #tpu.memory_space<vmem>>, vector<2x16xf32>
    %cst_122 = arith.constant dense<0.000000e+00> : vector<2x64xf32>
    %267 = tpu.matmul %266, %4, %cst_122 {dimension_numbers = #tpu.dot_dimension_numbers<[1], [0], [0], [1], [0, 0, 1, 1], [], []>} : vector<2x16xf32>, vector<16x64xf32>, vector<2x64xf32> -> vector<2x64xf32>
    %268 = arith.addf %265, %267 : vector<2x64xf32>
    %269 = vector.extract_strided_slice %268 {offsets = [0, 0], sizes = [2, 16], strides = [1, 1]} : vector<2x64xf32> to vector<2x16xf32>
    %270 = arith.negf %269 : vector<2x16xf32>
    %271 = math.exp %270 : vector<2x16xf32>
    %cst_123 = arith.constant 1.000000e+00 : f32
    %272 = vector.broadcast %cst_123 : f32 to vector<2x16xf32>
    %273 = arith.addf %272, %271 : vector<2x16xf32>
    %274 = arith.divf %272, %273 : vector<2x16xf32>
    %275 = vector.extract_strided_slice %268 {offsets = [0, 16], sizes = [2, 16], strides = [1, 1]} : vector<2x64xf32> to vector<2x16xf32>
    %276 = arith.negf %275 : vector<2x16xf32>
    %277 = math.exp %276 : vector<2x16xf32>
    %cst_124 = arith.constant 1.000000e+00 : f32
    %278 = vector.broadcast %cst_124 : f32 to vector<2x16xf32>
    %279 = arith.addf %278, %277 : vector<2x16xf32>
    %280 = arith.divf %278, %279 : vector<2x16xf32>
    %281 = vector.extract_strided_slice %268 {offsets = [0, 32], sizes = [2, 16], strides = [1, 1]} : vector<2x64xf32> to vector<2x16xf32>
    %282 = math.tanh %281 : vector<2x16xf32>
    %283 = vector.extract_strided_slice %268 {offsets = [0, 48], sizes = [2, 16], strides = [1, 1]} : vector<2x64xf32> to vector<2x16xf32>
    %284 = arith.negf %283 : vector<2x16xf32>
    %285 = math.exp %284 : vector<2x16xf32>
    %cst_125 = arith.constant 1.000000e+00 : f32
    %286 = vector.broadcast %cst_125 : f32 to vector<2x16xf32>
    %287 = arith.addf %286, %285 : vector<2x16xf32>
    %288 = arith.divf %286, %287 : vector<2x16xf32>
    %c0_126 = arith.constant 0 : index
    %c0_127 = arith.constant 0 : index
    %289 = vector.load %arg5[%c0_126, %c0_127] : memref<2x16xf32, #tpu.memory_space<vmem>>, vector<2x16xf32>
    %290 = arith.mulf %280, %289 : vector<2x16xf32>
    %291 = arith.mulf %274, %282 : vector<2x16xf32>
    %292 = arith.addf %290, %291 : vector<2x16xf32>
    %293 = math.tanh %292 : vector<2x16xf32>
    %294 = arith.mulf %288, %293 : vector<2x16xf32>
    %c0_128 = arith.constant 0 : index
    %c0_129 = arith.constant 0 : index
    %295 = vector.load %arg5[%c0_128, %c0_129] : memref<2x16xf32, #tpu.memory_space<vmem>>, vector<2x16xf32>
    tpu.vector_store %arg5[%c0_128, %c0_129], %292 {strides = array<i32>} : memref<2x16xf32, #tpu.memory_space<vmem>>, vector<2x16xf32>,
    %c0_130 = arith.constant 0 : index
    %c0_131 = arith.constant 0 : index
    %296 = vector.load %arg4[%c0_130, %c0_131] : memref<2x16xf32, #tpu.memory_space<vmem>>, vector<2x16xf32>
    tpu.vector_store %arg4[%c0_130, %c0_131], %294 {strides = array<i32>} : memref<2x16xf32, #tpu.memory_space<vmem>>, vector<2x16xf32>,
    %297 = vector.extract_strided_slice %294 {offsets = [0, 0], sizes = [2, 8], strides = [1, 1]} : vector<2x16xf32> to vector<2x8xf32>
    %298 = vector.shape_cast %297 : vector<2x8xf32> to vector<1x2x8xf32>
    %299 = arith.index_cast %c6_i32 : i32 to index
    %c0_132 = arith.constant 0 : index
    %c0_133 = arith.constant 0 : index
    %300 = vector.load %arg3[%299, %c0_132, %c0_133] : memref<16x2x16xf32, #tpu.memory_space<vmem>>, vector<1x2x8xf32>
    tpu.vector_store %arg3[%299, %c0_132, %c0_133], %298 {strides = array<i32>} : memref<16x2x16xf32, #tpu.memory_space<vmem>>, vector<1x2x8xf32>,
    %301 = vector.extract_strided_slice %294 {offsets = [0, 8], sizes = [2, 8], strides = [1, 1]} : vector<2x16xf32> to vector<2x8xf32>
    %302 = vector.shape_cast %301 : vector<2x8xf32> to vector<1x2x8xf32>
    %c15_i32_134 = arith.constant 15 : i32
    %303 = arith.subi %c15_i32_134, %c6_i32 : i32
    %304 = arith.index_cast %303 : i32 to index
    %c0_135 = arith.constant 0 : index
    %c8_136 = arith.constant 8 : index
    %305 = vector.load %arg3[%304, %c0_135, %c8_136] : memref<16x2x16xf32, #tpu.memory_space<vmem>>, vector<1x2x8xf32>
    tpu.vector_store %arg3[%304, %c0_135, %c8_136], %302 {strides = array<i32>} : memref<16x2x16xf32, #tpu.memory_space<vmem>>, vector<1x2x8xf32>,
    %c7_i32 = arith.constant 7 : i32
    %306 = arith.index_cast %c7_i32 : i32 to index
    %c0_137 = arith.constant 0 : index
    %c0_138 = arith.constant 0 : index
    %307 = vector.load %arg1[%306, %c0_137, %c0_138] : memref<16x2x64xf32, #tpu.memory_space<vmem>>, vector<1x2x64xf32>
    %308 = vector.shape_cast %307 : vector<1x2x64xf32> to vector<2x64xf32>
    %c0_139 = arith.constant 0 : index
    %c0_140 = arith.constant 0 : index
    %309 = vector.load %arg4[%c0_139, %c0_140] : memref<2x16xf32, #tpu.memory_space<vmem>>, vector<2x16xf32>
    %cst_141 = arith.constant dense<0.000000e+00> : vector<2x64xf32>
    %310 = tpu.matmul %309, %4, %cst_141 {dimension_numbers = #tpu.dot_dimension_numbers<[1], [0], [0], [1], [0, 0, 1, 1], [], []>} : vector<2x16xf32>, vector<16x64xf32>, vector<2x64xf32> -> vector<2x64xf32>
    %311 = arith.addf %308, %310 : vector<2x64xf32>
    %312 = vector.extract_strided_slice %311 {offsets = [0, 0], sizes = [2, 16], strides = [1, 1]} : vector<2x64xf32> to vector<2x16xf32>
    %313 = arith.negf %312 : vector<2x16xf32>
    %314 = math.exp %313 : vector<2x16xf32>
    %cst_142 = arith.constant 1.000000e+00 : f32
    %315 = vector.broadcast %cst_142 : f32 to vector<2x16xf32>
    %316 = arith.addf %315, %314 : vector<2x16xf32>
    %317 = arith.divf %315, %316 : vector<2x16xf32>
    %318 = vector.extract_strided_slice %311 {offsets = [0, 16], sizes = [2, 16], strides = [1, 1]} : vector<2x64xf32> to vector<2x16xf32>
    %319 = arith.negf %318 : vector<2x16xf32>
    %320 = math.exp %319 : vector<2x16xf32>
    %cst_143 = arith.constant 1.000000e+00 : f32
    %321 = vector.broadcast %cst_143 : f32 to vector<2x16xf32>
    %322 = arith.addf %321, %320 : vector<2x16xf32>
    %323 = arith.divf %321, %322 : vector<2x16xf32>
    %324 = vector.extract_strided_slice %311 {offsets = [0, 32], sizes = [2, 16], strides = [1, 1]} : vector<2x64xf32> to vector<2x16xf32>
    %325 = math.tanh %324 : vector<2x16xf32>
    %326 = vector.extract_strided_slice %311 {offsets = [0, 48], sizes = [2, 16], strides = [1, 1]} : vector<2x64xf32> to vector<2x16xf32>
    %327 = arith.negf %326 : vector<2x16xf32>
    %328 = math.exp %327 : vector<2x16xf32>
    %cst_144 = arith.constant 1.000000e+00 : f32
    %329 = vector.broadcast %cst_144 : f32 to vector<2x16xf32>
    %330 = arith.addf %329, %328 : vector<2x16xf32>
    %331 = arith.divf %329, %330 : vector<2x16xf32>
    %c0_145 = arith.constant 0 : index
    %c0_146 = arith.constant 0 : index
    %332 = vector.load %arg5[%c0_145, %c0_146] : memref<2x16xf32, #tpu.memory_space<vmem>>, vector<2x16xf32>
    %333 = arith.mulf %323, %332 : vector<2x16xf32>
    %334 = arith.mulf %317, %325 : vector<2x16xf32>
    %335 = arith.addf %333, %334 : vector<2x16xf32>
    %336 = math.tanh %335 : vector<2x16xf32>
    %337 = arith.mulf %331, %336 : vector<2x16xf32>
    %c0_147 = arith.constant 0 : index
    %c0_148 = arith.constant 0 : index
    %338 = vector.load %arg5[%c0_147, %c0_148] : memref<2x16xf32, #tpu.memory_space<vmem>>, vector<2x16xf32>
    tpu.vector_store %arg5[%c0_147, %c0_148], %335 {strides = array<i32>} : memref<2x16xf32, #tpu.memory_space<vmem>>, vector<2x16xf32>,
    %c0_149 = arith.constant 0 : index
    %c0_150 = arith.constant 0 : index
    %339 = vector.load %arg4[%c0_149, %c0_150] : memref<2x16xf32, #tpu.memory_space<vmem>>, vector<2x16xf32>
    tpu.vector_store %arg4[%c0_149, %c0_150], %337 {strides = array<i32>} : memref<2x16xf32, #tpu.memory_space<vmem>>, vector<2x16xf32>,
    %340 = vector.extract_strided_slice %337 {offsets = [0, 0], sizes = [2, 8], strides = [1, 1]} : vector<2x16xf32> to vector<2x8xf32>
    %341 = vector.shape_cast %340 : vector<2x8xf32> to vector<1x2x8xf32>
    %342 = arith.index_cast %c7_i32 : i32 to index
    %c0_151 = arith.constant 0 : index
    %c0_152 = arith.constant 0 : index
    %343 = vector.load %arg3[%342, %c0_151, %c0_152] : memref<16x2x16xf32, #tpu.memory_space<vmem>>, vector<1x2x8xf32>
    tpu.vector_store %arg3[%342, %c0_151, %c0_152], %341 {strides = array<i32>} : memref<16x2x16xf32, #tpu.memory_space<vmem>>, vector<1x2x8xf32>,
    %344 = vector.extract_strided_slice %337 {offsets = [0, 8], sizes = [2, 8], strides = [1, 1]} : vector<2x16xf32> to vector<2x8xf32>
    %345 = vector.shape_cast %344 : vector<2x8xf32> to vector<1x2x8xf32>
    %c15_i32_153 = arith.constant 15 : i32
    %346 = arith.subi %c15_i32_153, %c7_i32 : i32
    %347 = arith.index_cast %346 : i32 to index
    %c0_154 = arith.constant 0 : index
    %c8_155 = arith.constant 8 : index
    %348 = vector.load %arg3[%347, %c0_154, %c8_155] : memref<16x2x16xf32, #tpu.memory_space<vmem>>, vector<1x2x8xf32>
    tpu.vector_store %arg3[%347, %c0_154, %c8_155], %345 {strides = array<i32>} : memref<16x2x16xf32, #tpu.memory_space<vmem>>, vector<1x2x8xf32>,
    %c8_i32 = arith.constant 8 : i32
    %349 = arith.index_cast %c8_i32 : i32 to index
    %c0_156 = arith.constant 0 : index
    %c0_157 = arith.constant 0 : index
    %350 = vector.load %arg1[%349, %c0_156, %c0_157] : memref<16x2x64xf32, #tpu.memory_space<vmem>>, vector<1x2x64xf32>
    %351 = vector.shape_cast %350 : vector<1x2x64xf32> to vector<2x64xf32>
    %c0_158 = arith.constant 0 : index
    %c0_159 = arith.constant 0 : index
    %352 = vector.load %arg4[%c0_158, %c0_159] : memref<2x16xf32, #tpu.memory_space<vmem>>, vector<2x16xf32>
    %cst_160 = arith.constant dense<0.000000e+00> : vector<2x64xf32>
    %353 = tpu.matmul %352, %4, %cst_160 {dimension_numbers = #tpu.dot_dimension_numbers<[1], [0], [0], [1], [0, 0, 1, 1], [], []>} : vector<2x16xf32>, vector<16x64xf32>, vector<2x64xf32> -> vector<2x64xf32>
    %354 = arith.addf %351, %353 : vector<2x64xf32>
    %355 = vector.extract_strided_slice %354 {offsets = [0, 0], sizes = [2, 16], strides = [1, 1]} : vector<2x64xf32> to vector<2x16xf32>
    %356 = arith.negf %355 : vector<2x16xf32>
    %357 = math.exp %356 : vector<2x16xf32>
    %cst_161 = arith.constant 1.000000e+00 : f32
    %358 = vector.broadcast %cst_161 : f32 to vector<2x16xf32>
    %359 = arith.addf %358, %357 : vector<2x16xf32>
    %360 = arith.divf %358, %359 : vector<2x16xf32>
    %361 = vector.extract_strided_slice %354 {offsets = [0, 16], sizes = [2, 16], strides = [1, 1]} : vector<2x64xf32> to vector<2x16xf32>
    %362 = arith.negf %361 : vector<2x16xf32>
    %363 = math.exp %362 : vector<2x16xf32>
    %cst_162 = arith.constant 1.000000e+00 : f32
    %364 = vector.broadcast %cst_162 : f32 to vector<2x16xf32>
    %365 = arith.addf %364, %363 : vector<2x16xf32>
    %366 = arith.divf %364, %365 : vector<2x16xf32>
    %367 = vector.extract_strided_slice %354 {offsets = [0, 32], sizes = [2, 16], strides = [1, 1]} : vector<2x64xf32> to vector<2x16xf32>
    %368 = math.tanh %367 : vector<2x16xf32>
    %369 = vector.extract_strided_slice %354 {offsets = [0, 48], sizes = [2, 16], strides = [1, 1]} : vector<2x64xf32> to vector<2x16xf32>
    %370 = arith.negf %369 : vector<2x16xf32>
    %371 = math.exp %370 : vector<2x16xf32>
    %cst_163 = arith.constant 1.000000e+00 : f32
    %372 = vector.broadcast %cst_163 : f32 to vector<2x16xf32>
    %373 = arith.addf %372, %371 : vector<2x16xf32>
    %374 = arith.divf %372, %373 : vector<2x16xf32>
    %c0_164 = arith.constant 0 : index
    %c0_165 = arith.constant 0 : index
    %375 = vector.load %arg5[%c0_164, %c0_165] : memref<2x16xf32, #tpu.memory_space<vmem>>, vector<2x16xf32>
    %376 = arith.mulf %366, %375 : vector<2x16xf32>
    %377 = arith.mulf %360, %368 : vector<2x16xf32>
    %378 = arith.addf %376, %377 : vector<2x16xf32>
    %379 = math.tanh %378 : vector<2x16xf32>
    %380 = arith.mulf %374, %379 : vector<2x16xf32>
    %c0_166 = arith.constant 0 : index
    %c0_167 = arith.constant 0 : index
    %381 = vector.load %arg5[%c0_166, %c0_167] : memref<2x16xf32, #tpu.memory_space<vmem>>, vector<2x16xf32>
    tpu.vector_store %arg5[%c0_166, %c0_167], %378 {strides = array<i32>} : memref<2x16xf32, #tpu.memory_space<vmem>>, vector<2x16xf32>,
    %c0_168 = arith.constant 0 : index
    %c0_169 = arith.constant 0 : index
    %382 = vector.load %arg4[%c0_168, %c0_169] : memref<2x16xf32, #tpu.memory_space<vmem>>, vector<2x16xf32>
    tpu.vector_store %arg4[%c0_168, %c0_169], %380 {strides = array<i32>} : memref<2x16xf32, #tpu.memory_space<vmem>>, vector<2x16xf32>,
    %383 = vector.extract_strided_slice %380 {offsets = [0, 0], sizes = [2, 8], strides = [1, 1]} : vector<2x16xf32> to vector<2x8xf32>
    %384 = vector.shape_cast %383 : vector<2x8xf32> to vector<1x2x8xf32>
    %385 = arith.index_cast %c8_i32 : i32 to index
    %c0_170 = arith.constant 0 : index
    %c0_171 = arith.constant 0 : index
    %386 = vector.load %arg3[%385, %c0_170, %c0_171] : memref<16x2x16xf32, #tpu.memory_space<vmem>>, vector<1x2x8xf32>
    tpu.vector_store %arg3[%385, %c0_170, %c0_171], %384 {strides = array<i32>} : memref<16x2x16xf32, #tpu.memory_space<vmem>>, vector<1x2x8xf32>,
    %387 = vector.extract_strided_slice %380 {offsets = [0, 8], sizes = [2, 8], strides = [1, 1]} : vector<2x16xf32> to vector<2x8xf32>
    %388 = vector.shape_cast %387 : vector<2x8xf32> to vector<1x2x8xf32>
    %c15_i32_172 = arith.constant 15 : i32
    %389 = arith.subi %c15_i32_172, %c8_i32 : i32
    %390 = arith.index_cast %389 : i32 to index
    %c0_173 = arith.constant 0 : index
    %c8_174 = arith.constant 8 : index
    %391 = vector.load %arg3[%390, %c0_173, %c8_174] : memref<16x2x16xf32, #tpu.memory_space<vmem>>, vector<1x2x8xf32>
    tpu.vector_store %arg3[%390, %c0_173, %c8_174], %388 {strides = array<i32>} : memref<16x2x16xf32, #tpu.memory_space<vmem>>, vector<1x2x8xf32>,
    %c9_i32 = arith.constant 9 : i32
    %392 = arith.index_cast %c9_i32 : i32 to index
    %c0_175 = arith.constant 0 : index
    %c0_176 = arith.constant 0 : index
    %393 = vector.load %arg1[%392, %c0_175, %c0_176] : memref<16x2x64xf32, #tpu.memory_space<vmem>>, vector<1x2x64xf32>
    %394 = vector.shape_cast %393 : vector<1x2x64xf32> to vector<2x64xf32>
    %c0_177 = arith.constant 0 : index
    %c0_178 = arith.constant 0 : index
    %395 = vector.load %arg4[%c0_177, %c0_178] : memref<2x16xf32, #tpu.memory_space<vmem>>, vector<2x16xf32>
    %cst_179 = arith.constant dense<0.000000e+00> : vector<2x64xf32>
    %396 = tpu.matmul %395, %4, %cst_179 {dimension_numbers = #tpu.dot_dimension_numbers<[1], [0], [0], [1], [0, 0, 1, 1], [], []>} : vector<2x16xf32>, vector<16x64xf32>, vector<2x64xf32> -> vector<2x64xf32>
    %397 = arith.addf %394, %396 : vector<2x64xf32>
    %398 = vector.extract_strided_slice %397 {offsets = [0, 0], sizes = [2, 16], strides = [1, 1]} : vector<2x64xf32> to vector<2x16xf32>
    %399 = arith.negf %398 : vector<2x16xf32>
    %400 = math.exp %399 : vector<2x16xf32>
    %cst_180 = arith.constant 1.000000e+00 : f32
    %401 = vector.broadcast %cst_180 : f32 to vector<2x16xf32>
    %402 = arith.addf %401, %400 : vector<2x16xf32>
    %403 = arith.divf %401, %402 : vector<2x16xf32>
    %404 = vector.extract_strided_slice %397 {offsets = [0, 16], sizes = [2, 16], strides = [1, 1]} : vector<2x64xf32> to vector<2x16xf32>
    %405 = arith.negf %404 : vector<2x16xf32>
    %406 = math.exp %405 : vector<2x16xf32>
    %cst_181 = arith.constant 1.000000e+00 : f32
    %407 = vector.broadcast %cst_181 : f32 to vector<2x16xf32>
    %408 = arith.addf %407, %406 : vector<2x16xf32>
    %409 = arith.divf %407, %408 : vector<2x16xf32>
    %410 = vector.extract_strided_slice %397 {offsets = [0, 32], sizes = [2, 16], strides = [1, 1]} : vector<2x64xf32> to vector<2x16xf32>
    %411 = math.tanh %410 : vector<2x16xf32>
    %412 = vector.extract_strided_slice %397 {offsets = [0, 48], sizes = [2, 16], strides = [1, 1]} : vector<2x64xf32> to vector<2x16xf32>
    %413 = arith.negf %412 : vector<2x16xf32>
    %414 = math.exp %413 : vector<2x16xf32>
    %cst_182 = arith.constant 1.000000e+00 : f32
    %415 = vector.broadcast %cst_182 : f32 to vector<2x16xf32>
    %416 = arith.addf %415, %414 : vector<2x16xf32>
    %417 = arith.divf %415, %416 : vector<2x16xf32>
    %c0_183 = arith.constant 0 : index
    %c0_184 = arith.constant 0 : index
    %418 = vector.load %arg5[%c0_183, %c0_184] : memref<2x16xf32, #tpu.memory_space<vmem>>, vector<2x16xf32>
    %419 = arith.mulf %409, %418 : vector<2x16xf32>
    %420 = arith.mulf %403, %411 : vector<2x16xf32>
    %421 = arith.addf %419, %420 : vector<2x16xf32>
    %422 = math.tanh %421 : vector<2x16xf32>
    %423 = arith.mulf %417, %422 : vector<2x16xf32>
    %c0_185 = arith.constant 0 : index
    %c0_186 = arith.constant 0 : index
    %424 = vector.load %arg5[%c0_185, %c0_186] : memref<2x16xf32, #tpu.memory_space<vmem>>, vector<2x16xf32>
    tpu.vector_store %arg5[%c0_185, %c0_186], %421 {strides = array<i32>} : memref<2x16xf32, #tpu.memory_space<vmem>>, vector<2x16xf32>,
    %c0_187 = arith.constant 0 : index
    %c0_188 = arith.constant 0 : index
    %425 = vector.load %arg4[%c0_187, %c0_188] : memref<2x16xf32, #tpu.memory_space<vmem>>, vector<2x16xf32>
    tpu.vector_store %arg4[%c0_187, %c0_188], %423 {strides = array<i32>} : memref<2x16xf32, #tpu.memory_space<vmem>>, vector<2x16xf32>,
    %426 = vector.extract_strided_slice %423 {offsets = [0, 0], sizes = [2, 8], strides = [1, 1]} : vector<2x16xf32> to vector<2x8xf32>
    %427 = vector.shape_cast %426 : vector<2x8xf32> to vector<1x2x8xf32>
    %428 = arith.index_cast %c9_i32 : i32 to index
    %c0_189 = arith.constant 0 : index
    %c0_190 = arith.constant 0 : index
    %429 = vector.load %arg3[%428, %c0_189, %c0_190] : memref<16x2x16xf32, #tpu.memory_space<vmem>>, vector<1x2x8xf32>
    tpu.vector_store %arg3[%428, %c0_189, %c0_190], %427 {strides = array<i32>} : memref<16x2x16xf32, #tpu.memory_space<vmem>>, vector<1x2x8xf32>,
    %430 = vector.extract_strided_slice %423 {offsets = [0, 8], sizes = [2, 8], strides = [1, 1]} : vector<2x16xf32> to vector<2x8xf32>
    %431 = vector.shape_cast %430 : vector<2x8xf32> to vector<1x2x8xf32>
    %c15_i32_191 = arith.constant 15 : i32
    %432 = arith.subi %c15_i32_191, %c9_i32 : i32
    %433 = arith.index_cast %432 : i32 to index
    %c0_192 = arith.constant 0 : index
    %c8_193 = arith.constant 8 : index
    %434 = vector.load %arg3[%433, %c0_192, %c8_193] : memref<16x2x16xf32, #tpu.memory_space<vmem>>, vector<1x2x8xf32>
    tpu.vector_store %arg3[%433, %c0_192, %c8_193], %431 {strides = array<i32>} : memref<16x2x16xf32, #tpu.memory_space<vmem>>, vector<1x2x8xf32>,
    %c10_i32 = arith.constant 10 : i32
    %435 = arith.index_cast %c10_i32 : i32 to index
    %c0_194 = arith.constant 0 : index
    %c0_195 = arith.constant 0 : index
    %436 = vector.load %arg1[%435, %c0_194, %c0_195] : memref<16x2x64xf32, #tpu.memory_space<vmem>>, vector<1x2x64xf32>
    %437 = vector.shape_cast %436 : vector<1x2x64xf32> to vector<2x64xf32>
    %c0_196 = arith.constant 0 : index
    %c0_197 = arith.constant 0 : index
    %438 = vector.load %arg4[%c0_196, %c0_197] : memref<2x16xf32, #tpu.memory_space<vmem>>, vector<2x16xf32>
    %cst_198 = arith.constant dense<0.000000e+00> : vector<2x64xf32>
    %439 = tpu.matmul %438, %4, %cst_198 {dimension_numbers = #tpu.dot_dimension_numbers<[1], [0], [0], [1], [0, 0, 1, 1], [], []>} : vector<2x16xf32>, vector<16x64xf32>, vector<2x64xf32> -> vector<2x64xf32>
    %440 = arith.addf %437, %439 : vector<2x64xf32>
    %441 = vector.extract_strided_slice %440 {offsets = [0, 0], sizes = [2, 16], strides = [1, 1]} : vector<2x64xf32> to vector<2x16xf32>
    %442 = arith.negf %441 : vector<2x16xf32>
    %443 = math.exp %442 : vector<2x16xf32>
    %cst_199 = arith.constant 1.000000e+00 : f32
    %444 = vector.broadcast %cst_199 : f32 to vector<2x16xf32>
    %445 = arith.addf %444, %443 : vector<2x16xf32>
    %446 = arith.divf %444, %445 : vector<2x16xf32>
    %447 = vector.extract_strided_slice %440 {offsets = [0, 16], sizes = [2, 16], strides = [1, 1]} : vector<2x64xf32> to vector<2x16xf32>
    %448 = arith.negf %447 : vector<2x16xf32>
    %449 = math.exp %448 : vector<2x16xf32>
    %cst_200 = arith.constant 1.000000e+00 : f32
    %450 = vector.broadcast %cst_200 : f32 to vector<2x16xf32>
    %451 = arith.addf %450, %449 : vector<2x16xf32>
    %452 = arith.divf %450, %451 : vector<2x16xf32>
    %453 = vector.extract_strided_slice %440 {offsets = [0, 32], sizes = [2, 16], strides = [1, 1]} : vector<2x64xf32> to vector<2x16xf32>
    %454 = math.tanh %453 : vector<2x16xf32>
    %455 = vector.extract_strided_slice %440 {offsets = [0, 48], sizes = [2, 16], strides = [1, 1]} : vector<2x64xf32> to vector<2x16xf32>
    %456 = arith.negf %455 : vector<2x16xf32>
    %457 = math.exp %456 : vector<2x16xf32>
    %cst_201 = arith.constant 1.000000e+00 : f32
    %458 = vector.broadcast %cst_201 : f32 to vector<2x16xf32>
    %459 = arith.addf %458, %457 : vector<2x16xf32>
    %460 = arith.divf %458, %459 : vector<2x16xf32>
    %c0_202 = arith.constant 0 : index
    %c0_203 = arith.constant 0 : index
    %461 = vector.load %arg5[%c0_202, %c0_203] : memref<2x16xf32, #tpu.memory_space<vmem>>, vector<2x16xf32>
    %462 = arith.mulf %452, %461 : vector<2x16xf32>
    %463 = arith.mulf %446, %454 : vector<2x16xf32>
    %464 = arith.addf %462, %463 : vector<2x16xf32>
    %465 = math.tanh %464 : vector<2x16xf32>
    %466 = arith.mulf %460, %465 : vector<2x16xf32>
    %c0_204 = arith.constant 0 : index
    %c0_205 = arith.constant 0 : index
    %467 = vector.load %arg5[%c0_204, %c0_205] : memref<2x16xf32, #tpu.memory_space<vmem>>, vector<2x16xf32>
    tpu.vector_store %arg5[%c0_204, %c0_205], %464 {strides = array<i32>} : memref<2x16xf32, #tpu.memory_space<vmem>>, vector<2x16xf32>,
    %c0_206 = arith.constant 0 : index
    %c0_207 = arith.constant 0 : index
    %468 = vector.load %arg4[%c0_206, %c0_207] : memref<2x16xf32, #tpu.memory_space<vmem>>, vector<2x16xf32>
    tpu.vector_store %arg4[%c0_206, %c0_207], %466 {strides = array<i32>} : memref<2x16xf32, #tpu.memory_space<vmem>>, vector<2x16xf32>,
    %469 = vector.extract_strided_slice %466 {offsets = [0, 0], sizes = [2, 8], strides = [1, 1]} : vector<2x16xf32> to vector<2x8xf32>
    %470 = vector.shape_cast %469 : vector<2x8xf32> to vector<1x2x8xf32>
    %471 = arith.index_cast %c10_i32 : i32 to index
    %c0_208 = arith.constant 0 : index
    %c0_209 = arith.constant 0 : index
    %472 = vector.load %arg3[%471, %c0_208, %c0_209] : memref<16x2x16xf32, #tpu.memory_space<vmem>>, vector<1x2x8xf32>
    tpu.vector_store %arg3[%471, %c0_208, %c0_209], %470 {strides = array<i32>} : memref<16x2x16xf32, #tpu.memory_space<vmem>>, vector<1x2x8xf32>,
    %473 = vector.extract_strided_slice %466 {offsets = [0, 8], sizes = [2, 8], strides = [1, 1]} : vector<2x16xf32> to vector<2x8xf32>
    %474 = vector.shape_cast %473 : vector<2x8xf32> to vector<1x2x8xf32>
    %c15_i32_210 = arith.constant 15 : i32
    %475 = arith.subi %c15_i32_210, %c10_i32 : i32
    %476 = arith.index_cast %475 : i32 to index
    %c0_211 = arith.constant 0 : index
    %c8_212 = arith.constant 8 : index
    %477 = vector.load %arg3[%476, %c0_211, %c8_212] : memref<16x2x16xf32, #tpu.memory_space<vmem>>, vector<1x2x8xf32>
    tpu.vector_store %arg3[%476, %c0_211, %c8_212], %474 {strides = array<i32>} : memref<16x2x16xf32, #tpu.memory_space<vmem>>, vector<1x2x8xf32>,
    %c11_i32 = arith.constant 11 : i32
    %478 = arith.index_cast %c11_i32 : i32 to index
    %c0_213 = arith.constant 0 : index
    %c0_214 = arith.constant 0 : index
    %479 = vector.load %arg1[%478, %c0_213, %c0_214] : memref<16x2x64xf32, #tpu.memory_space<vmem>>, vector<1x2x64xf32>
    %480 = vector.shape_cast %479 : vector<1x2x64xf32> to vector<2x64xf32>
    %c0_215 = arith.constant 0 : index
    %c0_216 = arith.constant 0 : index
    %481 = vector.load %arg4[%c0_215, %c0_216] : memref<2x16xf32, #tpu.memory_space<vmem>>, vector<2x16xf32>
    %cst_217 = arith.constant dense<0.000000e+00> : vector<2x64xf32>
    %482 = tpu.matmul %481, %4, %cst_217 {dimension_numbers = #tpu.dot_dimension_numbers<[1], [0], [0], [1], [0, 0, 1, 1], [], []>} : vector<2x16xf32>, vector<16x64xf32>, vector<2x64xf32> -> vector<2x64xf32>
    %483 = arith.addf %480, %482 : vector<2x64xf32>
    %484 = vector.extract_strided_slice %483 {offsets = [0, 0], sizes = [2, 16], strides = [1, 1]} : vector<2x64xf32> to vector<2x16xf32>
    %485 = arith.negf %484 : vector<2x16xf32>
    %486 = math.exp %485 : vector<2x16xf32>
    %cst_218 = arith.constant 1.000000e+00 : f32
    %487 = vector.broadcast %cst_218 : f32 to vector<2x16xf32>
    %488 = arith.addf %487, %486 : vector<2x16xf32>
    %489 = arith.divf %487, %488 : vector<2x16xf32>
    %490 = vector.extract_strided_slice %483 {offsets = [0, 16], sizes = [2, 16], strides = [1, 1]} : vector<2x64xf32> to vector<2x16xf32>
    %491 = arith.negf %490 : vector<2x16xf32>
    %492 = math.exp %491 : vector<2x16xf32>
    %cst_219 = arith.constant 1.000000e+00 : f32
    %493 = vector.broadcast %cst_219 : f32 to vector<2x16xf32>
    %494 = arith.addf %493, %492 : vector<2x16xf32>
    %495 = arith.divf %493, %494 : vector<2x16xf32>
    %496 = vector.extract_strided_slice %483 {offsets = [0, 32], sizes = [2, 16], strides = [1, 1]} : vector<2x64xf32> to vector<2x16xf32>
    %497 = math.tanh %496 : vector<2x16xf32>
    %498 = vector.extract_strided_slice %483 {offsets = [0, 48], sizes = [2, 16], strides = [1, 1]} : vector<2x64xf32> to vector<2x16xf32>
    %499 = arith.negf %498 : vector<2x16xf32>
    %500 = math.exp %499 : vector<2x16xf32>
    %cst_220 = arith.constant 1.000000e+00 : f32
    %501 = vector.broadcast %cst_220 : f32 to vector<2x16xf32>
    %502 = arith.addf %501, %500 : vector<2x16xf32>
    %503 = arith.divf %501, %502 : vector<2x16xf32>
    %c0_221 = arith.constant 0 : index
    %c0_222 = arith.constant 0 : index
    %504 = vector.load %arg5[%c0_221, %c0_222] : memref<2x16xf32, #tpu.memory_space<vmem>>, vector<2x16xf32>
    %505 = arith.mulf %495, %504 : vector<2x16xf32>
    %506 = arith.mulf %489, %497 : vector<2x16xf32>
    %507 = arith.addf %505, %506 : vector<2x16xf32>
    %508 = math.tanh %507 : vector<2x16xf32>
    %509 = arith.mulf %503, %508 : vector<2x16xf32>
    %c0_223 = arith.constant 0 : index
    %c0_224 = arith.constant 0 : index
    %510 = vector.load %arg5[%c0_223, %c0_224] : memref<2x16xf32, #tpu.memory_space<vmem>>, vector<2x16xf32>
    tpu.vector_store %arg5[%c0_223, %c0_224], %507 {strides = array<i32>} : memref<2x16xf32, #tpu.memory_space<vmem>>, vector<2x16xf32>,
    %c0_225 = arith.constant 0 : index
    %c0_226 = arith.constant 0 : index
    %511 = vector.load %arg4[%c0_225, %c0_226] : memref<2x16xf32, #tpu.memory_space<vmem>>, vector<2x16xf32>
    tpu.vector_store %arg4[%c0_225, %c0_226], %509 {strides = array<i32>} : memref<2x16xf32, #tpu.memory_space<vmem>>, vector<2x16xf32>,
    %512 = vector.extract_strided_slice %509 {offsets = [0, 0], sizes = [2, 8], strides = [1, 1]} : vector<2x16xf32> to vector<2x8xf32>
    %513 = vector.shape_cast %512 : vector<2x8xf32> to vector<1x2x8xf32>
    %514 = arith.index_cast %c11_i32 : i32 to index
    %c0_227 = arith.constant 0 : index
    %c0_228 = arith.constant 0 : index
    %515 = vector.load %arg3[%514, %c0_227, %c0_228] : memref<16x2x16xf32, #tpu.memory_space<vmem>>, vector<1x2x8xf32>
    tpu.vector_store %arg3[%514, %c0_227, %c0_228], %513 {strides = array<i32>} : memref<16x2x16xf32, #tpu.memory_space<vmem>>, vector<1x2x8xf32>,
    %516 = vector.extract_strided_slice %509 {offsets = [0, 8], sizes = [2, 8], strides = [1, 1]} : vector<2x16xf32> to vector<2x8xf32>
    %517 = vector.shape_cast %516 : vector<2x8xf32> to vector<1x2x8xf32>
    %c15_i32_229 = arith.constant 15 : i32
    %518 = arith.subi %c15_i32_229, %c11_i32 : i32
    %519 = arith.index_cast %518 : i32 to index
    %c0_230 = arith.constant 0 : index
    %c8_231 = arith.constant 8 : index
    %520 = vector.load %arg3[%519, %c0_230, %c8_231] : memref<16x2x16xf32, #tpu.memory_space<vmem>>, vector<1x2x8xf32>
    tpu.vector_store %arg3[%519, %c0_230, %c8_231], %517 {strides = array<i32>} : memref<16x2x16xf32, #tpu.memory_space<vmem>>, vector<1x2x8xf32>,
    %c12_i32 = arith.constant 12 : i32
    %521 = arith.index_cast %c12_i32 : i32 to index
    %c0_232 = arith.constant 0 : index
    %c0_233 = arith.constant 0 : index
    %522 = vector.load %arg1[%521, %c0_232, %c0_233] : memref<16x2x64xf32, #tpu.memory_space<vmem>>, vector<1x2x64xf32>
    %523 = vector.shape_cast %522 : vector<1x2x64xf32> to vector<2x64xf32>
    %c0_234 = arith.constant 0 : index
    %c0_235 = arith.constant 0 : index
    %524 = vector.load %arg4[%c0_234, %c0_235] : memref<2x16xf32, #tpu.memory_space<vmem>>, vector<2x16xf32>
    %cst_236 = arith.constant dense<0.000000e+00> : vector<2x64xf32>
    %525 = tpu.matmul %524, %4, %cst_236 {dimension_numbers = #tpu.dot_dimension_numbers<[1], [0], [0], [1], [0, 0, 1, 1], [], []>} : vector<2x16xf32>, vector<16x64xf32>, vector<2x64xf32> -> vector<2x64xf32>
    %526 = arith.addf %523, %525 : vector<2x64xf32>
    %527 = vector.extract_strided_slice %526 {offsets = [0, 0], sizes = [2, 16], strides = [1, 1]} : vector<2x64xf32> to vector<2x16xf32>
    %528 = arith.negf %527 : vector<2x16xf32>
    %529 = math.exp %528 : vector<2x16xf32>
    %cst_237 = arith.constant 1.000000e+00 : f32
    %530 = vector.broadcast %cst_237 : f32 to vector<2x16xf32>
    %531 = arith.addf %530, %529 : vector<2x16xf32>
    %532 = arith.divf %530, %531 : vector<2x16xf32>
    %533 = vector.extract_strided_slice %526 {offsets = [0, 16], sizes = [2, 16], strides = [1, 1]} : vector<2x64xf32> to vector<2x16xf32>
    %534 = arith.negf %533 : vector<2x16xf32>
    %535 = math.exp %534 : vector<2x16xf32>
    %cst_238 = arith.constant 1.000000e+00 : f32
    %536 = vector.broadcast %cst_238 : f32 to vector<2x16xf32>
    %537 = arith.addf %536, %535 : vector<2x16xf32>
    %538 = arith.divf %536, %537 : vector<2x16xf32>
    %539 = vector.extract_strided_slice %526 {offsets = [0, 32], sizes = [2, 16], strides = [1, 1]} : vector<2x64xf32> to vector<2x16xf32>
    %540 = math.tanh %539 : vector<2x16xf32>
    %541 = vector.extract_strided_slice %526 {offsets = [0, 48], sizes = [2, 16], strides = [1, 1]} : vector<2x64xf32> to vector<2x16xf32>
    %542 = arith.negf %541 : vector<2x16xf32>
    %543 = math.exp %542 : vector<2x16xf32>
    %cst_239 = arith.constant 1.000000e+00 : f32
    %544 = vector.broadcast %cst_239 : f32 to vector<2x16xf32>
    %545 = arith.addf %544, %543 : vector<2x16xf32>
    %546 = arith.divf %544, %545 : vector<2x16xf32>
    %c0_240 = arith.constant 0 : index
    %c0_241 = arith.constant 0 : index
    %547 = vector.load %arg5[%c0_240, %c0_241] : memref<2x16xf32, #tpu.memory_space<vmem>>, vector<2x16xf32>
    %548 = arith.mulf %538, %547 : vector<2x16xf32>
    %549 = arith.mulf %532, %540 : vector<2x16xf32>
    %550 = arith.addf %548, %549 : vector<2x16xf32>
    %551 = math.tanh %550 : vector<2x16xf32>
    %552 = arith.mulf %546, %551 : vector<2x16xf32>
    %c0_242 = arith.constant 0 : index
    %c0_243 = arith.constant 0 : index
    %553 = vector.load %arg5[%c0_242, %c0_243] : memref<2x16xf32, #tpu.memory_space<vmem>>, vector<2x16xf32>
    tpu.vector_store %arg5[%c0_242, %c0_243], %550 {strides = array<i32>} : memref<2x16xf32, #tpu.memory_space<vmem>>, vector<2x16xf32>,
    %c0_244 = arith.constant 0 : index
    %c0_245 = arith.constant 0 : index
    %554 = vector.load %arg4[%c0_244, %c0_245] : memref<2x16xf32, #tpu.memory_space<vmem>>, vector<2x16xf32>
    tpu.vector_store %arg4[%c0_244, %c0_245], %552 {strides = array<i32>} : memref<2x16xf32, #tpu.memory_space<vmem>>, vector<2x16xf32>,
    %555 = vector.extract_strided_slice %552 {offsets = [0, 0], sizes = [2, 8], strides = [1, 1]} : vector<2x16xf32> to vector<2x8xf32>
    %556 = vector.shape_cast %555 : vector<2x8xf32> to vector<1x2x8xf32>
    %557 = arith.index_cast %c12_i32 : i32 to index
    %c0_246 = arith.constant 0 : index
    %c0_247 = arith.constant 0 : index
    %558 = vector.load %arg3[%557, %c0_246, %c0_247] : memref<16x2x16xf32, #tpu.memory_space<vmem>>, vector<1x2x8xf32>
    tpu.vector_store %arg3[%557, %c0_246, %c0_247], %556 {strides = array<i32>} : memref<16x2x16xf32, #tpu.memory_space<vmem>>, vector<1x2x8xf32>,
    %559 = vector.extract_strided_slice %552 {offsets = [0, 8], sizes = [2, 8], strides = [1, 1]} : vector<2x16xf32> to vector<2x8xf32>
    %560 = vector.shape_cast %559 : vector<2x8xf32> to vector<1x2x8xf32>
    %c15_i32_248 = arith.constant 15 : i32
    %561 = arith.subi %c15_i32_248, %c12_i32 : i32
    %562 = arith.index_cast %561 : i32 to index
    %c0_249 = arith.constant 0 : index
    %c8_250 = arith.constant 8 : index
    %563 = vector.load %arg3[%562, %c0_249, %c8_250] : memref<16x2x16xf32, #tpu.memory_space<vmem>>, vector<1x2x8xf32>
    tpu.vector_store %arg3[%562, %c0_249, %c8_250], %560 {strides = array<i32>} : memref<16x2x16xf32, #tpu.memory_space<vmem>>, vector<1x2x8xf32>,
    %c13_i32 = arith.constant 13 : i32
    %564 = arith.index_cast %c13_i32 : i32 to index
    %c0_251 = arith.constant 0 : index
    %c0_252 = arith.constant 0 : index
    %565 = vector.load %arg1[%564, %c0_251, %c0_252] : memref<16x2x64xf32, #tpu.memory_space<vmem>>, vector<1x2x64xf32>
    %566 = vector.shape_cast %565 : vector<1x2x64xf32> to vector<2x64xf32>
    %c0_253 = arith.constant 0 : index
    %c0_254 = arith.constant 0 : index
    %567 = vector.load %arg4[%c0_253, %c0_254] : memref<2x16xf32, #tpu.memory_space<vmem>>, vector<2x16xf32>
    %cst_255 = arith.constant dense<0.000000e+00> : vector<2x64xf32>
    %568 = tpu.matmul %567, %4, %cst_255 {dimension_numbers = #tpu.dot_dimension_numbers<[1], [0], [0], [1], [0, 0, 1, 1], [], []>} : vector<2x16xf32>, vector<16x64xf32>, vector<2x64xf32> -> vector<2x64xf32>
    %569 = arith.addf %566, %568 : vector<2x64xf32>
    %570 = vector.extract_strided_slice %569 {offsets = [0, 0], sizes = [2, 16], strides = [1, 1]} : vector<2x64xf32> to vector<2x16xf32>
    %571 = arith.negf %570 : vector<2x16xf32>
    %572 = math.exp %571 : vector<2x16xf32>
    %cst_256 = arith.constant 1.000000e+00 : f32
    %573 = vector.broadcast %cst_256 : f32 to vector<2x16xf32>
    %574 = arith.addf %573, %572 : vector<2x16xf32>
    %575 = arith.divf %573, %574 : vector<2x16xf32>
    %576 = vector.extract_strided_slice %569 {offsets = [0, 16], sizes = [2, 16], strides = [1, 1]} : vector<2x64xf32> to vector<2x16xf32>
    %577 = arith.negf %576 : vector<2x16xf32>
    %578 = math.exp %577 : vector<2x16xf32>
    %cst_257 = arith.constant 1.000000e+00 : f32
    %579 = vector.broadcast %cst_257 : f32 to vector<2x16xf32>
    %580 = arith.addf %579, %578 : vector<2x16xf32>
    %581 = arith.divf %579, %580 : vector<2x16xf32>
    %582 = vector.extract_strided_slice %569 {offsets = [0, 32], sizes = [2, 16], strides = [1, 1]} : vector<2x64xf32> to vector<2x16xf32>
    %583 = math.tanh %582 : vector<2x16xf32>
    %584 = vector.extract_strided_slice %569 {offsets = [0, 48], sizes = [2, 16], strides = [1, 1]} : vector<2x64xf32> to vector<2x16xf32>
    %585 = arith.negf %584 : vector<2x16xf32>
    %586 = math.exp %585 : vector<2x16xf32>
    %cst_258 = arith.constant 1.000000e+00 : f32
    %587 = vector.broadcast %cst_258 : f32 to vector<2x16xf32>
    %588 = arith.addf %587, %586 : vector<2x16xf32>
    %589 = arith.divf %587, %588 : vector<2x16xf32>
    %c0_259 = arith.constant 0 : index
    %c0_260 = arith.constant 0 : index
    %590 = vector.load %arg5[%c0_259, %c0_260] : memref<2x16xf32, #tpu.memory_space<vmem>>, vector<2x16xf32>
    %591 = arith.mulf %581, %590 : vector<2x16xf32>
    %592 = arith.mulf %575, %583 : vector<2x16xf32>
    %593 = arith.addf %591, %592 : vector<2x16xf32>
    %594 = math.tanh %593 : vector<2x16xf32>
    %595 = arith.mulf %589, %594 : vector<2x16xf32>
    %c0_261 = arith.constant 0 : index
    %c0_262 = arith.constant 0 : index
    %596 = vector.load %arg5[%c0_261, %c0_262] : memref<2x16xf32, #tpu.memory_space<vmem>>, vector<2x16xf32>
    tpu.vector_store %arg5[%c0_261, %c0_262], %593 {strides = array<i32>} : memref<2x16xf32, #tpu.memory_space<vmem>>, vector<2x16xf32>,
    %c0_263 = arith.constant 0 : index
    %c0_264 = arith.constant 0 : index
    %597 = vector.load %arg4[%c0_263, %c0_264] : memref<2x16xf32, #tpu.memory_space<vmem>>, vector<2x16xf32>
    tpu.vector_store %arg4[%c0_263, %c0_264], %595 {strides = array<i32>} : memref<2x16xf32, #tpu.memory_space<vmem>>, vector<2x16xf32>,
    %598 = vector.extract_strided_slice %595 {offsets = [0, 0], sizes = [2, 8], strides = [1, 1]} : vector<2x16xf32> to vector<2x8xf32>
    %599 = vector.shape_cast %598 : vector<2x8xf32> to vector<1x2x8xf32>
    %600 = arith.index_cast %c13_i32 : i32 to index
    %c0_265 = arith.constant 0 : index
    %c0_266 = arith.constant 0 : index
    %601 = vector.load %arg3[%600, %c0_265, %c0_266] : memref<16x2x16xf32, #tpu.memory_space<vmem>>, vector<1x2x8xf32>
    tpu.vector_store %arg3[%600, %c0_265, %c0_266], %599 {strides = array<i32>} : memref<16x2x16xf32, #tpu.memory_space<vmem>>, vector<1x2x8xf32>,
    %602 = vector.extract_strided_slice %595 {offsets = [0, 8], sizes = [2, 8], strides = [1, 1]} : vector<2x16xf32> to vector<2x8xf32>
    %603 = vector.shape_cast %602 : vector<2x8xf32> to vector<1x2x8xf32>
    %c15_i32_267 = arith.constant 15 : i32
    %604 = arith.subi %c15_i32_267, %c13_i32 : i32
    %605 = arith.index_cast %604 : i32 to index
    %c0_268 = arith.constant 0 : index
    %c8_269 = arith.constant 8 : index
    %606 = vector.load %arg3[%605, %c0_268, %c8_269] : memref<16x2x16xf32, #tpu.memory_space<vmem>>, vector<1x2x8xf32>
    tpu.vector_store %arg3[%605, %c0_268, %c8_269], %603 {strides = array<i32>} : memref<16x2x16xf32, #tpu.memory_space<vmem>>, vector<1x2x8xf32>,
    %c14_i32 = arith.constant 14 : i32
    %607 = arith.index_cast %c14_i32 : i32 to index
    %c0_270 = arith.constant 0 : index
    %c0_271 = arith.constant 0 : index
    %608 = vector.load %arg1[%607, %c0_270, %c0_271] : memref<16x2x64xf32, #tpu.memory_space<vmem>>, vector<1x2x64xf32>
    %609 = vector.shape_cast %608 : vector<1x2x64xf32> to vector<2x64xf32>
    %c0_272 = arith.constant 0 : index
    %c0_273 = arith.constant 0 : index
    %610 = vector.load %arg4[%c0_272, %c0_273] : memref<2x16xf32, #tpu.memory_space<vmem>>, vector<2x16xf32>
    %cst_274 = arith.constant dense<0.000000e+00> : vector<2x64xf32>
    %611 = tpu.matmul %610, %4, %cst_274 {dimension_numbers = #tpu.dot_dimension_numbers<[1], [0], [0], [1], [0, 0, 1, 1], [], []>} : vector<2x16xf32>, vector<16x64xf32>, vector<2x64xf32> -> vector<2x64xf32>
    %612 = arith.addf %609, %611 : vector<2x64xf32>
    %613 = vector.extract_strided_slice %612 {offsets = [0, 0], sizes = [2, 16], strides = [1, 1]} : vector<2x64xf32> to vector<2x16xf32>
    %614 = arith.negf %613 : vector<2x16xf32>
    %615 = math.exp %614 : vector<2x16xf32>
    %cst_275 = arith.constant 1.000000e+00 : f32
    %616 = vector.broadcast %cst_275 : f32 to vector<2x16xf32>
    %617 = arith.addf %616, %615 : vector<2x16xf32>
    %618 = arith.divf %616, %617 : vector<2x16xf32>
    %619 = vector.extract_strided_slice %612 {offsets = [0, 16], sizes = [2, 16], strides = [1, 1]} : vector<2x64xf32> to vector<2x16xf32>
    %620 = arith.negf %619 : vector<2x16xf32>
    %621 = math.exp %620 : vector<2x16xf32>
    %cst_276 = arith.constant 1.000000e+00 : f32
    %622 = vector.broadcast %cst_276 : f32 to vector<2x16xf32>
    %623 = arith.addf %622, %621 : vector<2x16xf32>
    %624 = arith.divf %622, %623 : vector<2x16xf32>
    %625 = vector.extract_strided_slice %612 {offsets = [0, 32], sizes = [2, 16], strides = [1, 1]} : vector<2x64xf32> to vector<2x16xf32>
    %626 = math.tanh %625 : vector<2x16xf32>
    %627 = vector.extract_strided_slice %612 {offsets = [0, 48], sizes = [2, 16], strides = [1, 1]} : vector<2x64xf32> to vector<2x16xf32>
    %628 = arith.negf %627 : vector<2x16xf32>
    %629 = math.exp %628 : vector<2x16xf32>
    %cst_277 = arith.constant 1.000000e+00 : f32
    %630 = vector.broadcast %cst_277 : f32 to vector<2x16xf32>
    %631 = arith.addf %630, %629 : vector<2x16xf32>
    %632 = arith.divf %630, %631 : vector<2x16xf32>
    %c0_278 = arith.constant 0 : index
    %c0_279 = arith.constant 0 : index
    %633 = vector.load %arg5[%c0_278, %c0_279] : memref<2x16xf32, #tpu.memory_space<vmem>>, vector<2x16xf32>
    %634 = arith.mulf %624, %633 : vector<2x16xf32>
    %635 = arith.mulf %618, %626 : vector<2x16xf32>
    %636 = arith.addf %634, %635 : vector<2x16xf32>
    %637 = math.tanh %636 : vector<2x16xf32>
    %638 = arith.mulf %632, %637 : vector<2x16xf32>
    %c0_280 = arith.constant 0 : index
    %c0_281 = arith.constant 0 : index
    %639 = vector.load %arg5[%c0_280, %c0_281] : memref<2x16xf32, #tpu.memory_space<vmem>>, vector<2x16xf32>
    tpu.vector_store %arg5[%c0_280, %c0_281], %636 {strides = array<i32>} : memref<2x16xf32, #tpu.memory_space<vmem>>, vector<2x16xf32>,
    %c0_282 = arith.constant 0 : index
    %c0_283 = arith.constant 0 : index
    %640 = vector.load %arg4[%c0_282, %c0_283] : memref<2x16xf32, #tpu.memory_space<vmem>>, vector<2x16xf32>
    tpu.vector_store %arg4[%c0_282, %c0_283], %638 {strides = array<i32>} : memref<2x16xf32, #tpu.memory_space<vmem>>, vector<2x16xf32>,
    %641 = vector.extract_strided_slice %638 {offsets = [0, 0], sizes = [2, 8], strides = [1, 1]} : vector<2x16xf32> to vector<2x8xf32>
    %642 = vector.shape_cast %641 : vector<2x8xf32> to vector<1x2x8xf32>
    %643 = arith.index_cast %c14_i32 : i32 to index
    %c0_284 = arith.constant 0 : index
    %c0_285 = arith.constant 0 : index
    %644 = vector.load %arg3[%643, %c0_284, %c0_285] : memref<16x2x16xf32, #tpu.memory_space<vmem>>, vector<1x2x8xf32>
    tpu.vector_store %arg3[%643, %c0_284, %c0_285], %642 {strides = array<i32>} : memref<16x2x16xf32, #tpu.memory_space<vmem>>, vector<1x2x8xf32>,
    %645 = vector.extract_strided_slice %638 {offsets = [0, 8], sizes = [2, 8], strides = [1, 1]} : vector<2x16xf32> to vector<2x8xf32>
    %646 = vector.shape_cast %645 : vector<2x8xf32> to vector<1x2x8xf32>
    %c15_i32_286 = arith.constant 15 : i32
    %647 = arith.subi %c15_i32_286, %c14_i32 : i32
    %648 = arith.index_cast %647 : i32 to index
    %c0_287 = arith.constant 0 : index
    %c8_288 = arith.constant 8 : index
    %649 = vector.load %arg3[%648, %c0_287, %c8_288] : memref<16x2x16xf32, #tpu.memory_space<vmem>>, vector<1x2x8xf32>
    tpu.vector_store %arg3[%648, %c0_287, %c8_288], %646 {strides = array<i32>} : memref<16x2x16xf32, #tpu.memory_space<vmem>>, vector<1x2x8xf32>,
    %c15_i32_289 = arith.constant 15 : i32
    %650 = arith.index_cast %c15_i32_289 : i32 to index
    %c0_290 = arith.constant 0 : index
    %c0_291 = arith.constant 0 : index
    %651 = vector.load %arg1[%650, %c0_290, %c0_291] : memref<16x2x64xf32, #tpu.memory_space<vmem>>, vector<1x2x64xf32>
    %652 = vector.shape_cast %651 : vector<1x2x64xf32> to vector<2x64xf32>
    %c0_292 = arith.constant 0 : index
    %c0_293 = arith.constant 0 : index
    %653 = vector.load %arg4[%c0_292, %c0_293] : memref<2x16xf32, #tpu.memory_space<vmem>>, vector<2x16xf32>
    %cst_294 = arith.constant dense<0.000000e+00> : vector<2x64xf32>
    %654 = tpu.matmul %653, %4, %cst_294 {dimension_numbers = #tpu.dot_dimension_numbers<[1], [0], [0], [1], [0, 0, 1, 1], [], []>} : vector<2x16xf32>, vector<16x64xf32>, vector<2x64xf32> -> vector<2x64xf32>
    %655 = arith.addf %652, %654 : vector<2x64xf32>
    %656 = vector.extract_strided_slice %655 {offsets = [0, 0], sizes = [2, 16], strides = [1, 1]} : vector<2x64xf32> to vector<2x16xf32>
    %657 = arith.negf %656 : vector<2x16xf32>
    %658 = math.exp %657 : vector<2x16xf32>
    %cst_295 = arith.constant 1.000000e+00 : f32
    %659 = vector.broadcast %cst_295 : f32 to vector<2x16xf32>
    %660 = arith.addf %659, %658 : vector<2x16xf32>
    %661 = arith.divf %659, %660 : vector<2x16xf32>
    %662 = vector.extract_strided_slice %655 {offsets = [0, 16], sizes = [2, 16], strides = [1, 1]} : vector<2x64xf32> to vector<2x16xf32>
    %663 = arith.negf %662 : vector<2x16xf32>
    %664 = math.exp %663 : vector<2x16xf32>
    %cst_296 = arith.constant 1.000000e+00 : f32
    %665 = vector.broadcast %cst_296 : f32 to vector<2x16xf32>
    %666 = arith.addf %665, %664 : vector<2x16xf32>
    %667 = arith.divf %665, %666 : vector<2x16xf32>
    %668 = vector.extract_strided_slice %655 {offsets = [0, 32], sizes = [2, 16], strides = [1, 1]} : vector<2x64xf32> to vector<2x16xf32>
    %669 = math.tanh %668 : vector<2x16xf32>
    %670 = vector.extract_strided_slice %655 {offsets = [0, 48], sizes = [2, 16], strides = [1, 1]} : vector<2x64xf32> to vector<2x16xf32>
    %671 = arith.negf %670 : vector<2x16xf32>
    %672 = math.exp %671 : vector<2x16xf32>
    %cst_297 = arith.constant 1.000000e+00 : f32
    %673 = vector.broadcast %cst_297 : f32 to vector<2x16xf32>
    %674 = arith.addf %673, %672 : vector<2x16xf32>
    %675 = arith.divf %673, %674 : vector<2x16xf32>
    %c0_298 = arith.constant 0 : index
    %c0_299 = arith.constant 0 : index
    %676 = vector.load %arg5[%c0_298, %c0_299] : memref<2x16xf32, #tpu.memory_space<vmem>>, vector<2x16xf32>
    %677 = arith.mulf %667, %676 : vector<2x16xf32>
    %678 = arith.mulf %661, %669 : vector<2x16xf32>
    %679 = arith.addf %677, %678 : vector<2x16xf32>
    %680 = math.tanh %679 : vector<2x16xf32>
    %681 = arith.mulf %675, %680 : vector<2x16xf32>
    %c0_300 = arith.constant 0 : index
    %c0_301 = arith.constant 0 : index
    %682 = vector.load %arg5[%c0_300, %c0_301] : memref<2x16xf32, #tpu.memory_space<vmem>>, vector<2x16xf32>
    tpu.vector_store %arg5[%c0_300, %c0_301], %679 {strides = array<i32>} : memref<2x16xf32, #tpu.memory_space<vmem>>, vector<2x16xf32>,
    %c0_302 = arith.constant 0 : index
    %c0_303 = arith.constant 0 : index
    %683 = vector.load %arg4[%c0_302, %c0_303] : memref<2x16xf32, #tpu.memory_space<vmem>>, vector<2x16xf32>
    tpu.vector_store %arg4[%c0_302, %c0_303], %681 {strides = array<i32>} : memref<2x16xf32, #tpu.memory_space<vmem>>, vector<2x16xf32>,
    %684 = vector.extract_strided_slice %681 {offsets = [0, 0], sizes = [2, 8], strides = [1, 1]} : vector<2x16xf32> to vector<2x8xf32>
    %685 = vector.shape_cast %684 : vector<2x8xf32> to vector<1x2x8xf32>
    %686 = arith.index_cast %c15_i32_289 : i32 to index
    %c0_304 = arith.constant 0 : index
    %c0_305 = arith.constant 0 : index
    %687 = vector.load %arg3[%686, %c0_304, %c0_305] : memref<16x2x16xf32, #tpu.memory_space<vmem>>, vector<1x2x8xf32>
    tpu.vector_store %arg3[%686, %c0_304, %c0_305], %685 {strides = array<i32>} : memref<16x2x16xf32, #tpu.memory_space<vmem>>, vector<1x2x8xf32>,
    %688 = vector.extract_strided_slice %681 {offsets = [0, 8], sizes = [2, 8], strides = [1, 1]} : vector<2x16xf32> to vector<2x8xf32>
    %689 = vector.shape_cast %688 : vector<2x8xf32> to vector<1x2x8xf32>
    %c15_i32_306 = arith.constant 15 : i32
    %690 = arith.subi %c15_i32_306, %c15_i32_289 : i32
    %691 = arith.index_cast %690 : i32 to index
    %c0_307 = arith.constant 0 : index
    %c8_308 = arith.constant 8 : index
    %692 = vector.load %arg3[%691, %c0_307, %c8_308] : memref<16x2x16xf32, #tpu.memory_space<vmem>>, vector<1x2x8xf32>
    tpu.vector_store %arg3[%691, %c0_307, %c8_308], %689 {strides = array<i32>} : memref<16x2x16xf32, #tpu.memory_space<vmem>>, vector<1x2x8xf32>,
    %c16_i32 = arith.constant 16 : i32
    return
  }
  func.func @transform_0(%arg0: i32) -> (i32, i32, i32) {
    %c0_i32 = arith.constant 0 : i32
    %c0_i32_0 = arith.constant 0 : i32
    %c0_i32_1 = arith.constant 0 : i32
    return %c0_i32, %arg0, %c0_i32_0 : i32, i32, i32
  }
  func.func @transform_1(%arg0: i32) -> (i32, i32) {
    %c0_i32 = arith.constant 0 : i32
    %c0_i32_0 = arith.constant 0 : i32
    %c0_i32_1 = arith.constant 0 : i32
    return %c0_i32, %c0_i32_0 : i32, i32
  }
  func.func @transform_2(%arg0: i32) -> (i32, i32, i32) {
    %c0_i32 = arith.constant 0 : i32
    %c0_i32_0 = arith.constant 0 : i32
    %c0_i32_1 = arith.constant 0 : i32
    return %c0_i32, %arg0, %c0_i32_0 : i32, i32, i32
  }
}

module attributes {stable_mosaic.version = 11 : i64} {
  func.func @_pbilstm_kernel(%arg0: i32, %arg1: memref<4x2x64xf32, #tpu.memory_space<vmem>>, %arg2: memref<16x64xf32, #tpu.memory_space<vmem>>, %arg3: memref<4x2x16xf32, #tpu.memory_space<vmem>>, %arg4: memref<2x16xf32, #tpu.memory_space<vmem>>, %arg5: memref<2x16xf32, #tpu.memory_space<vmem>>) attributes {dimension_semantics = [#tpu.dimension_semantics<parallel>], iteration_bounds = array<i64: 1>, scalar_prefetch = 0 : i64, scratch_operands = 2 : i64, tpu.core_type = #tpu.core_type<tc>, window_params = [{transform_indices = @transform_0, window_bounds = array<i64: 4, 2, 64>}, {pipeline_mode = #tpu.pipeline_mode<synchronous>, transform_indices = @transform_1, window_bounds = array<i64: 16, 64>}, {transform_indices = @transform_2, window_bounds = array<i64: 4, 2, 16>}]} {
    %cst = arith.constant 0.000000e+00 : f32
    %0 = vector.broadcast %cst : f32 to vector<2x16xf32>
    %c0 = arith.constant 0 : index
    %c0_0 = arith.constant 0 : index
    %1 = vector.load %arg4[%c0, %c0_0] : memref<2x16xf32, #tpu.memory_space<vmem>>, vector<2x16xf32>
    tpu.vector_store %arg4[%c0, %c0_0], %0 {strides = array<i32>} : memref<2x16xf32, #tpu.memory_space<vmem>>, vector<2x16xf32>,
    %cst_1 = arith.constant 0.000000e+00 : f32
    %2 = vector.broadcast %cst_1 : f32 to vector<2x16xf32>
    %c0_2 = arith.constant 0 : index
    %c0_3 = arith.constant 0 : index
    %3 = vector.load %arg5[%c0_2, %c0_3] : memref<2x16xf32, #tpu.memory_space<vmem>>, vector<2x16xf32>
    tpu.vector_store %arg5[%c0_2, %c0_3], %2 {strides = array<i32>} : memref<2x16xf32, #tpu.memory_space<vmem>>, vector<2x16xf32>,
    %c0_4 = arith.constant 0 : index
    %c0_5 = arith.constant 0 : index
    %4 = vector.load %arg2[%c0_4, %c0_5] : memref<16x64xf32, #tpu.memory_space<vmem>>, vector<16x64xf32>
    %c0_i32 = arith.constant 0 : i32
    %5 = arith.index_cast %c0_i32 : i32 to index
    %c0_6 = arith.constant 0 : index
    %c0_7 = arith.constant 0 : index
    %6 = vector.load %arg1[%5, %c0_6, %c0_7] : memref<4x2x64xf32, #tpu.memory_space<vmem>>, vector<1x2x64xf32>
    %7 = vector.shape_cast %6 : vector<1x2x64xf32> to vector<2x64xf32>
    %c0_8 = arith.constant 0 : index
    %c0_9 = arith.constant 0 : index
    %8 = vector.load %arg4[%c0_8, %c0_9] : memref<2x16xf32, #tpu.memory_space<vmem>>, vector<2x16xf32>
    %cst_10 = arith.constant dense<0.000000e+00> : vector<2x64xf32>
    %9 = tpu.matmul %8, %4, %cst_10 {dimension_numbers = #tpu.dot_dimension_numbers<[1], [0], [0], [1], [0, 0, 1, 1], [], []>} : vector<2x16xf32>, vector<16x64xf32>, vector<2x64xf32> -> vector<2x64xf32>
    %10 = arith.addf %7, %9 : vector<2x64xf32>
    %11 = vector.extract_strided_slice %10 {offsets = [0, 0], sizes = [2, 16], strides = [1, 1]} : vector<2x64xf32> to vector<2x16xf32>
    %12 = arith.negf %11 : vector<2x16xf32>
    %13 = math.exp %12 : vector<2x16xf32>
    %cst_11 = arith.constant 1.000000e+00 : f32
    %14 = vector.broadcast %cst_11 : f32 to vector<2x16xf32>
    %15 = arith.addf %14, %13 : vector<2x16xf32>
    %16 = arith.divf %14, %15 : vector<2x16xf32>
    %17 = vector.extract_strided_slice %10 {offsets = [0, 16], sizes = [2, 16], strides = [1, 1]} : vector<2x64xf32> to vector<2x16xf32>
    %18 = arith.negf %17 : vector<2x16xf32>
    %19 = math.exp %18 : vector<2x16xf32>
    %cst_12 = arith.constant 1.000000e+00 : f32
    %20 = vector.broadcast %cst_12 : f32 to vector<2x16xf32>
    %21 = arith.addf %20, %19 : vector<2x16xf32>
    %22 = arith.divf %20, %21 : vector<2x16xf32>
    %23 = vector.extract_strided_slice %10 {offsets = [0, 32], sizes = [2, 16], strides = [1, 1]} : vector<2x64xf32> to vector<2x16xf32>
    %24 = math.tanh %23 : vector<2x16xf32>
    %25 = vector.extract_strided_slice %10 {offsets = [0, 48], sizes = [2, 16], strides = [1, 1]} : vector<2x64xf32> to vector<2x16xf32>
    %26 = arith.negf %25 : vector<2x16xf32>
    %27 = math.exp %26 : vector<2x16xf32>
    %cst_13 = arith.constant 1.000000e+00 : f32
    %28 = vector.broadcast %cst_13 : f32 to vector<2x16xf32>
    %29 = arith.addf %28, %27 : vector<2x16xf32>
    %30 = arith.divf %28, %29 : vector<2x16xf32>
    %c0_14 = arith.constant 0 : index
    %c0_15 = arith.constant 0 : index
    %31 = vector.load %arg5[%c0_14, %c0_15] : memref<2x16xf32, #tpu.memory_space<vmem>>, vector<2x16xf32>
    %32 = arith.mulf %22, %31 : vector<2x16xf32>
    %33 = arith.mulf %16, %24 : vector<2x16xf32>
    %34 = arith.addf %32, %33 : vector<2x16xf32>
    %35 = math.tanh %34 : vector<2x16xf32>
    %36 = arith.mulf %30, %35 : vector<2x16xf32>
    %c0_16 = arith.constant 0 : index
    %c0_17 = arith.constant 0 : index
    %37 = vector.load %arg5[%c0_16, %c0_17] : memref<2x16xf32, #tpu.memory_space<vmem>>, vector<2x16xf32>
    tpu.vector_store %arg5[%c0_16, %c0_17], %34 {strides = array<i32>} : memref<2x16xf32, #tpu.memory_space<vmem>>, vector<2x16xf32>,
    %c0_18 = arith.constant 0 : index
    %c0_19 = arith.constant 0 : index
    %38 = vector.load %arg4[%c0_18, %c0_19] : memref<2x16xf32, #tpu.memory_space<vmem>>, vector<2x16xf32>
    tpu.vector_store %arg4[%c0_18, %c0_19], %36 {strides = array<i32>} : memref<2x16xf32, #tpu.memory_space<vmem>>, vector<2x16xf32>,
    %39 = vector.extract_strided_slice %36 {offsets = [0, 0], sizes = [2, 8], strides = [1, 1]} : vector<2x16xf32> to vector<2x8xf32>
    %40 = vector.shape_cast %39 : vector<2x8xf32> to vector<1x2x8xf32>
    %41 = arith.index_cast %c0_i32 : i32 to index
    %c0_20 = arith.constant 0 : index
    %c0_21 = arith.constant 0 : index
    %42 = vector.load %arg3[%41, %c0_20, %c0_21] : memref<4x2x16xf32, #tpu.memory_space<vmem>>, vector<1x2x8xf32>
    tpu.vector_store %arg3[%41, %c0_20, %c0_21], %40 {strides = array<i32>} : memref<4x2x16xf32, #tpu.memory_space<vmem>>, vector<1x2x8xf32>,
    %43 = vector.extract_strided_slice %36 {offsets = [0, 8], sizes = [2, 8], strides = [1, 1]} : vector<2x16xf32> to vector<2x8xf32>
    %44 = vector.shape_cast %43 : vector<2x8xf32> to vector<1x2x8xf32>
    %c3_i32 = arith.constant 3 : i32
    %45 = arith.subi %c3_i32, %c0_i32 : i32
    %46 = arith.index_cast %45 : i32 to index
    %c0_22 = arith.constant 0 : index
    %c8 = arith.constant 8 : index
    %47 = vector.load %arg3[%46, %c0_22, %c8] : memref<4x2x16xf32, #tpu.memory_space<vmem>>, vector<1x2x8xf32>
    tpu.vector_store %arg3[%46, %c0_22, %c8], %44 {strides = array<i32>} : memref<4x2x16xf32, #tpu.memory_space<vmem>>, vector<1x2x8xf32>,
    %c1_i32 = arith.constant 1 : i32
    %48 = arith.index_cast %c1_i32 : i32 to index
    %c0_23 = arith.constant 0 : index
    %c0_24 = arith.constant 0 : index
    %49 = vector.load %arg1[%48, %c0_23, %c0_24] : memref<4x2x64xf32, #tpu.memory_space<vmem>>, vector<1x2x64xf32>
    %50 = vector.shape_cast %49 : vector<1x2x64xf32> to vector<2x64xf32>
    %c0_25 = arith.constant 0 : index
    %c0_26 = arith.constant 0 : index
    %51 = vector.load %arg4[%c0_25, %c0_26] : memref<2x16xf32, #tpu.memory_space<vmem>>, vector<2x16xf32>
    %cst_27 = arith.constant dense<0.000000e+00> : vector<2x64xf32>
    %52 = tpu.matmul %51, %4, %cst_27 {dimension_numbers = #tpu.dot_dimension_numbers<[1], [0], [0], [1], [0, 0, 1, 1], [], []>} : vector<2x16xf32>, vector<16x64xf32>, vector<2x64xf32> -> vector<2x64xf32>
    %53 = arith.addf %50, %52 : vector<2x64xf32>
    %54 = vector.extract_strided_slice %53 {offsets = [0, 0], sizes = [2, 16], strides = [1, 1]} : vector<2x64xf32> to vector<2x16xf32>
    %55 = arith.negf %54 : vector<2x16xf32>
    %56 = math.exp %55 : vector<2x16xf32>
    %cst_28 = arith.constant 1.000000e+00 : f32
    %57 = vector.broadcast %cst_28 : f32 to vector<2x16xf32>
    %58 = arith.addf %57, %56 : vector<2x16xf32>
    %59 = arith.divf %57, %58 : vector<2x16xf32>
    %60 = vector.extract_strided_slice %53 {offsets = [0, 16], sizes = [2, 16], strides = [1, 1]} : vector<2x64xf32> to vector<2x16xf32>
    %61 = arith.negf %60 : vector<2x16xf32>
    %62 = math.exp %61 : vector<2x16xf32>
    %cst_29 = arith.constant 1.000000e+00 : f32
    %63 = vector.broadcast %cst_29 : f32 to vector<2x16xf32>
    %64 = arith.addf %63, %62 : vector<2x16xf32>
    %65 = arith.divf %63, %64 : vector<2x16xf32>
    %66 = vector.extract_strided_slice %53 {offsets = [0, 32], sizes = [2, 16], strides = [1, 1]} : vector<2x64xf32> to vector<2x16xf32>
    %67 = math.tanh %66 : vector<2x16xf32>
    %68 = vector.extract_strided_slice %53 {offsets = [0, 48], sizes = [2, 16], strides = [1, 1]} : vector<2x64xf32> to vector<2x16xf32>
    %69 = arith.negf %68 : vector<2x16xf32>
    %70 = math.exp %69 : vector<2x16xf32>
    %cst_30 = arith.constant 1.000000e+00 : f32
    %71 = vector.broadcast %cst_30 : f32 to vector<2x16xf32>
    %72 = arith.addf %71, %70 : vector<2x16xf32>
    %73 = arith.divf %71, %72 : vector<2x16xf32>
    %c0_31 = arith.constant 0 : index
    %c0_32 = arith.constant 0 : index
    %74 = vector.load %arg5[%c0_31, %c0_32] : memref<2x16xf32, #tpu.memory_space<vmem>>, vector<2x16xf32>
    %75 = arith.mulf %65, %74 : vector<2x16xf32>
    %76 = arith.mulf %59, %67 : vector<2x16xf32>
    %77 = arith.addf %75, %76 : vector<2x16xf32>
    %78 = math.tanh %77 : vector<2x16xf32>
    %79 = arith.mulf %73, %78 : vector<2x16xf32>
    %c0_33 = arith.constant 0 : index
    %c0_34 = arith.constant 0 : index
    %80 = vector.load %arg5[%c0_33, %c0_34] : memref<2x16xf32, #tpu.memory_space<vmem>>, vector<2x16xf32>
    tpu.vector_store %arg5[%c0_33, %c0_34], %77 {strides = array<i32>} : memref<2x16xf32, #tpu.memory_space<vmem>>, vector<2x16xf32>,
    %c0_35 = arith.constant 0 : index
    %c0_36 = arith.constant 0 : index
    %81 = vector.load %arg4[%c0_35, %c0_36] : memref<2x16xf32, #tpu.memory_space<vmem>>, vector<2x16xf32>
    tpu.vector_store %arg4[%c0_35, %c0_36], %79 {strides = array<i32>} : memref<2x16xf32, #tpu.memory_space<vmem>>, vector<2x16xf32>,
    %82 = vector.extract_strided_slice %79 {offsets = [0, 0], sizes = [2, 8], strides = [1, 1]} : vector<2x16xf32> to vector<2x8xf32>
    %83 = vector.shape_cast %82 : vector<2x8xf32> to vector<1x2x8xf32>
    %84 = arith.index_cast %c1_i32 : i32 to index
    %c0_37 = arith.constant 0 : index
    %c0_38 = arith.constant 0 : index
    %85 = vector.load %arg3[%84, %c0_37, %c0_38] : memref<4x2x16xf32, #tpu.memory_space<vmem>>, vector<1x2x8xf32>
    tpu.vector_store %arg3[%84, %c0_37, %c0_38], %83 {strides = array<i32>} : memref<4x2x16xf32, #tpu.memory_space<vmem>>, vector<1x2x8xf32>,
    %86 = vector.extract_strided_slice %79 {offsets = [0, 8], sizes = [2, 8], strides = [1, 1]} : vector<2x16xf32> to vector<2x8xf32>
    %87 = vector.shape_cast %86 : vector<2x8xf32> to vector<1x2x8xf32>
    %c3_i32_39 = arith.constant 3 : i32
    %88 = arith.subi %c3_i32_39, %c1_i32 : i32
    %89 = arith.index_cast %88 : i32 to index
    %c0_40 = arith.constant 0 : index
    %c8_41 = arith.constant 8 : index
    %90 = vector.load %arg3[%89, %c0_40, %c8_41] : memref<4x2x16xf32, #tpu.memory_space<vmem>>, vector<1x2x8xf32>
    tpu.vector_store %arg3[%89, %c0_40, %c8_41], %87 {strides = array<i32>} : memref<4x2x16xf32, #tpu.memory_space<vmem>>, vector<1x2x8xf32>,
    %c2_i32 = arith.constant 2 : i32
    %91 = arith.index_cast %c2_i32 : i32 to index
    %c0_42 = arith.constant 0 : index
    %c0_43 = arith.constant 0 : index
    %92 = vector.load %arg1[%91, %c0_42, %c0_43] : memref<4x2x64xf32, #tpu.memory_space<vmem>>, vector<1x2x64xf32>
    %93 = vector.shape_cast %92 : vector<1x2x64xf32> to vector<2x64xf32>
    %c0_44 = arith.constant 0 : index
    %c0_45 = arith.constant 0 : index
    %94 = vector.load %arg4[%c0_44, %c0_45] : memref<2x16xf32, #tpu.memory_space<vmem>>, vector<2x16xf32>
    %cst_46 = arith.constant dense<0.000000e+00> : vector<2x64xf32>
    %95 = tpu.matmul %94, %4, %cst_46 {dimension_numbers = #tpu.dot_dimension_numbers<[1], [0], [0], [1], [0, 0, 1, 1], [], []>} : vector<2x16xf32>, vector<16x64xf32>, vector<2x64xf32> -> vector<2x64xf32>
    %96 = arith.addf %93, %95 : vector<2x64xf32>
    %97 = vector.extract_strided_slice %96 {offsets = [0, 0], sizes = [2, 16], strides = [1, 1]} : vector<2x64xf32> to vector<2x16xf32>
    %98 = arith.negf %97 : vector<2x16xf32>
    %99 = math.exp %98 : vector<2x16xf32>
    %cst_47 = arith.constant 1.000000e+00 : f32
    %100 = vector.broadcast %cst_47 : f32 to vector<2x16xf32>
    %101 = arith.addf %100, %99 : vector<2x16xf32>
    %102 = arith.divf %100, %101 : vector<2x16xf32>
    %103 = vector.extract_strided_slice %96 {offsets = [0, 16], sizes = [2, 16], strides = [1, 1]} : vector<2x64xf32> to vector<2x16xf32>
    %104 = arith.negf %103 : vector<2x16xf32>
    %105 = math.exp %104 : vector<2x16xf32>
    %cst_48 = arith.constant 1.000000e+00 : f32
    %106 = vector.broadcast %cst_48 : f32 to vector<2x16xf32>
    %107 = arith.addf %106, %105 : vector<2x16xf32>
    %108 = arith.divf %106, %107 : vector<2x16xf32>
    %109 = vector.extract_strided_slice %96 {offsets = [0, 32], sizes = [2, 16], strides = [1, 1]} : vector<2x64xf32> to vector<2x16xf32>
    %110 = math.tanh %109 : vector<2x16xf32>
    %111 = vector.extract_strided_slice %96 {offsets = [0, 48], sizes = [2, 16], strides = [1, 1]} : vector<2x64xf32> to vector<2x16xf32>
    %112 = arith.negf %111 : vector<2x16xf32>
    %113 = math.exp %112 : vector<2x16xf32>
    %cst_49 = arith.constant 1.000000e+00 : f32
    %114 = vector.broadcast %cst_49 : f32 to vector<2x16xf32>
    %115 = arith.addf %114, %113 : vector<2x16xf32>
    %116 = arith.divf %114, %115 : vector<2x16xf32>
    %c0_50 = arith.constant 0 : index
    %c0_51 = arith.constant 0 : index
    %117 = vector.load %arg5[%c0_50, %c0_51] : memref<2x16xf32, #tpu.memory_space<vmem>>, vector<2x16xf32>
    %118 = arith.mulf %108, %117 : vector<2x16xf32>
    %119 = arith.mulf %102, %110 : vector<2x16xf32>
    %120 = arith.addf %118, %119 : vector<2x16xf32>
    %121 = math.tanh %120 : vector<2x16xf32>
    %122 = arith.mulf %116, %121 : vector<2x16xf32>
    %c0_52 = arith.constant 0 : index
    %c0_53 = arith.constant 0 : index
    %123 = vector.load %arg5[%c0_52, %c0_53] : memref<2x16xf32, #tpu.memory_space<vmem>>, vector<2x16xf32>
    tpu.vector_store %arg5[%c0_52, %c0_53], %120 {strides = array<i32>} : memref<2x16xf32, #tpu.memory_space<vmem>>, vector<2x16xf32>,
    %c0_54 = arith.constant 0 : index
    %c0_55 = arith.constant 0 : index
    %124 = vector.load %arg4[%c0_54, %c0_55] : memref<2x16xf32, #tpu.memory_space<vmem>>, vector<2x16xf32>
    tpu.vector_store %arg4[%c0_54, %c0_55], %122 {strides = array<i32>} : memref<2x16xf32, #tpu.memory_space<vmem>>, vector<2x16xf32>,
    %125 = vector.extract_strided_slice %122 {offsets = [0, 0], sizes = [2, 8], strides = [1, 1]} : vector<2x16xf32> to vector<2x8xf32>
    %126 = vector.shape_cast %125 : vector<2x8xf32> to vector<1x2x8xf32>
    %127 = arith.index_cast %c2_i32 : i32 to index
    %c0_56 = arith.constant 0 : index
    %c0_57 = arith.constant 0 : index
    %128 = vector.load %arg3[%127, %c0_56, %c0_57] : memref<4x2x16xf32, #tpu.memory_space<vmem>>, vector<1x2x8xf32>
    tpu.vector_store %arg3[%127, %c0_56, %c0_57], %126 {strides = array<i32>} : memref<4x2x16xf32, #tpu.memory_space<vmem>>, vector<1x2x8xf32>,
    %129 = vector.extract_strided_slice %122 {offsets = [0, 8], sizes = [2, 8], strides = [1, 1]} : vector<2x16xf32> to vector<2x8xf32>
    %130 = vector.shape_cast %129 : vector<2x8xf32> to vector<1x2x8xf32>
    %c3_i32_58 = arith.constant 3 : i32
    %131 = arith.subi %c3_i32_58, %c2_i32 : i32
    %132 = arith.index_cast %131 : i32 to index
    %c0_59 = arith.constant 0 : index
    %c8_60 = arith.constant 8 : index
    %133 = vector.load %arg3[%132, %c0_59, %c8_60] : memref<4x2x16xf32, #tpu.memory_space<vmem>>, vector<1x2x8xf32>
    tpu.vector_store %arg3[%132, %c0_59, %c8_60], %130 {strides = array<i32>} : memref<4x2x16xf32, #tpu.memory_space<vmem>>, vector<1x2x8xf32>,
    %c3_i32_61 = arith.constant 3 : i32
    %134 = arith.index_cast %c3_i32_61 : i32 to index
    %c0_62 = arith.constant 0 : index
    %c0_63 = arith.constant 0 : index
    %135 = vector.load %arg1[%134, %c0_62, %c0_63] : memref<4x2x64xf32, #tpu.memory_space<vmem>>, vector<1x2x64xf32>
    %136 = vector.shape_cast %135 : vector<1x2x64xf32> to vector<2x64xf32>
    %c0_64 = arith.constant 0 : index
    %c0_65 = arith.constant 0 : index
    %137 = vector.load %arg4[%c0_64, %c0_65] : memref<2x16xf32, #tpu.memory_space<vmem>>, vector<2x16xf32>
    %cst_66 = arith.constant dense<0.000000e+00> : vector<2x64xf32>
    %138 = tpu.matmul %137, %4, %cst_66 {dimension_numbers = #tpu.dot_dimension_numbers<[1], [0], [0], [1], [0, 0, 1, 1], [], []>} : vector<2x16xf32>, vector<16x64xf32>, vector<2x64xf32> -> vector<2x64xf32>
    %139 = arith.addf %136, %138 : vector<2x64xf32>
    %140 = vector.extract_strided_slice %139 {offsets = [0, 0], sizes = [2, 16], strides = [1, 1]} : vector<2x64xf32> to vector<2x16xf32>
    %141 = arith.negf %140 : vector<2x16xf32>
    %142 = math.exp %141 : vector<2x16xf32>
    %cst_67 = arith.constant 1.000000e+00 : f32
    %143 = vector.broadcast %cst_67 : f32 to vector<2x16xf32>
    %144 = arith.addf %143, %142 : vector<2x16xf32>
    %145 = arith.divf %143, %144 : vector<2x16xf32>
    %146 = vector.extract_strided_slice %139 {offsets = [0, 16], sizes = [2, 16], strides = [1, 1]} : vector<2x64xf32> to vector<2x16xf32>
    %147 = arith.negf %146 : vector<2x16xf32>
    %148 = math.exp %147 : vector<2x16xf32>
    %cst_68 = arith.constant 1.000000e+00 : f32
    %149 = vector.broadcast %cst_68 : f32 to vector<2x16xf32>
    %150 = arith.addf %149, %148 : vector<2x16xf32>
    %151 = arith.divf %149, %150 : vector<2x16xf32>
    %152 = vector.extract_strided_slice %139 {offsets = [0, 32], sizes = [2, 16], strides = [1, 1]} : vector<2x64xf32> to vector<2x16xf32>
    %153 = math.tanh %152 : vector<2x16xf32>
    %154 = vector.extract_strided_slice %139 {offsets = [0, 48], sizes = [2, 16], strides = [1, 1]} : vector<2x64xf32> to vector<2x16xf32>
    %155 = arith.negf %154 : vector<2x16xf32>
    %156 = math.exp %155 : vector<2x16xf32>
    %cst_69 = arith.constant 1.000000e+00 : f32
    %157 = vector.broadcast %cst_69 : f32 to vector<2x16xf32>
    %158 = arith.addf %157, %156 : vector<2x16xf32>
    %159 = arith.divf %157, %158 : vector<2x16xf32>
    %c0_70 = arith.constant 0 : index
    %c0_71 = arith.constant 0 : index
    %160 = vector.load %arg5[%c0_70, %c0_71] : memref<2x16xf32, #tpu.memory_space<vmem>>, vector<2x16xf32>
    %161 = arith.mulf %151, %160 : vector<2x16xf32>
    %162 = arith.mulf %145, %153 : vector<2x16xf32>
    %163 = arith.addf %161, %162 : vector<2x16xf32>
    %164 = math.tanh %163 : vector<2x16xf32>
    %165 = arith.mulf %159, %164 : vector<2x16xf32>
    %c0_72 = arith.constant 0 : index
    %c0_73 = arith.constant 0 : index
    %166 = vector.load %arg5[%c0_72, %c0_73] : memref<2x16xf32, #tpu.memory_space<vmem>>, vector<2x16xf32>
    tpu.vector_store %arg5[%c0_72, %c0_73], %163 {strides = array<i32>} : memref<2x16xf32, #tpu.memory_space<vmem>>, vector<2x16xf32>,
    %c0_74 = arith.constant 0 : index
    %c0_75 = arith.constant 0 : index
    %167 = vector.load %arg4[%c0_74, %c0_75] : memref<2x16xf32, #tpu.memory_space<vmem>>, vector<2x16xf32>
    tpu.vector_store %arg4[%c0_74, %c0_75], %165 {strides = array<i32>} : memref<2x16xf32, #tpu.memory_space<vmem>>, vector<2x16xf32>,
    %168 = vector.extract_strided_slice %165 {offsets = [0, 0], sizes = [2, 8], strides = [1, 1]} : vector<2x16xf32> to vector<2x8xf32>
    %169 = vector.shape_cast %168 : vector<2x8xf32> to vector<1x2x8xf32>
    %170 = arith.index_cast %c3_i32_61 : i32 to index
    %c0_76 = arith.constant 0 : index
    %c0_77 = arith.constant 0 : index
    %171 = vector.load %arg3[%170, %c0_76, %c0_77] : memref<4x2x16xf32, #tpu.memory_space<vmem>>, vector<1x2x8xf32>
    tpu.vector_store %arg3[%170, %c0_76, %c0_77], %169 {strides = array<i32>} : memref<4x2x16xf32, #tpu.memory_space<vmem>>, vector<1x2x8xf32>,
    %172 = vector.extract_strided_slice %165 {offsets = [0, 8], sizes = [2, 8], strides = [1, 1]} : vector<2x16xf32> to vector<2x8xf32>
    %173 = vector.shape_cast %172 : vector<2x8xf32> to vector<1x2x8xf32>
    %c3_i32_78 = arith.constant 3 : i32
    %174 = arith.subi %c3_i32_78, %c3_i32_61 : i32
    %175 = arith.index_cast %174 : i32 to index
    %c0_79 = arith.constant 0 : index
    %c8_80 = arith.constant 8 : index
    %176 = vector.load %arg3[%175, %c0_79, %c8_80] : memref<4x2x16xf32, #tpu.memory_space<vmem>>, vector<1x2x8xf32>
    tpu.vector_store %arg3[%175, %c0_79, %c8_80], %173 {strides = array<i32>} : memref<4x2x16xf32, #tpu.memory_space<vmem>>, vector<1x2x8xf32>,
    %c4_i32 = arith.constant 4 : i32
    return
  }
  func.func @transform_0(%arg0: i32) -> (i32, i32, i32) {
    %c0_i32 = arith.constant 0 : i32
    %c0_i32_0 = arith.constant 0 : i32
    %c0_i32_1 = arith.constant 0 : i32
    return %c0_i32, %arg0, %c0_i32_0 : i32, i32, i32
  }
  func.func @transform_1(%arg0: i32) -> (i32, i32) {
    %c0_i32 = arith.constant 0 : i32
    %c0_i32_0 = arith.constant 0 : i32
    %c0_i32_1 = arith.constant 0 : i32
    return %c0_i32, %c0_i32_0 : i32, i32
  }
  func.func @transform_2(%arg0: i32) -> (i32, i32, i32) {
    %c0_i32 = arith.constant 0 : i32
    %c0_i32_0 = arith.constant 0 : i32
    %c0_i32_1 = arith.constant 0 : i32
    return %c0_i32, %arg0, %c0_i32_0 : i32, i32, i32
  }
}

</mosaic_0001>

<llo_original>
// kernel: listener_forward.5
$region0: #{listener_forward.5}
  #allocation0 [shape = 'u32[]', space=smem, size = 0x4, offset = 0x4, fixed_abs, tag = 'smem constant byte address 0x4 - core index']
  #allocation1 [shape = 'u32[144,128]{1,0:T(1,128)}', space=vmem, size = 0x12000, scoped, tag = 'internal scratch']
  #allocation2 [shape = 'f32[2,16]{1,0:T(2,128)}', space=vmem, size = 0x400, scoped, tag = 'scratch operand']
  #allocation3 [shape = 'f32[2,16]{1,0:T(2,128)}', space=vmem, size = 0x400, scoped, tag = 'scratch operand']
  %s0 = inlined_call_operand.vmem [shape: f32[4,2,64], index: 0, kind: input, shape index: {}]
  %s1 = inlined_call_operand.vmem [shape: f32[16,64], index: 1, kind: input, shape index: {}]
  %s2 = inlined_call_operand.vmem [shape: f32[4,2,16], index: 2, kind: output, shape index: {}]
  %s3 = sld [smem:[#allocation0]]
  $region18: #{listener_forward.5} parent=0
    _
  %s5 = ssub.s32 1, %s3
  %s6 = scalar_select 0, %s5, %s3
  // Predicated region
  $region2: #{listener_forward.5} parent=0 // pred_check
    _
  $region3: #{listener_forward.5} parent=0 // pred_check_branch
    %8 = sbr.rel (0) target = $region5
  $region4: #{listener_forward.5} parent=0 // pred_region
    _
  $region5: #{listener_forward.5} parent=0 // pred_fallthru
    _
  // Predicated region
  $region6: #{listener_forward.5} parent=0 // pred_check
    _
  $region7: #{listener_forward.5} parent=0 // pred_check_branch
    %10 = sbr.rel (0) target = $region9
  $region8: #{listener_forward.5} parent=0 // pred_region
    _
  $region9: #{listener_forward.5} parent=0 // pred_fallthru
    _
  %vm11 = vcmask 123904
  %12 = vst.msk [vmem:[#allocation2] sm:$0x3] %vm11, 0.0
  %13 = vst.msk [vmem:[#allocation3] sm:$0x3] %vm11, 0.0
  %v14 = vld [vmem:[%s1] sm:$0xff]
  %v15 = vld [vmem:[%s1 + $0x8] sm:$0xff]
  %v16 = vld [vmem:[%s0] sm:$0x3]
  %v17 = vld [vmem:[#allocation2] sm:$0x3]
  %vm18 = vcmask 130048
  %v20 = vsel %vm18, %v17, 0
  %22 = vmatprep.subr.mxu0 0.0
  %23 = vmatpush1.msra.mxu0 0.0
  %24 = vmatprep.subr.mxu0 0.0
  %25 = vmatpush1.msra.mxu0 0.0
  %26 = vmatprep.subr.mxu0 0.0
  %27 = vmatpush1.msra.mxu0 0.0
  %28 = vmatprep.subr.mxu0 0.0
  %29 = vmatpush1.msra.mxu0 0.0
  %30 = vmatprep.subr.mxu0 0.0
  %31 = vmatpush1.msra.mxu0 0.0
  %32 = vmatprep.subr.mxu0 0.0
  %33 = vmatpush1.msra.mxu0 0.0
  %34 = vmatprep.subr.mxu0 0.0
  %35 = vmatpush1.msra.mxu0 0.0
  %36 = vmatprep.subr.mxu0 0.0
  %37 = vmatpush1.msra.mxu0 0.0
  %38 = vmatprep.subr.mxu0 0.0
  %39 = vmatpush1.msra.mxu0 0.0
  %40 = vmatprep.subr.mxu0 0.0
  %41 = vmatpush1.msra.mxu0 0.0
  %42 = vmatprep.subr.mxu0 0.0
  %43 = vmatpush1.msra.mxu0 0.0
  %44 = vmatprep.subr.mxu0 0.0
  %45 = vmatpush1.msra.mxu0 0.0
  %46 = vmatprep.subr.mxu0 0.0
  %47 = vmatpush1.msra.mxu0 0.0
  %48 = vmatprep.subr.mxu0 0.0
  %49 = vmatpush1.msra.mxu0 0.0
  %50 = vmatprep.subr.mxu0 0.0
  %51 = vmatpush1.msra.mxu0 %v15
  %52 = vmatprep.subr.mxu0 0.0
  %53 = vmatpush1.msra.mxu0 %v14
  %54 = vmatprep.subr.mxu0 0.0
  %55 = vmatpush2.msra.mxu0 0.0
  %56 = vmatprep.subr.mxu0 0.0
  %57 = vmatpush2.msra.mxu0 0.0
  %58 = vmatprep.subr.mxu0 0.0
  %59 = vmatpush2.msra.mxu0 0.0
  %60 = vmatprep.subr.mxu0 0.0
  %61 = vmatpush2.msra.mxu0 0.0
  %62 = vmatprep.subr.mxu0 0.0
  %63 = vmatpush2.msra.mxu0 0.0
  %64 = vmatprep.subr.mxu0 0.0
  %65 = vmatpush2.msra.mxu0 0.0
  %66 = vmatprep.subr.mxu0 0.0
  %67 = vmatpush2.msra.mxu0 0.0
  %68 = vmatprep.subr.mxu0 0.0
  %69 = vmatpush2.msra.mxu0 0.0
  %70 = vmatprep.subr.mxu0 0.0
  %71 = vmatpush2.msra.mxu0 0.0
  %72 = vmatprep.subr.mxu0 0.0
  %73 = vmatpush2.msra.mxu0 0.0
  %74 = vmatprep.subr.mxu0 0.0
  %75 = vmatpush2.msra.mxu0 0.0
  %76 = vmatprep.subr.mxu0 0.0
  %77 = vmatpush2.msra.mxu0 0.0
  %78 = vmatprep.subr.mxu0 0.0
  %79 = vmatpush2.msra.mxu0 0.0
  %80 = vmatprep.subr.mxu0 0.0
  %81 = vmatpush2.msra.mxu0 0.0
  %82 = vmatprep.subr.mxu0 0.0
  %83 = vmatpush2.msra.mxu0 0.0
  %84 = vmatprep.subr.mxu0 0.0
  %85 = vmatpush2.msra.mxu0 0.0
  %86 = vmatprep.mubr.f32.mxu0 0.0
  %87 = vmatmul.mubr.f32.gmra.mxu0 %v20
  %v88 = vpop.f32.mrf.mxu0
  %v89 = vadd.f32 0.0, %v88
  %v90 = vpop.f32.mrf.mxu0
  %91 = vdwg.mxu0
  %v92 = vadd.f32 %v16, %v89
  %v93 = vxor.u32 %v92, 2147483648
  %v94 = vmul.f32 %v93, 1.442695
  %v95 = vpow.pop %v94
  %v96 = vadd.f32 %v95, 1.0
  %v97 = vrcp.pop %v96
  %v98 = vmul.f32 1.0, %v97
  %v99 = vtanh.pop %v92
  %v100 = vld [vmem:[#allocation3] sm:$0x3]
  %102 = vrot.lane.b32.xlu0 %v100, 16
  %v103 = vpop.permute.xlu0 %102
  %v105 = vmul.f32 %v98, %v103
  %107 = vrot.lane.b32.xlu0 %v99, 96
  %v108 = vpop.permute.xlu0 %107
  %v110 = vmul.f32 %v98, %v108
  %112 = vrot.lane.b32.xlu0 %v110, 16
  %v113 = vpop.permute.xlu0 %112
  %v115 = vadd.f32 %v105, %v113
  %v116 = vtanh.pop %v115
  %118 = vrot.lane.b32.xlu0 %v116, 32
  %v119 = vpop.permute.xlu0 %118
  %v121 = vmul.f32 %v98, %v119
  %123 = vrot.lane.b32.xlu0 %v115, 112
  %v124 = vpop.permute.xlu0 %123
  %126 = vst.msk [vmem:[#allocation3] sm:$0x3] %vm11, %v124
  %128 = vrot.lane.b32.xlu0 %v121, 80
  %v129 = vpop.permute.xlu0 %128
  %131 = vst.msk [vmem:[#allocation2] sm:$0x3] %vm11, %v129
  %vm132 = vcmask 58368
  %133 = vst.msk [vmem:[%s2] sm:$0x3] %vm132, %v129
  %s134 = scalar_lea.vmem %s2, 6
  %vm135 = vcmask 123968
  %136 = vst.msk [vmem:[%s134] sm:$0x3] %vm135, %v129
  %s137 = scalar_lea.vmem %s0, 2
  %v138 = vld [vmem:[%s137] sm:$0x3]
  %v139 = vld [vmem:[#allocation2] sm:$0x3]
  %v141 = vsel %vm18, %v139, 0
  %143 = vmatprep.subr.mxu0 0.0
  %144 = vmatpush1.msra.mxu0 0.0
  %145 = vmatprep.subr.mxu0 0.0
  %146 = vmatpush1.msra.mxu0 0.0
  %147 = vmatprep.subr.mxu0 0.0
  %148 = vmatpush1.msra.mxu0 0.0
  %149 = vmatprep.subr.mxu0 0.0
  %150 = vmatpush1.msra.mxu0 0.0
  %151 = vmatprep.subr.mxu0 0.0
  %152 = vmatpush1.msra.mxu0 0.0
  %153 = vmatprep.subr.mxu0 0.0
  %154 = vmatpush1.msra.mxu0 0.0
  %155 = vmatprep.subr.mxu0 0.0
  %156 = vmatpush1.msra.mxu0 0.0
  %157 = vmatprep.subr.mxu0 0.0
  %158 = vmatpush1.msra.mxu0 0.0
  %159 = vmatprep.subr.mxu0 0.0
  %160 = vmatpush1.msra.mxu0 0.0
  %161 = vmatprep.subr.mxu0 0.0
  %162 = vmatpush1.msra.mxu0 0.0
  %163 = vmatprep.subr.mxu0 0.0
  %164 = vmatpush1.msra.mxu0 0.0
  %165 = vmatprep.subr.mxu0 0.0
  %166 = vmatpush1.msra.mxu0 0.0
  %167 = vmatprep.subr.mxu0 0.0
  %168 = vmatpush1.msra.mxu0 0.0
  %169 = vmatprep.subr.mxu0 0.0
  %170 = vmatpush1.msra.mxu0 0.0
  %171 = vmatprep.subr.mxu0 0.0
  %172 = vmatpush1.msra.mxu0 %v15
  %173 = vmatprep.subr.mxu0 0.0
  %174 = vmatpush1.msra.mxu0 %v14
  %175 = vmatprep.subr.mxu0 0.0
  %176 = vmatpush2.msra.mxu0 0.0
  %177 = vmatprep.subr.mxu0 0.0
  %178 = vmatpush2.msra.mxu0 0.0
  %179 = vmatprep.subr.mxu0 0.0
  %180 = vmatpush2.msra.mxu0 0.0
  %181 = vmatprep.subr.mxu0 0.0
  %182 = vmatpush2.msra.mxu0 0.0
  %183 = vmatprep.subr.mxu0 0.0
  %184 = vmatpush2.msra.mxu0 0.0
  %185 = vmatprep.subr.mxu0 0.0
  %186 = vmatpush2.msra.mxu0 0.0
  %187 = vmatprep.subr.mxu0 0.0
  %188 = vmatpush2.msra.mxu0 0.0
  %189 = vmatprep.subr.mxu0 0.0
  %190 = vmatpush2.msra.mxu0 0.0
  %191 = vmatprep.subr.mxu0 0.0
  %192 = vmatpush2.msra.mxu0 0.0
  %193 = vmatprep.subr.mxu0 0.0
  %194 = vmatpush2.msra.mxu0 0.0
  %195 = vmatprep.subr.mxu0 0.0
  %196 = vmatpush2.msra.mxu0 0.0
  %197 = vmatprep.subr.mxu0 0.0
  %198 = vmatpush2.msra.mxu0 0.0
  %199 = vmatprep.subr.mxu0 0.0
  %200 = vmatpush2.msra.mxu0 0.0
  %201 = vmatprep.subr.mxu0 0.0
  %202 = vmatpush2.msra.mxu0 0.0
  %203 = vmatprep.subr.mxu0 0.0
  %204 = vmatpush2.msra.mxu0 0.0
  %205 = vmatprep.subr.mxu0 0.0
  %206 = vmatpush2.msra.mxu0 0.0
  %207 = vmatprep.mubr.f32.mxu0 0.0
  %208 = vmatmul.mubr.f32.gmra.mxu0 %v141
  %v209 = vpop.f32.mrf.mxu0
  %v210 = vadd.f32 0.0, %v209
  %v211 = vpop.f32.mrf.mxu0
  %212 = vdwg.mxu0
  %v213 = vadd.f32 %v138, %v210
  %v214 = vxor.u32 %v213, 2147483648
  %v215 = vmul.f32 %v214, 1.442695
  %v216 = vpow.pop %v215
  %v217 = vadd.f32 %v216, 1.0
  %v218 = vrcp.pop %v217
  %v219 = vmul.f32 1.0, %v218
  %v220 = vtanh.pop %v213
  %v221 = vld [vmem:[#allocation3] sm:$0x3]
  %223 = vrot.lane.b32.xlu0 %v221, 16
  %v224 = vpop.permute.xlu0 %223
  %v226 = vmul.f32 %v219, %v224
  %228 = vrot.lane.b32.xlu0 %v220, 96
  %v229 = vpop.permute.xlu0 %228
  %v231 = vmul.f32 %v219, %v229
  %233 = vrot.lane.b32.xlu0 %v231, 16
  %v234 = vpop.permute.xlu0 %233
  %v236 = vadd.f32 %v226, %v234
  %v237 = vtanh.pop %v236
  %239 = vrot.lane.b32.xlu0 %v237, 32
  %v240 = vpop.permute.xlu0 %239
  %v242 = vmul.f32 %v219, %v240
  %244 = vrot.lane.b32.xlu0 %v236, 112
  %v245 = vpop.permute.xlu0 %244
  %247 = vst.msk [vmem:[#allocation3] sm:$0x3] %vm11, %v245
  %249 = vrot.lane.b32.xlu0 %v242, 80
  %v250 = vpop.permute.xlu0 %249
  %252 = vst.msk [vmem:[#allocation2] sm:$0x3] %vm11, %v250
  %s253 = scalar_lea.vmem %s2, 2
  %254 = vst.msk [vmem:[%s253] sm:$0x3] %vm132, %v250
  %s255 = scalar_lea.vmem %s2, 4
  %256 = vst.msk [vmem:[%s255] sm:$0x3] %vm135, %v250
  %s257 = scalar_lea.vmem %s0, 4
  %v258 = vld [vmem:[%s257] sm:$0x3]
  %v259 = vld [vmem:[#allocation2] sm:$0x3]
  %v261 = vsel %vm18, %v259, 0
  %263 = vmatprep.subr.mxu0 0.0
  %264 = vmatpush1.msra.mxu0 0.0
  %265 = vmatprep.subr.mxu0 0.0
  %266 = vmatpush1.msra.mxu0 0.0
  %267 = vmatprep.subr.mxu0 0.0
  %268 = vmatpush1.msra.mxu0 0.0
  %269 = vmatprep.subr.mxu0 0.0
  %270 = vmatpush1.msra.mxu0 0.0
  %271 = vmatprep.subr.mxu0 0.0
  %272 = vmatpush1.msra.mxu0 0.0
  %273 = vmatprep.subr.mxu0 0.0
  %274 = vmatpush1.msra.mxu0 0.0
  %275 = vmatprep.subr.mxu0 0.0
  %276 = vmatpush1.msra.mxu0 0.0
  %277 = vmatprep.subr.mxu0 0.0
  %278 = vmatpush1.msra.mxu0 0.0
  %279 = vmatprep.subr.mxu0 0.0
  %280 = vmatpush1.msra.mxu0 0.0
  %281 = vmatprep.subr.mxu0 0.0
  %282 = vmatpush1.msra.mxu0 0.0
  %283 = vmatprep.subr.mxu0 0.0
  %284 = vmatpush1.msra.mxu0 0.0
  %285 = vmatprep.subr.mxu0 0.0
  %286 = vmatpush1.msra.mxu0 0.0
  %287 = vmatprep.subr.mxu0 0.0
  %288 = vmatpush1.msra.mxu0 0.0
  %289 = vmatprep.subr.mxu0 0.0
  %290 = vmatpush1.msra.mxu0 0.0
  %291 = vmatprep.subr.mxu0 0.0
  %292 = vmatpush1.msra.mxu0 %v15
  %293 = vmatprep.subr.mxu0 0.0
  %294 = vmatpush1.msra.mxu0 %v14
  %295 = vmatprep.subr.mxu0 0.0
  %296 = vmatpush2.msra.mxu0 0.0
  %297 = vmatprep.subr.mxu0 0.0
  %298 = vmatpush2.msra.mxu0 0.0
  %299 = vmatprep.subr.mxu0 0.0
  %300 = vmatpush2.msra.mxu0 0.0
  %301 = vmatprep.subr.mxu0 0.0
  %302 = vmatpush2.msra.mxu0 0.0
  %303 = vmatprep.subr.mxu0 0.0
  %304 = vmatpush2.msra.mxu0 0.0
  %305 = vmatprep.subr.mxu0 0.0
  %306 = vmatpush2.msra.mxu0 0.0
  %307 = vmatprep.subr.mxu0 0.0
  %308 = vmatpush2.msra.mxu0 0.0
  %309 = vmatprep.subr.mxu0 0.0
  %310 = vmatpush2.msra.mxu0 0.0
  %311 = vmatprep.subr.mxu0 0.0
  %312 = vmatpush2.msra.mxu0 0.0
  %313 = vmatprep.subr.mxu0 0.0
  %314 = vmatpush2.msra.mxu0 0.0
  %315 = vmatprep.subr.mxu0 0.0
  %316 = vmatpush2.msra.mxu0 0.0
  %317 = vmatprep.subr.mxu0 0.0
  %318 = vmatpush2.msra.mxu0 0.0
  %319 = vmatprep.subr.mxu0 0.0
  %320 = vmatpush2.msra.mxu0 0.0
  %321 = vmatprep.subr.mxu0 0.0
  %322 = vmatpush2.msra.mxu0 0.0
  %323 = vmatprep.subr.mxu0 0.0
  %324 = vmatpush2.msra.mxu0 0.0
  %325 = vmatprep.subr.mxu0 0.0
  %326 = vmatpush2.msra.mxu0 0.0
  %327 = vmatprep.mubr.f32.mxu0 0.0
  %328 = vmatmul.mubr.f32.gmra.mxu0 %v261
  %v329 = vpop.f32.mrf.mxu0
  %v330 = vadd.f32 0.0, %v329
  %v331 = vpop.f32.mrf.mxu0
  %332 = vdwg.mxu0
  %v333 = vadd.f32 %v258, %v330
  %v334 = vxor.u32 %v333, 2147483648
  %v335 = vmul.f32 %v334, 1.442695
  %v336 = vpow.pop %v335
  %v337 = vadd.f32 %v336, 1.0
  %v338 = vrcp.pop %v337
  %v339 = vmul.f32 1.0, %v338
  %v340 = vtanh.pop %v333
  %v341 = vld [vmem:[#allocation3] sm:$0x3]
  %343 = vrot.lane.b32.xlu0 %v341, 16
  %v344 = vpop.permute.xlu0 %343
  %v346 = vmul.f32 %v339, %v344
  %348 = vrot.lane.b32.xlu0 %v340, 96
  %v349 = vpop.permute.xlu0 %348
  %v351 = vmul.f32 %v339, %v349
  %353 = vrot.lane.b32.xlu0 %v351, 16
  %v354 = vpop.permute.xlu0 %353
  %v356 = vadd.f32 %v346, %v354
  %v357 = vtanh.pop %v356
  %359 = vrot.lane.b32.xlu0 %v357, 32
  %v360 = vpop.permute.xlu0 %359
  %v362 = vmul.f32 %v339, %v360
  %364 = vrot.lane.b32.xlu0 %v356, 112
  %v365 = vpop.permute.xlu0 %364
  %367 = vst.msk [vmem:[#allocation3] sm:$0x3] %vm11, %v365
  %369 = vrot.lane.b32.xlu0 %v362, 80
  %v370 = vpop.permute.xlu0 %369
  %372 = vst.msk [vmem:[#allocation2] sm:$0x3] %vm11, %v370
  %373 = vst.msk [vmem:[%s255] sm:$0x3] %vm132, %v370
  %374 = vst.msk [vmem:[%s253] sm:$0x3] %vm135, %v370
  %s375 = scalar_lea.vmem %s0, 6
  %v376 = vld [vmem:[%s375] sm:$0x3]
  %v377 = vld [vmem:[#allocation2] sm:$0x3]
  %v379 = vsel %vm18, %v377, 0
  %381 = vmatprep.subr.mxu0 0.0
  %382 = vmatpush1.msra.mxu0 0.0
  %383 = vmatprep.subr.mxu0 0.0
  %384 = vmatpush1.msra.mxu0 0.0
  %385 = vmatprep.subr.mxu0 0.0
  %386 = vmatpush1.msra.mxu0 0.0
  %387 = vmatprep.subr.mxu0 0.0
  %388 = vmatpush1.msra.mxu0 0.0
  %389 = vmatprep.subr.mxu0 0.0
  %390 = vmatpush1.msra.mxu0 0.0
  %391 = vmatprep.subr.mxu0 0.0
  %392 = vmatpush1.msra.mxu0 0.0
  %393 = vmatprep.subr.mxu0 0.0
  %394 = vmatpush1.msra.mxu0 0.0
  %395 = vmatprep.subr.mxu0 0.0
  %396 = vmatpush1.msra.mxu0 0.0
  %397 = vmatprep.subr.mxu0 0.0
  %398 = vmatpush1.msra.mxu0 0.0
  %399 = vmatprep.subr.mxu0 0.0
  %400 = vmatpush1.msra.mxu0 0.0
  %401 = vmatprep.subr.mxu0 0.0
  %402 = vmatpush1.msra.mxu0 0.0
  %403 = vmatprep.subr.mxu0 0.0
  %404 = vmatpush1.msra.mxu0 0.0
  %405 = vmatprep.subr.mxu0 0.0
  %406 = vmatpush1.msra.mxu0 0.0
  %407 = vmatprep.subr.mxu0 0.0
  %408 = vmatpush1.msra.mxu0 0.0
  %409 = vmatprep.subr.mxu0 0.0
  %410 = vmatpush1.msra.mxu0 %v15
  %411 = vmatprep.subr.mxu0 0.0
  %412 = vmatpush1.msra.mxu0 %v14
  %413 = vmatprep.subr.mxu0 0.0
  %414 = vmatpush2.msra.mxu0 0.0
  %415 = vmatprep.subr.mxu0 0.0
  %416 = vmatpush2.msra.mxu0 0.0
  %417 = vmatprep.subr.mxu0 0.0
  %418 = vmatpush2.msra.mxu0 0.0
  %419 = vmatprep.subr.mxu0 0.0
  %420 = vmatpush2.msra.mxu0 0.0
  %421 = vmatprep.subr.mxu0 0.0
  %422 = vmatpush2.msra.mxu0 0.0
  %423 = vmatprep.subr.mxu0 0.0
  %424 = vmatpush2.msra.mxu0 0.0
  %425 = vmatprep.subr.mxu0 0.0
  %426 = vmatpush2.msra.mxu0 0.0
  %427 = vmatprep.subr.mxu0 0.0
  %428 = vmatpush2.msra.mxu0 0.0
  %429 = vmatprep.subr.mxu0 0.0
  %430 = vmatpush2.msra.mxu0 0.0
  %431 = vmatprep.subr.mxu0 0.0
  %432 = vmatpush2.msra.mxu0 0.0
  %433 = vmatprep.subr.mxu0 0.0
  %434 = vmatpush2.msra.mxu0 0.0
  %435 = vmatprep.subr.mxu0 0.0
  %436 = vmatpush2.msra.mxu0 0.0
  %437 = vmatprep.subr.mxu0 0.0
  %438 = vmatpush2.msra.mxu0 0.0
  %439 = vmatprep.subr.mxu0 0.0
  %440 = vmatpush2.msra.mxu0 0.0
  %441 = vmatprep.subr.mxu0 0.0
  %442 = vmatpush2.msra.mxu0 0.0
  %443 = vmatprep.subr.mxu0 0.0
  %444 = vmatpush2.msra.mxu0 0.0
  %445 = vmatprep.mubr.f32.mxu0 0.0
  %446 = vmatmul.mubr.f32.gmra.mxu0 %v379
  %v447 = vpop.f32.mrf.mxu0
  %v448 = vadd.f32 0.0, %v447
  %v449 = vpop.f32.mrf.mxu0
  %450 = vdwg.mxu0
  %v451 = vadd.f32 %v376, %v448
  %v452 = vxor.u32 %v451, 2147483648
  %v453 = vmul.f32 %v452, 1.442695
  %v454 = vpow.pop %v453
  %v455 = vadd.f32 %v454, 1.0
  %v456 = vrcp.pop %v455
  %v457 = vmul.f32 1.0, %v456
  %v458 = vtanh.pop %v451
  %v459 = vld [vmem:[#allocation3] sm:$0x3]
  %461 = vrot.lane.b32.xlu0 %v459, 16
  %v462 = vpop.permute.xlu0 %461
  %v464 = vmul.f32 %v457, %v462
  %466 = vrot.lane.b32.xlu0 %v458, 96
  %v467 = vpop.permute.xlu0 %466
  %v469 = vmul.f32 %v457, %v467
  %471 = vrot.lane.b32.xlu0 %v469, 16
  %v472 = vpop.permute.xlu0 %471
  %v474 = vadd.f32 %v464, %v472
  %v475 = vtanh.pop %v474
  %477 = vrot.lane.b32.xlu0 %v475, 32
  %v478 = vpop.permute.xlu0 %477
  %v480 = vmul.f32 %v457, %v478
  %482 = vrot.lane.b32.xlu0 %v474, 112
  %v483 = vpop.permute.xlu0 %482
  %485 = vst.msk [vmem:[#allocation3] sm:$0x3] %vm11, %v483
  %487 = vrot.lane.b32.xlu0 %v480, 80
  %v488 = vpop.permute.xlu0 %487
  %490 = vst.msk [vmem:[#allocation2] sm:$0x3] %vm11, %v488
  %491 = vst.msk [vmem:[%s134] sm:$0x3] %vm132, %v488
  %492 = vst.msk [vmem:[%s2] sm:$0x3] %vm135, %v488
  // Predicated region
  $region10: #{listener_forward.5} parent=0 // pred_check
    _
  $region11: #{listener_forward.5} parent=0 // pred_check_branch
    %494 = sbr.rel (0) target = $region13
  $region12: #{listener_forward.5} parent=0 // pred_region
    _
  $region13: #{listener_forward.5} parent=0 // pred_fallthru
    _
  // Predicated region
  $region14: #{listener_forward.5} parent=0 // pred_check
    _
  $region15: #{listener_forward.5} parent=0 // pred_check_branch
    %496 = sbr.rel (0) target = $region17
  $region16: #{listener_forward.5} parent=0 // pred_region
    _
  $region17: #{listener_forward.5} parent=0 // pred_fallthru
    _

// kernel: listener_forward.4
$region0: #{listener_forward.4}
  #allocation0 [shape = 'u32[]', space=smem, size = 0x4, offset = 0x4, fixed_abs, tag = 'smem constant byte address 0x4 - core index']
  #allocation1 [shape = 'u32[144,128]{1,0:T(1,128)}', space=vmem, size = 0x12000, scoped, tag = 'internal scratch']
  #allocation2 [shape = 'f32[2,16]{1,0:T(2,128)}', space=vmem, size = 0x400, scoped, tag = 'scratch operand']
  #allocation3 [shape = 'f32[2,16]{1,0:T(2,128)}', space=vmem, size = 0x400, scoped, tag = 'scratch operand']
  %s0 = inlined_call_operand.vmem [shape: f32[8,2,64], index: 0, kind: input, shape index: {}]
  %s1 = inlined_call_operand.vmem [shape: f32[16,64], index: 1, kind: input, shape index: {}]
  %s2 = inlined_call_operand.vmem [shape: f32[8,2,16], index: 2, kind: output, shape index: {}]
  %s3 = sld [smem:[#allocation0]]
  $region18: #{listener_forward.4} parent=0
    _
  %s5 = ssub.s32 1, %s3
  %s6 = scalar_select 0, %s5, %s3
  // Predicated region
  $region2: #{listener_forward.4} parent=0 // pred_check
    _
  $region3: #{listener_forward.4} parent=0 // pred_check_branch
    %8 = sbr.rel (0) target = $region5
  $region4: #{listener_forward.4} parent=0 // pred_region
    _
  $region5: #{listener_forward.4} parent=0 // pred_fallthru
    _
  // Predicated region
  $region6: #{listener_forward.4} parent=0 // pred_check
    _
  $region7: #{listener_forward.4} parent=0 // pred_check_branch
    %10 = sbr.rel (0) target = $region9
  $region8: #{listener_forward.4} parent=0 // pred_region
    _
  $region9: #{listener_forward.4} parent=0 // pred_fallthru
    _
  %vm11 = vcmask 123904
  %12 = vst.msk [vmem:[#allocation2] sm:$0x3] %vm11, 0.0
  %13 = vst.msk [vmem:[#allocation3] sm:$0x3] %vm11, 0.0
  %v14 = vld [vmem:[%s1] sm:$0xff]
  %v15 = vld [vmem:[%s1 + $0x8] sm:$0xff]
  %v16 = vld [vmem:[%s0] sm:$0x3]
  %v17 = vld [vmem:[#allocation2] sm:$0x3]
  %vm18 = vcmask 130048
  %v20 = vsel %vm18, %v17, 0
  %22 = vmatprep.subr.mxu0 0.0
  %23 = vmatpush1.msra.mxu0 0.0
  %24 = vmatprep.subr.mxu0 0.0
  %25 = vmatpush1.msra.mxu0 0.0
  %26 = vmatprep.subr.mxu0 0.0
  %27 = vmatpush1.msra.mxu0 0.0
  %28 = vmatprep.subr.mxu0 0.0
  %29 = vmatpush1.msra.mxu0 0.0
  %30 = vmatprep.subr.mxu0 0.0
  %31 = vmatpush1.msra.mxu0 0.0
  %32 = vmatprep.subr.mxu0 0.0
  %33 = vmatpush1.msra.mxu0 0.0
  %34 = vmatprep.subr.mxu0 0.0
  %35 = vmatpush1.msra.mxu0 0.0
  %36 = vmatprep.subr.mxu0 0.0
  %37 = vmatpush1.msra.mxu0 0.0
  %38 = vmatprep.subr.mxu0 0.0
  %39 = vmatpush1.msra.mxu0 0.0
  %40 = vmatprep.subr.mxu0 0.0
  %41 = vmatpush1.msra.mxu0 0.0
  %42 = vmatprep.subr.mxu0 0.0
  %43 = vmatpush1.msra.mxu0 0.0
  %44 = vmatprep.subr.mxu0 0.0
  %45 = vmatpush1.msra.mxu0 0.0
  %46 = vmatprep.subr.mxu0 0.0
  %47 = vmatpush1.msra.mxu0 0.0
  %48 = vmatprep.subr.mxu0 0.0
  %49 = vmatpush1.msra.mxu0 0.0
  %50 = vmatprep.subr.mxu0 0.0
  %51 = vmatpush1.msra.mxu0 %v15
  %52 = vmatprep.subr.mxu0 0.0
  %53 = vmatpush1.msra.mxu0 %v14
  %54 = vmatprep.subr.mxu0 0.0
  %55 = vmatpush2.msra.mxu0 0.0
  %56 = vmatprep.subr.mxu0 0.0
  %57 = vmatpush2.msra.mxu0 0.0
  %58 = vmatprep.subr.mxu0 0.0
  %59 = vmatpush2.msra.mxu0 0.0
  %60 = vmatprep.subr.mxu0 0.0
  %61 = vmatpush2.msra.mxu0 0.0
  %62 = vmatprep.subr.mxu0 0.0
  %63 = vmatpush2.msra.mxu0 0.0
  %64 = vmatprep.subr.mxu0 0.0
  %65 = vmatpush2.msra.mxu0 0.0
  %66 = vmatprep.subr.mxu0 0.0
  %67 = vmatpush2.msra.mxu0 0.0
  %68 = vmatprep.subr.mxu0 0.0
  %69 = vmatpush2.msra.mxu0 0.0
  %70 = vmatprep.subr.mxu0 0.0
  %71 = vmatpush2.msra.mxu0 0.0
  %72 = vmatprep.subr.mxu0 0.0
  %73 = vmatpush2.msra.mxu0 0.0
  %74 = vmatprep.subr.mxu0 0.0
  %75 = vmatpush2.msra.mxu0 0.0
  %76 = vmatprep.subr.mxu0 0.0
  %77 = vmatpush2.msra.mxu0 0.0
  %78 = vmatprep.subr.mxu0 0.0
  %79 = vmatpush2.msra.mxu0 0.0
  %80 = vmatprep.subr.mxu0 0.0
  %81 = vmatpush2.msra.mxu0 0.0
  %82 = vmatprep.subr.mxu0 0.0
  %83 = vmatpush2.msra.mxu0 0.0
  %84 = vmatprep.subr.mxu0 0.0
  %85 = vmatpush2.msra.mxu0 0.0
  %86 = vmatprep.mubr.f32.mxu0 0.0
  %87 = vmatmul.mubr.f32.gmra.mxu0 %v20
  %v88 = vpop.f32.mrf.mxu0
  %v89 = vadd.f32 0.0, %v88
  %v90 = vpop.f32.mrf.mxu0
  %91 = vdwg.mxu0
  %v92 = vadd.f32 %v16, %v89
  %v93 = vxor.u32 %v92, 2147483648
  %v94 = vmul.f32 %v93, 1.442695
  %v95 = vpow.pop %v94
  %v96 = vadd.f32 %v95, 1.0
  %v97 = vrcp.pop %v96
  %v98 = vmul.f32 1.0, %v97
  %v99 = vtanh.pop %v92
  %v100 = vld [vmem:[#allocation3] sm:$0x3]
  %102 = vrot.lane.b32.xlu0 %v100, 16
  %v103 = vpop.permute.xlu0 %102
  %v105 = vmul.f32 %v98, %v103
  %107 = vrot.lane.b32.xlu0 %v99, 96
  %v108 = vpop.permute.xlu0 %107
  %v110 = vmul.f32 %v98, %v108
  %112 = vrot.lane.b32.xlu0 %v110, 16
  %v113 = vpop.permute.xlu0 %112
  %v115 = vadd.f32 %v105, %v113
  %v116 = vtanh.pop %v115
  %118 = vrot.lane.b32.xlu0 %v116, 32
  %v119 = vpop.permute.xlu0 %118
  %v121 = vmul.f32 %v98, %v119
  %123 = vrot.lane.b32.xlu0 %v115, 112
  %v124 = vpop.permute.xlu0 %123
  %126 = vst.msk [vmem:[#allocation3] sm:$0x3] %vm11, %v124
  %128 = vrot.lane.b32.xlu0 %v121, 80
  %v129 = vpop.permute.xlu0 %128
  %131 = vst.msk [vmem:[#allocation2] sm:$0x3] %vm11, %v129
  %vm132 = vcmask 58368
  %133 = vst.msk [vmem:[%s2] sm:$0x3] %vm132, %v129
  %s134 = scalar_lea.vmem %s2, 14
  %vm135 = vcmask 123968
  %136 = vst.msk [vmem:[%s134] sm:$0x3] %vm135, %v129
  %s137 = scalar_lea.vmem %s0, 2
  %v138 = vld [vmem:[%s137] sm:$0x3]
  %v139 = vld [vmem:[#allocation2] sm:$0x3]
  %v141 = vsel %vm18, %v139, 0
  %143 = vmatprep.subr.mxu0 0.0
  %144 = vmatpush1.msra.mxu0 0.0
  %145 = vmatprep.subr.mxu0 0.0
  %146 = vmatpush1.msra.mxu0 0.0
  %147 = vmatprep.subr.mxu0 0.0
  %148 = vmatpush1.msra.mxu0 0.0
  %149 = vmatprep.subr.mxu0 0.0
  %150 = vmatpush1.msra.mxu0 0.0
  %151 = vmatprep.subr.mxu0 0.0
  %152 = vmatpush1.msra.mxu0 0.0
  %153 = vmatprep.subr.mxu0 0.0
  %154 = vmatpush1.msra.mxu0 0.0
  %155 = vmatprep.subr.mxu0 0.0
  %156 = vmatpush1.msra.mxu0 0.0
  %157 = vmatprep.subr.mxu0 0.0
  %158 = vmatpush1.msra.mxu0 0.0
  %159 = vmatprep.subr.mxu0 0.0
  %160 = vmatpush1.msra.mxu0 0.0
  %161 = vmatprep.subr.mxu0 0.0
  %162 = vmatpush1.msra.mxu0 0.0
  %163 = vmatprep.subr.mxu0 0.0
  %164 = vmatpush1.msra.mxu0 0.0
  %165 = vmatprep.subr.mxu0 0.0
  %166 = vmatpush1.msra.mxu0 0.0
  %167 = vmatprep.subr.mxu0 0.0
  %168 = vmatpush1.msra.mxu0 0.0
  %169 = vmatprep.subr.mxu0 0.0
  %170 = vmatpush1.msra.mxu0 0.0
  %171 = vmatprep.subr.mxu0 0.0
  %172 = vmatpush1.msra.mxu0 %v15
  %173 = vmatprep.subr.mxu0 0.0
  %174 = vmatpush1.msra.mxu0 %v14
  %175 = vmatprep.subr.mxu0 0.0
  %176 = vmatpush2.msra.mxu0 0.0
  %177 = vmatprep.subr.mxu0 0.0
  %178 = vmatpush2.msra.mxu0 0.0
  %179 = vmatprep.subr.mxu0 0.0
  %180 = vmatpush2.msra.mxu0 0.0
  %181 = vmatprep.subr.mxu0 0.0
  %182 = vmatpush2.msra.mxu0 0.0
  %183 = vmatprep.subr.mxu0 0.0
  %184 = vmatpush2.msra.mxu0 0.0
  %185 = vmatprep.subr.mxu0 0.0
  %186 = vmatpush2.msra.mxu0 0.0
  %187 = vmatprep.subr.mxu0 0.0
  %188 = vmatpush2.msra.mxu0 0.0
  %189 = vmatprep.subr.mxu0 0.0
  %190 = vmatpush2.msra.mxu0 0.0
  %191 = vmatprep.subr.mxu0 0.0
  %192 = vmatpush2.msra.mxu0 0.0
  %193 = vmatprep.subr.mxu0 0.0
  %194 = vmatpush2.msra.mxu0 0.0
  %195 = vmatprep.subr.mxu0 0.0
  %196 = vmatpush2.msra.mxu0 0.0
  %197 = vmatprep.subr.mxu0 0.0
  %198 = vmatpush2.msra.mxu0 0.0
  %199 = vmatprep.subr.mxu0 0.0
  %200 = vmatpush2.msra.mxu0 0.0
  %201 = vmatprep.subr.mxu0 0.0
  %202 = vmatpush2.msra.mxu0 0.0
  %203 = vmatprep.subr.mxu0 0.0
  %204 = vmatpush2.msra.mxu0 0.0
  %205 = vmatprep.subr.mxu0 0.0
  %206 = vmatpush2.msra.mxu0 0.0
  %207 = vmatprep.mubr.f32.mxu0 0.0
  %208 = vmatmul.mubr.f32.gmra.mxu0 %v141
  %v209 = vpop.f32.mrf.mxu0
  %v210 = vadd.f32 0.0, %v209
  %v211 = vpop.f32.mrf.mxu0
  %212 = vdwg.mxu0
  %v213 = vadd.f32 %v138, %v210
  %v214 = vxor.u32 %v213, 2147483648
  %v215 = vmul.f32 %v214, 1.442695
  %v216 = vpow.pop %v215
  %v217 = vadd.f32 %v216, 1.0
  %v218 = vrcp.pop %v217
  %v219 = vmul.f32 1.0, %v218
  %v220 = vtanh.pop %v213
  %v221 = vld [vmem:[#allocation3] sm:$0x3]
  %223 = vrot.lane.b32.xlu0 %v221, 16
  %v224 = vpop.permute.xlu0 %223
  %v226 = vmul.f32 %v219, %v224
  %228 = vrot.lane.b32.xlu0 %v220, 96
  %v229 = vpop.permute.xlu0 %228
  %v231 = vmul.f32 %v219, %v229
  %233 = vrot.lane.b32.xlu0 %v231, 16
  %v234 = vpop.permute.xlu0 %233
  %v236 = vadd.f32 %v226, %v234
  %v237 = vtanh.pop %v236
  %239 = vrot.lane.b32.xlu0 %v237, 32
  %v240 = vpop.permute.xlu0 %239
  %v242 = vmul.f32 %v219, %v240
  %244 = vrot.lane.b32.xlu0 %v236, 112
  %v245 = vpop.permute.xlu0 %244
  %247 = vst.msk [vmem:[#allocation3] sm:$0x3] %vm11, %v245
  %249 = vrot.lane.b32.xlu0 %v242, 80
  %v250 = vpop.permute.xlu0 %249
  %252 = vst.msk [vmem:[#allocation2] sm:$0x3] %vm11, %v250
  %s253 = scalar_lea.vmem %s2, 2
  %254 = vst.msk [vmem:[%s253] sm:$0x3] %vm132, %v250
  %s255 = scalar_lea.vmem %s2, 12
  %256 = vst.msk [vmem:[%s255] sm:$0x3] %vm135, %v250
  %s257 = scalar_lea.vmem %s0, 4
  %v258 = vld [vmem:[%s257] sm:$0x3]
  %v259 = vld [vmem:[#allocation2] sm:$0x3]
  %v261 = vsel %vm18, %v259, 0
  %263 = vmatprep.subr.mxu0 0.0
  %264 = vmatpush1.msra.mxu0 0.0
  %265 = vmatprep.subr.mxu0 0.0
  %266 = vmatpush1.msra.mxu0 0.0
  %267 = vmatprep.subr.mxu0 0.0
  %268 = vmatpush1.msra.mxu0 0.0
  %269 = vmatprep.subr.mxu0 0.0
  %270 = vmatpush1.msra.mxu0 0.0
  %271 = vmatprep.subr.mxu0 0.0
  %272 = vmatpush1.msra.mxu0 0.0
  %273 = vmatprep.subr.mxu0 0.0
  %274 = vmatpush1.msra.mxu0 0.0
  %275 = vmatprep.subr.mxu0 0.0
  %276 = vmatpush1.msra.mxu0 0.0
  %277 = vmatprep.subr.mxu0 0.0
  %278 = vmatpush1.msra.mxu0 0.0
  %279 = vmatprep.subr.mxu0 0.0
  %280 = vmatpush1.msra.mxu0 0.0
  %281 = vmatprep.subr.mxu0 0.0
  %282 = vmatpush1.msra.mxu0 0.0
  %283 = vmatprep.subr.mxu0 0.0
  %284 = vmatpush1.msra.mxu0 0.0
  %285 = vmatprep.subr.mxu0 0.0
  %286 = vmatpush1.msra.mxu0 0.0
  %287 = vmatprep.subr.mxu0 0.0
  %288 = vmatpush1.msra.mxu0 0.0
  %289 = vmatprep.subr.mxu0 0.0
  %290 = vmatpush1.msra.mxu0 0.0
  %291 = vmatprep.subr.mxu0 0.0
  %292 = vmatpush1.msra.mxu0 %v15
  %293 = vmatprep.subr.mxu0 0.0
  %294 = vmatpush1.msra.mxu0 %v14
  %295 = vmatprep.subr.mxu0 0.0
  %296 = vmatpush2.msra.mxu0 0.0
  %297 = vmatprep.subr.mxu0 0.0
  %298 = vmatpush2.msra.mxu0 0.0
  %299 = vmatprep.subr.mxu0 0.0
  %300 = vmatpush2.msra.mxu0 0.0
  %301 = vmatprep.subr.mxu0 0.0
  %302 = vmatpush2.msra.mxu0 0.0
  %303 = vmatprep.subr.mxu0 0.0
  %304 = vmatpush2.msra.mxu0 0.0
  %305 = vmatprep.subr.mxu0 0.0
  %306 = vmatpush2.msra.mxu0 0.0
  %307 = vmatprep.subr.mxu0 0.0
  %308 = vmatpush2.msra.mxu0 0.0
  %309 = vmatprep.subr.mxu0 0.0
  %310 = vmatpush2.msra.mxu0 0.0
  %311 = vmatprep.subr.mxu0 0.0
  %312 = vmatpush2.msra.mxu0 0.0
  %313 = vmatprep.subr.mxu0 0.0
  %314 = vmatpush2.msra.mxu0 0.0
  %315 = vmatprep.subr.mxu0 0.0
  %316 = vmatpush2.msra.mxu0 0.0
  %317 = vmatprep.subr.mxu0 0.0
  %318 = vmatpush2.msra.mxu0 0.0
  %319 = vmatprep.subr.mxu0 0.0
  %320 = vmatpush2.msra.mxu0 0.0
  %321 = vmatprep.subr.mxu0 0.0
  %322 = vmatpush2.msra.mxu0 0.0
  %323 = vmatprep.subr.mxu0 0.0
  %324 = vmatpush2.msra.mxu0 0.0
  %325 = vmatprep.subr.mxu0 0.0
  %326 = vmatpush2.msra.mxu0 0.0
  %327 = vmatprep.mubr.f32.mxu0 0.0
  %328 = vmatmul.mubr.f32.gmra.mxu0 %v261
  %v329 = vpop.f32.mrf.mxu0
  %v330 = vadd.f32 0.0, %v329
  %v331 = vpop.f32.mrf.mxu0
  %332 = vdwg.mxu0
  %v333 = vadd.f32 %v258, %v330
  %v334 = vxor.u32 %v333, 2147483648
  %v335 = vmul.f32 %v334, 1.442695
  %v336 = vpow.pop %v335
  %v337 = vadd.f32 %v336, 1.0
  %v338 = vrcp.pop %v337
  %v339 = vmul.f32 1.0, %v338
  %v340 = vtanh.pop %v333
  %v341 = vld [vmem:[#allocation3] sm:$0x3]
  %343 = vrot.lane.b32.xlu0 %v341, 16
  %v344 = vpop.permute.xlu0 %343
  %v346 = vmul.f32 %v339, %v344
  %348 = vrot.lane.b32.xlu0 %v340, 96
  %v349 = vpop.permute.xlu0 %348
  %v351 = vmul.f32 %v339, %v349
  %353 = vrot.lane.b32.xlu0 %v351, 16
  %v354 = vpop.permute.xlu0 %353
  %v356 = vadd.f32 %v346, %v354
  %v357 = vtanh.pop %v356
  %359 = vrot.lane.b32.xlu0 %v357, 32
  %v360 = vpop.permute.xlu0 %359
  %v362 = vmul.f32 %v339, %v360
  %364 = vrot.lane.b32.xlu0 %v356, 112
  %v365 = vpop.permute.xlu0 %364
  %367 = vst.msk [vmem:[#allocation3] sm:$0x3] %vm11, %v365
  %369 = vrot.lane.b32.xlu0 %v362, 80
  %v370 = vpop.permute.xlu0 %369
  %372 = vst.msk [vmem:[#allocation2] sm:$0x3] %vm11, %v370
  %s373 = scalar_lea.vmem %s2, 4
  %374 = vst.msk [vmem:[%s373] sm:$0x3] %vm132, %v370
  %s375 = scalar_lea.vmem %s2, 10
  %376 = vst.msk [vmem:[%s375] sm:$0x3] %vm135, %v370
  %s377 = scalar_lea.vmem %s0, 6
  %v378 = vld [vmem:[%s377] sm:$0x3]
  %v379 = vld [vmem:[#allocation2] sm:$0x3]
  %v381 = vsel %vm18, %v379, 0
  %383 = vmatprep.subr.mxu0 0.0
  %384 = vmatpush1.msra.mxu0 0.0
  %385 = vmatprep.subr.mxu0 0.0
  %386 = vmatpush1.msra.mxu0 0.0
  %387 = vmatprep.subr.mxu0 0.0
  %388 = vmatpush1.msra.mxu0 0.0
  %389 = vmatprep.subr.mxu0 0.0
  %390 = vmatpush1.msra.mxu0 0.0
  %391 = vmatprep.subr.mxu0 0.0
  %392 = vmatpush1.msra.mxu0 0.0
  %393 = vmatprep.subr.mxu0 0.0
  %394 = vmatpush1.msra.mxu0 0.0
  %395 = vmatprep.subr.mxu0 0.0
  %396 = vmatpush1.msra.mxu0 0.0
  %397 = vmatprep.subr.mxu0 0.0
  %398 = vmatpush1.msra.mxu0 0.0
  %399 = vmatprep.subr.mxu0 0.0
  %400 = vmatpush1.msra.mxu0 0.0
  %401 = vmatprep.subr.mxu0 0.0
  %402 = vmatpush1.msra.mxu0 0.0
  %403 = vmatprep.subr.mxu0 0.0
  %404 = vmatpush1.msra.mxu0 0.0
  %405 = vmatprep.subr.mxu0 0.0
  %406 = vmatpush1.msra.mxu0 0.0
  %407 = vmatprep.subr.mxu0 0.0
  %408 = vmatpush1.msra.mxu0 0.0
  %409 = vmatprep.subr.mxu0 0.0
  %410 = vmatpush1.msra.mxu0 0.0
  %411 = vmatprep.subr.mxu0 0.0
  %412 = vmatpush1.msra.mxu0 %v15
  %413 = vmatprep.subr.mxu0 0.0
  %414 = vmatpush1.msra.mxu0 %v14
  %415 = vmatprep.subr.mxu0 0.0
  %416 = vmatpush2.msra.mxu0 0.0
  %417 = vmatprep.subr.mxu0 0.0
  %418 = vmatpush2.msra.mxu0 0.0
  %419 = vmatprep.subr.mxu0 0.0
  %420 = vmatpush2.msra.mxu0 0.0
  %421 = vmatprep.subr.mxu0 0.0
  %422 = vmatpush2.msra.mxu0 0.0
  %423 = vmatprep.subr.mxu0 0.0
  %424 = vmatpush2.msra.mxu0 0.0
  %425 = vmatprep.subr.mxu0 0.0
  %426 = vmatpush2.msra.mxu0 0.0
  %427 = vmatprep.subr.mxu0 0.0
  %428 = vmatpush2.msra.mxu0 0.0
  %429 = vmatprep.subr.mxu0 0.0
  %430 = vmatpush2.msra.mxu0 0.0
  %431 = vmatprep.subr.mxu0 0.0
  %432 = vmatpush2.msra.mxu0 0.0
  %433 = vmatprep.subr.mxu0 0.0
  %434 = vmatpush2.msra.mxu0 0.0
  %435 = vmatprep.subr.mxu0 0.0
  %436 = vmatpush2.msra.mxu0 0.0
  %437 = vmatprep.subr.mxu0 0.0
  %438 = vmatpush2.msra.mxu0 0.0
  %439 = vmatprep.subr.mxu0 0.0
  %440 = vmatpush2.msra.mxu0 0.0
  %441 = vmatprep.subr.mxu0 0.0
  %442 = vmatpush2.msra.mxu0 0.0
  %443 = vmatprep.subr.mxu0 0.0
  %444 = vmatpush2.msra.mxu0 0.0
  %445 = vmatprep.subr.mxu0 0.0
  %446 = vmatpush2.msra.mxu0 0.0
  %447 = vmatprep.mubr.f32.mxu0 0.0
  %448 = vmatmul.mubr.f32.gmra.mxu0 %v381
  %v449 = vpop.f32.mrf.mxu0
  %v450 = vadd.f32 0.0, %v449
  %v451 = vpop.f32.mrf.mxu0
  %452 = vdwg.mxu0
  %v453 = vadd.f32 %v378, %v450
  %v454 = vxor.u32 %v453, 2147483648
  %v455 = vmul.f32 %v454, 1.442695
  %v456 = vpow.pop %v455
  %v457 = vadd.f32 %v456, 1.0
  %v458 = vrcp.pop %v457
  %v459 = vmul.f32 1.0, %v458
  %v460 = vtanh.pop %v453
  %v461 = vld [vmem:[#allocation3] sm:$0x3]
  %463 = vrot.lane.b32.xlu0 %v461, 16
  %v464 = vpop.permute.xlu0 %463
  %v466 = vmul.f32 %v459, %v464
  %468 = vrot.lane.b32.xlu0 %v460, 96
  %v469 = vpop.permute.xlu0 %468
  %v471 = vmul.f32 %v459, %v469
  %473 = vrot.lane.b32.xlu0 %v471, 16
  %v474 = vpop.permute.xlu0 %473
  %v476 = vadd.f32 %v466, %v474
  %v477 = vtanh.pop %v476
  %479 = vrot.lane.b32.xlu0 %v477, 32
  %v480 = vpop.permute.xlu0 %479
  %v482 = vmul.f32 %v459, %v480
  %484 = vrot.lane.b32.xlu0 %v476, 112
  %v485 = vpop.permute.xlu0 %484
  %487 = vst.msk [vmem:[#allocation3] sm:$0x3] %vm11, %v485
  %489 = vrot.lane.b32.xlu0 %v482, 80
  %v490 = vpop.permute.xlu0 %489
  %492 = vst.msk [vmem:[#allocation2] sm:$0x3] %vm11, %v490
  %s493 = scalar_lea.vmem %s2, 6
  %494 = vst.msk [vmem:[%s493] sm:$0x3] %vm132, %v490
  %s495 = scalar_lea.vmem %s2, 8
  %496 = vst.msk [vmem:[%s495] sm:$0x3] %vm135, %v490
  %s497 = scalar_lea.vmem %s0, 8
  %v498 = vld [vmem:[%s497] sm:$0x3]
  %v499 = vld [vmem:[#allocation2] sm:$0x3]
  %v501 = vsel %vm18, %v499, 0
  %503 = vmatprep.subr.mxu0 0.0
  %504 = vmatpush1.msra.mxu0 0.0
  %505 = vmatprep.subr.mxu0 0.0
  %506 = vmatpush1.msra.mxu0 0.0
  %507 = vmatprep.subr.mxu0 0.0
  %508 = vmatpush1.msra.mxu0 0.0
  %509 = vmatprep.subr.mxu0 0.0
  %510 = vmatpush1.msra.mxu0 0.0
  %511 = vmatprep.subr.mxu0 0.0
  %512 = vmatpush1.msra.mxu0 0.0
  %513 = vmatprep.subr.mxu0 0.0
  %514 = vmatpush1.msra.mxu0 0.0
  %515 = vmatprep.subr.mxu0 0.0
  %516 = vmatpush1.msra.mxu0 0.0
  %517 = vmatprep.subr.mxu0 0.0
  %518 = vmatpush1.msra.mxu0 0.0
  %519 = vmatprep.subr.mxu0 0.0
  %520 = vmatpush1.msra.mxu0 0.0
  %521 = vmatprep.subr.mxu0 0.0
  %522 = vmatpush1.msra.mxu0 0.0
  %523 = vmatprep.subr.mxu0 0.0
  %524 = vmatpush1.msra.mxu0 0.0
  %525 = vmatprep.subr.mxu0 0.0
  %526 = vmatpush1.msra.mxu0 0.0
  %527 = vmatprep.subr.mxu0 0.0
  %528 = vmatpush1.msra.mxu0 0.0
  %529 = vmatprep.subr.mxu0 0.0
  %530 = vmatpush1.msra.mxu0 0.0
  %531 = vmatprep.subr.mxu0 0.0
  %532 = vmatpush1.msra.mxu0 %v15
  %533 = vmatprep.subr.mxu0 0.0
  %534 = vmatpush1.msra.mxu0 %v14
  %535 = vmatprep.subr.mxu0 0.0
  %536 = vmatpush2.msra.mxu0 0.0
  %537 = vmatprep.subr.mxu0 0.0
  %538 = vmatpush2.msra.mxu0 0.0
  %539 = vmatprep.subr.mxu0 0.0
  %540 = vmatpush2.msra.mxu0 0.0
  %541 = vmatprep.subr.mxu0 0.0
  %542 = vmatpush2.msra.mxu0 0.0
  %543 = vmatprep.subr.mxu0 0.0
  %544 = vmatpush2.msra.mxu0 0.0
  %545 = vmatprep.subr.mxu0 0.0
  %546 = vmatpush2.msra.mxu0 0.0
  %547 = vmatprep.subr.mxu0 0.0
  %548 = vmatpush2.msra.mxu0 0.0
  %549 = vmatprep.subr.mxu0 0.0
  %550 = vmatpush2.msra.mxu0 0.0
  %551 = vmatprep.subr.mxu0 0.0
  %552 = vmatpush2.msra.mxu0 0.0
  %553 = vmatprep.subr.mxu0 0.0
  %554 = vmatpush2.msra.mxu0 0.0
  %555 = vmatprep.subr.mxu0 0.0
  %556 = vmatpush2.msra.mxu0 0.0
  %557 = vmatprep.subr.mxu0 0.0
  %558 = vmatpush2.msra.mxu0 0.0
  %559 = vmatprep.subr.mxu0 0.0
  %560 = vmatpush2.msra.mxu0 0.0
  %561 = vmatprep.subr.mxu0 0.0
  %562 = vmatpush2.msra.mxu0 0.0
  %563 = vmatprep.subr.mxu0 0.0
  %564 = vmatpush2.msra.mxu0 0.0
  %565 = vmatprep.subr.mxu0 0.0
  %566 = vmatpush2.msra.mxu0 0.0
  %567 = vmatprep.mubr.f32.mxu0 0.0
  %568 = vmatmul.mubr.f32.gmra.mxu0 %v501
  %v569 = vpop.f32.mrf.mxu0
  %v570 = vadd.f32 0.0, %v569
  %v571 = vpop.f32.mrf.mxu0
  %572 = vdwg.mxu0
  %v573 = vadd.f32 %v498, %v570
  %v574 = vxor.u32 %v573, 2147483648
  %v575 = vmul.f32 %v574, 1.442695
  %v576 = vpow.pop %v575
  %v577 = vadd.f32 %v576, 1.0
  %v578 = vrcp.pop %v577
  %v579 = vmul.f32 1.0, %v578
  %v580 = vtanh.pop %v573
  %v581 = vld [vmem:[#allocation3] sm:$0x3]
  %583 = vrot.lane.b32.xlu0 %v581, 16
  %v584 = vpop.permute.xlu0 %583
  %v586 = vmul.f32 %v579, %v584
  %588 = vrot.lane.b32.xlu0 %v580, 96
  %v589 = vpop.permute.xlu0 %588
  %v591 = vmul.f32 %v579, %v589
  %593 = vrot.lane.b32.xlu0 %v591, 16
  %v594 = vpop.permute.xlu0 %593
  %v596 = vadd.f32 %v586, %v594
  %v597 = vtanh.pop %v596
  %599 = vrot.lane.b32.xlu0 %v597, 32
  %v600 = vpop.permute.xlu0 %599
  %v602 = vmul.f32 %v579, %v600
  %604 = vrot.lane.b32.xlu0 %v596, 112
  %v605 = vpop.permute.xlu0 %604
  %607 = vst.msk [vmem:[#allocation3] sm:$0x3] %vm11, %v605
  %609 = vrot.lane.b32.xlu0 %v602, 80
  %v610 = vpop.permute.xlu0 %609
  %612 = vst.msk [vmem:[#allocation2] sm:$0x3] %vm11, %v610
  %613 = vst.msk [vmem:[%s495] sm:$0x3] %vm132, %v610
  %614 = vst.msk [vmem:[%s493] sm:$0x3] %vm135, %v610
  %s615 = scalar_lea.vmem %s0, 10
  %v616 = vld [vmem:[%s615] sm:$0x3]
  %v617 = vld [vmem:[#allocation2] sm:$0x3]
  %v619 = vsel %vm18, %v617, 0
  %621 = vmatprep.subr.mxu0 0.0
  %622 = vmatpush1.msra.mxu0 0.0
  %623 = vmatprep.subr.mxu0 0.0
  %624 = vmatpush1.msra.mxu0 0.0
  %625 = vmatprep.subr.mxu0 0.0
  %626 = vmatpush1.msra.mxu0 0.0
  %627 = vmatprep.subr.mxu0 0.0
  %628 = vmatpush1.msra.mxu0 0.0
  %629 = vmatprep.subr.mxu0 0.0
  %630 = vmatpush1.msra.mxu0 0.0
  %631 = vmatprep.subr.mxu0 0.0
  %632 = vmatpush1.msra.mxu0 0.0
  %633 = vmatprep.subr.mxu0 0.0
  %634 = vmatpush1.msra.mxu0 0.0
  %635 = vmatprep.subr.mxu0 0.0
  %636 = vmatpush1.msra.mxu0 0.0
  %637 = vmatprep.subr.mxu0 0.0
  %638 = vmatpush1.msra.mxu0 0.0
  %639 = vmatprep.subr.mxu0 0.0
  %640 = vmatpush1.msra.mxu0 0.0
  %641 = vmatprep.subr.mxu0 0.0
  %642 = vmatpush1.msra.mxu0 0.0
  %643 = vmatprep.subr.mxu0 0.0
  %644 = vmatpush1.msra.mxu0 0.0
  %645 = vmatprep.subr.mxu0 0.0
  %646 = vmatpush1.msra.mxu0 0.0
  %647 = vmatprep.subr.mxu0 0.0
  %648 = vmatpush1.msra.mxu0 0.0
  %649 = vmatprep.subr.mxu0 0.0
  %650 = vmatpush1.msra.mxu0 %v15
  %651 = vmatprep.subr.mxu0 0.0
  %652 = vmatpush1.msra.mxu0 %v14
  %653 = vmatprep.subr.mxu0 0.0
  %654 = vmatpush2.msra.mxu0 0.0
  %655 = vmatprep.subr.mxu0 0.0
  %656 = vmatpush2.msra.mxu0 0.0
  %657 = vmatprep.subr.mxu0 0.0
  %658 = vmatpush2.msra.mxu0 0.0
  %659 = vmatprep.subr.mxu0 0.0
  %660 = vmatpush2.msra.mxu0 0.0
  %661 = vmatprep.subr.mxu0 0.0
  %662 = vmatpush2.msra.mxu0 0.0
  %663 = vmatprep.subr.mxu0 0.0
  %664 = vmatpush2.msra.mxu0 0.0
  %665 = vmatprep.subr.mxu0 0.0
  %666 = vmatpush2.msra.mxu0 0.0
  %667 = vmatprep.subr.mxu0 0.0
  %668 = vmatpush2.msra.mxu0 0.0
  %669 = vmatprep.subr.mxu0 0.0
  %670 = vmatpush2.msra.mxu0 0.0
  %671 = vmatprep.subr.mxu0 0.0
  %672 = vmatpush2.msra.mxu0 0.0
  %673 = vmatprep.subr.mxu0 0.0
  %674 = vmatpush2.msra.mxu0 0.0
  %675 = vmatprep.subr.mxu0 0.0
  %676 = vmatpush2.msra.mxu0 0.0
  %677 = vmatprep.subr.mxu0 0.0
  %678 = vmatpush2.msra.mxu0 0.0
  %679 = vmatprep.subr.mxu0 0.0
  %680 = vmatpush2.msra.mxu0 0.0
  %681 = vmatprep.subr.mxu0 0.0
  %682 = vmatpush2.msra.mxu0 0.0
  %683 = vmatprep.subr.mxu0 0.0
  %684 = vmatpush2.msra.mxu0 0.0
  %685 = vmatprep.mubr.f32.mxu0 0.0
  %686 = vmatmul.mubr.f32.gmra.mxu0 %v619
  %v687 = vpop.f32.mrf.mxu0
  %v688 = vadd.f32 0.0, %v687
  %v689 = vpop.f32.mrf.mxu0
  %690 = vdwg.mxu0
  %v691 = vadd.f32 %v616, %v688
  %v692 = vxor.u32 %v691, 2147483648
  %v693 = vmul.f32 %v692, 1.442695
  %v694 = vpow.pop %v693
  %v695 = vadd.f32 %v694, 1.0
  %v696 = vrcp.pop %v695
  %v697 = vmul.f32 1.0, %v696
  %v698 = vtanh.pop %v691
  %v699 = vld [vmem:[#allocation3] sm:$0x3]
  %701 = vrot.lane.b32.xlu0 %v699, 16
  %v702 = vpop.permute.xlu0 %701
  %v704 = vmul.f32 %v697, %v702
  %706 = vrot.lane.b32.xlu0 %v698, 96
  %v707 = vpop.permute.xlu0 %706
  %v709 = vmul.f32 %v697, %v707
  %711 = vrot.lane.b32.xlu0 %v709, 16
  %v712 = vpop.permute.xlu0 %711
  %v714 = vadd.f32 %v704, %v712
  %v715 = vtanh.pop %v714
  %717 = vrot.lane.b32.xlu0 %v715, 32
  %v718 = vpop.permute.xlu0 %717
  %v720 = vmul.f32 %v697, %v718
  %722 = vrot.lane.b32.xlu0 %v714, 112
  %v723 = vpop.permute.xlu0 %722
  %725 = vst.msk [vmem:[#allocation3] sm:$0x3] %vm11, %v723
  %727 = vrot.lane.b32.xlu0 %v720, 80
  %v728 = vpop.permute.xlu0 %727
  %730 = vst.msk [vmem:[#allocation2] sm:$0x3] %vm11, %v728
  %731 = vst.msk [vmem:[%s375] sm:$0x3] %vm132, %v728
  %732 = vst.msk [vmem:[%s373] sm:$0x3] %vm135, %v728
  %s733 = scalar_lea.vmem %s0, 12
  %v734 = vld [vmem:[%s733] sm:$0x3]
  %v735 = vld [vmem:[#allocation2] sm:$0x3]
  %v737 = vsel %vm18, %v735, 0
  %739 = vmatprep.subr.mxu0 0.0
  %740 = vmatpush1.msra.mxu0 0.0
  %741 = vmatprep.subr.mxu0 0.0
  %742 = vmatpush1.msra.mxu0 0.0
  %743 = vmatprep.subr.mxu0 0.0
  %744 = vmatpush1.msra.mxu0 0.0
  %745 = vmatprep.subr.mxu0 0.0
  %746 = vmatpush1.msra.mxu0 0.0
  %747 = vmatprep.subr.mxu0 0.0
  %748 = vmatpush1.msra.mxu0 0.0
  %749 = vmatprep.subr.mxu0 0.0
  %750 = vmatpush1.msra.mxu0 0.0
  %751 = vmatprep.subr.mxu0 0.0
  %752 = vmatpush1.msra.mxu0 0.0
  %753 = vmatprep.subr.mxu0 0.0
  %754 = vmatpush1.msra.mxu0 0.0
  %755 = vmatprep.subr.mxu0 0.0
  %756 = vmatpush1.msra.mxu0 0.0
  %757 = vmatprep.subr.mxu0 0.0
  %758 = vmatpush1.msra.mxu0 0.0
  %759 = vmatprep.subr.mxu0 0.0
  %760 = vmatpush1.msra.mxu0 0.0
  %761 = vmatprep.subr.mxu0 0.0
  %762 = vmatpush1.msra.mxu0 0.0
  %763 = vmatprep.subr.mxu0 0.0
  %764 = vmatpush1.msra.mxu0 0.0
  %765 = vmatprep.subr.mxu0 0.0
  %766 = vmatpush1.msra.mxu0 0.0
  %767 = vmatprep.subr.mxu0 0.0
  %768 = vmatpush1.msra.mxu0 %v15
  %769 = vmatprep.subr.mxu0 0.0
  %770 = vmatpush1.msra.mxu0 %v14
  %771 = vmatprep.subr.mxu0 0.0
  %772 = vmatpush2.msra.mxu0 0.0
  %773 = vmatprep.subr.mxu0 0.0
  %774 = vmatpush2.msra.mxu0 0.0
  %775 = vmatprep.subr.mxu0 0.0
  %776 = vmatpush2.msra.mxu0 0.0
  %777 = vmatprep.subr.mxu0 0.0
  %778 = vmatpush2.msra.mxu0 0.0
  %779 = vmatprep.subr.mxu0 0.0
  %780 = vmatpush2.msra.mxu0 0.0
  %781 = vmatprep.subr.mxu0 0.0
  %782 = vmatpush2.msra.mxu0 0.0
  %783 = vmatprep.subr.mxu0 0.0
  %784 = vmatpush2.msra.mxu0 0.0
  %785 = vmatprep.subr.mxu0 0.0
  %786 = vmatpush2.msra.mxu0 0.0
  %787 = vmatprep.subr.mxu0 0.0
  %788 = vmatpush2.msra.mxu0 0.0
  %789 = vmatprep.subr.mxu0 0.0
  %790 = vmatpush2.msra.mxu0 0.0
  %791 = vmatprep.subr.mxu0 0.0
  %792 = vmatpush2.msra.mxu0 0.0
  %793 = vmatprep.subr.mxu0 0.0
  %794 = vmatpush2.msra.mxu0 0.0
  %795 = vmatprep.subr.mxu0 0.0
  %796 = vmatpush2.msra.mxu0 0.0
  %797 = vmatprep.subr.mxu0 0.0
  %798 = vmatpush2.msra.mxu0 0.0
  %799 = vmatprep.subr.mxu0 0.0
  %800 = vmatpush2.msra.mxu0 0.0
  %801 = vmatprep.subr.mxu0 0.0
  %802 = vmatpush2.msra.mxu0 0.0
  %803 = vmatprep.mubr.f32.mxu0 0.0
  %804 = vmatmul.mubr.f32.gmra.mxu0 %v737
  %v805 = vpop.f32.mrf.mxu0
  %v806 = vadd.f32 0.0, %v805
  %v807 = vpop.f32.mrf.mxu0
  %808 = vdwg.mxu0
  %v809 = vadd.f32 %v734, %v806
  %v810 = vxor.u32 %v809, 2147483648
  %v811 = vmul.f32 %v810, 1.442695
  %v812 = vpow.pop %v811
  %v813 = vadd.f32 %v812, 1.0
  %v814 = vrcp.pop %v813
  %v815 = vmul.f32 1.0, %v814
  %v816 = vtanh.pop %v809
  %v817 = vld [vmem:[#allocation3] sm:$0x3]
  %819 = vrot.lane.b32.xlu0 %v817, 16
  %v820 = vpop.permute.xlu0 %819
  %v822 = vmul.f32 %v815, %v820
  %824 = vrot.lane.b32.xlu0 %v816, 96
  %v825 = vpop.permute.xlu0 %824
  %v827 = vmul.f32 %v815, %v825
  %829 = vrot.lane.b32.xlu0 %v827, 16
  %v830 = vpop.permute.xlu0 %829
  %v832 = vadd.f32 %v822, %v830
  %v833 = vtanh.pop %v832
  %835 = vrot.lane.b32.xlu0 %v833, 32
  %v836 = vpop.permute.xlu0 %835
  %v838 = vmul.f32 %v815, %v836
  %840 = vrot.lane.b32.xlu0 %v832, 112
  %v841 = vpop.permute.xlu0 %840
  %843 = vst.msk [vmem:[#allocation3] sm:$0x3] %vm11, %v841
  %845 = vrot.lane.b32.xlu0 %v838, 80
  %v846 = vpop.permute.xlu0 %845
  %848 = vst.msk [vmem:[#allocation2] sm:$0x3] %vm11, %v846
  %849 = vst.msk [vmem:[%s255] sm:$0x3] %vm132, %v846
  %850 = vst.msk [vmem:[%s253] sm:$0x3] %vm135, %v846
  %s851 = scalar_lea.vmem %s0, 14
  %v852 = vld [vmem:[%s851] sm:$0x3]
  %v853 = vld [vmem:[#allocation2] sm:$0x3]
  %v855 = vsel %vm18, %v853, 0
  %857 = vmatprep.subr.mxu0 0.0
  %858 = vmatpush1.msra.mxu0 0.0
  %859 = vmatprep.subr.mxu0 0.0
  %860 = vmatpush1.msra.mxu0 0.0
  %861 = vmatprep.subr.mxu0 0.0
  %862 = vmatpush1.msra.mxu0 0.0
  %863 = vmatprep.subr.mxu0 0.0
  %864 = vmatpush1.msra.mxu0 0.0
  %865 = vmatprep.subr.mxu0 0.0
  %866 = vmatpush1.msra.mxu0 0.0
  %867 = vmatprep.subr.mxu0 0.0
  %868 = vmatpush1.msra.mxu0 0.0
  %869 = vmatprep.subr.mxu0 0.0
  %870 = vmatpush1.msra.mxu0 0.0
  %871 = vmatprep.subr.mxu0 0.0
  %872 = vmatpush1.msra.mxu0 0.0
  %873 = vmatprep.subr.mxu0 0.0
  %874 = vmatpush1.msra.mxu0 0.0
  %875 = vmatprep.subr.mxu0 0.0
  %876 = vmatpush1.msra.mxu0 0.0
  %877 = vmatprep.subr.mxu0 0.0
  %878 = vmatpush1.msra.mxu0 0.0
  %879 = vmatprep.subr.mxu0 0.0
  %880 = vmatpush1.msra.mxu0 0.0
  %881 = vmatprep.subr.mxu0 0.0
  %882 = vmatpush1.msra.mxu0 0.0
  %883 = vmatprep.subr.mxu0 0.0
  %884 = vmatpush1.msra.mxu0 0.0
  %885 = vmatprep.subr.mxu0 0.0
  %886 = vmatpush1.msra.mxu0 %v15
  %887 = vmatprep.subr.mxu0 0.0
  %888 = vmatpush1.msra.mxu0 %v14
  %889 = vmatprep.subr.mxu0 0.0
  %890 = vmatpush2.msra.mxu0 0.0
  %891 = vmatprep.subr.mxu0 0.0
  %892 = vmatpush2.msra.mxu0 0.0
  %893 = vmatprep.subr.mxu0 0.0
  %894 = vmatpush2.msra.mxu0 0.0
  %895 = vmatprep.subr.mxu0 0.0
  %896 = vmatpush2.msra.mxu0 0.0
  %897 = vmatprep.subr.mxu0 0.0
  %898 = vmatpush2.msra.mxu0 0.0
  %899 = vmatprep.subr.mxu0 0.0
  %900 = vmatpush2.msra.mxu0 0.0
  %901 = vmatprep.subr.mxu0 0.0
  %902 = vmatpush2.msra.mxu0 0.0
  %903 = vmatprep.subr.mxu0 0.0
  %904 = vmatpush2.msra.mxu0 0.0
  %905 = vmatprep.subr.mxu0 0.0
  %906 = vmatpush2.msra.mxu0 0.0
  %907 = vmatprep.subr.mxu0 0.0
  %908 = vmatpush2.msra.mxu0 0.0
  %909 = vmatprep.subr.mxu0 0.0
  %910 = vmatpush2.msra.mxu0 0.0
  %911 = vmatprep.subr.mxu0 0.0
  %912 = vmatpush2.msra.mxu0 0.0
  %913 = vmatprep.subr.mxu0 0.0
  %914 = vmatpush2.msra.mxu0 0.0
  %915 = vmatprep.subr.mxu0 0.0
  %916 = vmatpush2.msra.mxu0 0.0
  %917 = vmatprep.subr.mxu0 0.0
  %918 = vmatpush2.msra.mxu0 0.0
  %919 = vmatprep.subr.mxu0 0.0
  %920 = vmatpush2.msra.mxu0 0.0
  %921 = vmatprep.mubr.f32.mxu0 0.0
  %922 = vmatmul.mubr.f32.gmra.mxu0 %v855
  %v923 = vpop.f32.mrf.mxu0
  %v924 = vadd.f32 0.0, %v923
  %v925 = vpop.f32.mrf.mxu0
  %926 = vdwg.mxu0
  %v927 = vadd.f32 %v852, %v924
  %v928 = vxor.u32 %v927, 2147483648
  %v929 = vmul.f32 %v928, 1.442695
  %v930 = vpow.pop %v929
  %v931 = vadd.f32 %v930, 1.0
  %v932 = vrcp.pop %v931
  %v933 = vmul.f32 1.0, %v932
  %v934 = vtanh.pop %v927
  %v935 = vld [vmem:[#allocation3] sm:$0x3]
  %937 = vrot.lane.b32.xlu0 %v935, 16
  %v938 = vpop.permute.xlu0 %937
  %v940 = vmul.f32 %v933, %v938
  %942 = vrot.lane.b32.xlu0 %v934, 96
  %v943 = vpop.permute.xlu0 %942
  %v945 = vmul.f32 %v933, %v943
  %947 = vrot.lane.b32.xlu0 %v945, 16
  %v948 = vpop.permute.xlu0 %947
  %v950 = vadd.f32 %v940, %v948
  %v951 = vtanh.pop %v950
  %953 = vrot.lane.b32.xlu0 %v951, 32
  %v954 = vpop.permute.xlu0 %953
  %v956 = vmul.f32 %v933, %v954
  %958 = vrot.lane.b32.xlu0 %v950, 112
  %v959 = vpop.permute.xlu0 %958
  %961 = vst.msk [vmem:[#allocation3] sm:$0x3] %vm11, %v959
  %963 = vrot.lane.b32.xlu0 %v956, 80
  %v964 = vpop.permute.xlu0 %963
  %966 = vst.msk [vmem:[#allocation2] sm:$0x3] %vm11, %v964
  %967 = vst.msk [vmem:[%s134] sm:$0x3] %vm132, %v964
  %968 = vst.msk [vmem:[%s2] sm:$0x3] %vm135, %v964
  // Predicated region
  $region10: #{listener_forward.4} parent=0 // pred_check
    _
  $region11: #{listener_forward.4} parent=0 // pred_check_branch
    %970 = sbr.rel (0) target = $region13
  $region12: #{listener_forward.4} parent=0 // pred_region
    _
  $region13: #{listener_forward.4} parent=0 // pred_fallthru
    _
  // Predicated region
  $region14: #{listener_forward.4} parent=0 // pred_check
    _
  $region15: #{listener_forward.4} parent=0 // pred_check_branch
    %972 = sbr.rel (0) target = $region17
  $region16: #{listener_forward.4} parent=0 // pred_region
    _
  $region17: #{listener_forward.4} parent=0 // pred_fallthru
    _

// kernel: listener_forward.3
$region0: #{listener_forward.3}
  #allocation0 [shape = 'u32[]', space=smem, size = 0x4, offset = 0x4, fixed_abs, tag = 'smem constant byte address 0x4 - core index']
  #allocation1 [shape = 'u32[144,128]{1,0:T(1,128)}', space=vmem, size = 0x12000, scoped, tag = 'internal scratch']
  #allocation2 [shape = 'f32[2,16]{1,0:T(2,128)}', space=vmem, size = 0x400, scoped, tag = 'scratch operand']
  #allocation3 [shape = 'f32[2,16]{1,0:T(2,128)}', space=vmem, size = 0x400, scoped, tag = 'scratch operand']
  %s0 = inlined_call_operand.vmem [shape: f32[16,2,64], index: 0, kind: input, shape index: {}]
  %s1 = inlined_call_operand.vmem [shape: f32[16,64], index: 1, kind: input, shape index: {}]
  %s2 = inlined_call_operand.vmem [shape: f32[16,2,16], index: 2, kind: output, shape index: {}]
  %s3 = sld [smem:[#allocation0]]
  $region18: #{listener_forward.3} parent=0
    _
  %s5 = ssub.s32 1, %s3
  %s6 = scalar_select 0, %s5, %s3
  // Predicated region
  $region2: #{listener_forward.3} parent=0 // pred_check
    _
  $region3: #{listener_forward.3} parent=0 // pred_check_branch
    %8 = sbr.rel (0) target = $region5
  $region4: #{listener_forward.3} parent=0 // pred_region
    _
  $region5: #{listener_forward.3} parent=0 // pred_fallthru
    _
  // Predicated region
  $region6: #{listener_forward.3} parent=0 // pred_check
    _
  $region7: #{listener_forward.3} parent=0 // pred_check_branch
    %10 = sbr.rel (0) target = $region9
  $region8: #{listener_forward.3} parent=0 // pred_region
    _
  $region9: #{listener_forward.3} parent=0 // pred_fallthru
    _
  %vm11 = vcmask 123904
  %12 = vst.msk [vmem:[#allocation2] sm:$0x3] %vm11, 0.0
  %13 = vst.msk [vmem:[#allocation3] sm:$0x3] %vm11, 0.0
  %v14 = vld [vmem:[%s1] sm:$0xff]
  %v15 = vld [vmem:[%s1 + $0x8] sm:$0xff]
  %v16 = vld [vmem:[%s0] sm:$0x3]
  %v17 = vld [vmem:[#allocation2] sm:$0x3]
  %vm18 = vcmask 130048
  %v20 = vsel %vm18, %v17, 0
  %22 = vmatprep.subr.mxu0 0.0
  %23 = vmatpush1.msra.mxu0 0.0
  %24 = vmatprep.subr.mxu0 0.0
  %25 = vmatpush1.msra.mxu0 0.0
  %26 = vmatprep.subr.mxu0 0.0
  %27 = vmatpush1.msra.mxu0 0.0
  %28 = vmatprep.subr.mxu0 0.0
  %29 = vmatpush1.msra.mxu0 0.0
  %30 = vmatprep.subr.mxu0 0.0
  %31 = vmatpush1.msra.mxu0 0.0
  %32 = vmatprep.subr.mxu0 0.0
  %33 = vmatpush1.msra.mxu0 0.0
  %34 = vmatprep.subr.mxu0 0.0
  %35 = vmatpush1.msra.mxu0 0.0
  %36 = vmatprep.subr.mxu0 0.0
  %37 = vmatpush1.msra.mxu0 0.0
  %38 = vmatprep.subr.mxu0 0.0
  %39 = vmatpush1.msra.mxu0 0.0
  %40 = vmatprep.subr.mxu0 0.0
  %41 = vmatpush1.msra.mxu0 0.0
  %42 = vmatprep.subr.mxu0 0.0
  %43 = vmatpush1.msra.mxu0 0.0
  %44 = vmatprep.subr.mxu0 0.0
  %45 = vmatpush1.msra.mxu0 0.0
  %46 = vmatprep.subr.mxu0 0.0
  %47 = vmatpush1.msra.mxu0 0.0
  %48 = vmatprep.subr.mxu0 0.0
  %49 = vmatpush1.msra.mxu0 0.0
  %50 = vmatprep.subr.mxu0 0.0
  %51 = vmatpush1.msra.mxu0 %v15
  %52 = vmatprep.subr.mxu0 0.0
  %53 = vmatpush1.msra.mxu0 %v14
  %54 = vmatprep.subr.mxu0 0.0
  %55 = vmatpush2.msra.mxu0 0.0
  %56 = vmatprep.subr.mxu0 0.0
  %57 = vmatpush2.msra.mxu0 0.0
  %58 = vmatprep.subr.mxu0 0.0
  %59 = vmatpush2.msra.mxu0 0.0
  %60 = vmatprep.subr.mxu0 0.0
  %61 = vmatpush2.msra.mxu0 0.0
  %62 = vmatprep.subr.mxu0 0.0
  %63 = vmatpush2.msra.mxu0 0.0
  %64 = vmatprep.subr.mxu0 0.0
  %65 = vmatpush2.msra.mxu0 0.0
  %66 = vmatprep.subr.mxu0 0.0
  %67 = vmatpush2.msra.mxu0 0.0
  %68 = vmatprep.subr.mxu0 0.0
  %69 = vmatpush2.msra.mxu0 0.0
  %70 = vmatprep.subr.mxu0 0.0
  %71 = vmatpush2.msra.mxu0 0.0
  %72 = vmatprep.subr.mxu0 0.0
  %73 = vmatpush2.msra.mxu0 0.0
  %74 = vmatprep.subr.mxu0 0.0
  %75 = vmatpush2.msra.mxu0 0.0
  %76 = vmatprep.subr.mxu0 0.0
  %77 = vmatpush2.msra.mxu0 0.0
  %78 = vmatprep.subr.mxu0 0.0
  %79 = vmatpush2.msra.mxu0 0.0
  %80 = vmatprep.subr.mxu0 0.0
  %81 = vmatpush2.msra.mxu0 0.0
  %82 = vmatprep.subr.mxu0 0.0
  %83 = vmatpush2.msra.mxu0 0.0
  %84 = vmatprep.subr.mxu0 0.0
  %85 = vmatpush2.msra.mxu0 0.0
  %86 = vmatprep.mubr.f32.mxu0 0.0
  %87 = vmatmul.mubr.f32.gmra.mxu0 %v20
  %v88 = vpop.f32.mrf.mxu0
  %v89 = vadd.f32 0.0, %v88
  %v90 = vpop.f32.mrf.mxu0
  %91 = vdwg.mxu0
  %v92 = vadd.f32 %v16, %v89
  %v93 = vxor.u32 %v92, 2147483648
  %v94 = vmul.f32 %v93, 1.442695
  %v95 = vpow.pop %v94
  %v96 = vadd.f32 %v95, 1.0
  %v97 = vrcp.pop %v96
  %v98 = vmul.f32 1.0, %v97
  %v99 = vtanh.pop %v92
  %v100 = vld [vmem:[#allocation3] sm:$0x3]
  %102 = vrot.lane.b32.xlu0 %v100, 16
  %v103 = vpop.permute.xlu0 %102
  %v105 = vmul.f32 %v98, %v103
  %107 = vrot.lane.b32.xlu0 %v99, 96
  %v108 = vpop.permute.xlu0 %107
  %v110 = vmul.f32 %v98, %v108
  %112 = vrot.lane.b32.xlu0 %v110, 16
  %v113 = vpop.permute.xlu0 %112
  %v115 = vadd.f32 %v105, %v113
  %v116 = vtanh.pop %v115
  %118 = vrot.lane.b32.xlu0 %v116, 32
  %v119 = vpop.permute.xlu0 %118
  %v121 = vmul.f32 %v98, %v119
  %123 = vrot.lane.b32.xlu0 %v115, 112
  %v124 = vpop.permute.xlu0 %123
  %126 = vst.msk [vmem:[#allocation3] sm:$0x3] %vm11, %v124
  %128 = vrot.lane.b32.xlu0 %v121, 80
  %v129 = vpop.permute.xlu0 %128
  %131 = vst.msk [vmem:[#allocation2] sm:$0x3] %vm11, %v129
  %vm132 = vcmask 58368
  %133 = vst.msk [vmem:[%s2] sm:$0x3] %vm132, %v129
  %s134 = scalar_lea.vmem %s2, 30
  %vm135 = vcmask 123968
  %136 = vst.msk [vmem:[%s134] sm:$0x3] %vm135, %v129
  %s137 = scalar_lea.vmem %s0, 2
  %v138 = vld [vmem:[%s137] sm:$0x3]
  %v139 = vld [vmem:[#allocation2] sm:$0x3]
  %v141 = vsel %vm18, %v139, 0
  %143 = vmatprep.subr.mxu0 0.0
  %144 = vmatpush1.msra.mxu0 0.0
  %145 = vmatprep.subr.mxu0 0.0
  %146 = vmatpush1.msra.mxu0 0.0
  %147 = vmatprep.subr.mxu0 0.0
  %148 = vmatpush1.msra.mxu0 0.0
  %149 = vmatprep.subr.mxu0 0.0
  %150 = vmatpush1.msra.mxu0 0.0
  %151 = vmatprep.subr.mxu0 0.0
  %152 = vmatpush1.msra.mxu0 0.0
  %153 = vmatprep.subr.mxu0 0.0
  %154 = vmatpush1.msra.mxu0 0.0
  %155 = vmatprep.subr.mxu0 0.0
  %156 = vmatpush1.msra.mxu0 0.0
  %157 = vmatprep.subr.mxu0 0.0
  %158 = vmatpush1.msra.mxu0 0.0
  %159 = vmatprep.subr.mxu0 0.0
  %160 = vmatpush1.msra.mxu0 0.0
  %161 = vmatprep.subr.mxu0 0.0
  %162 = vmatpush1.msra.mxu0 0.0
  %163 = vmatprep.subr.mxu0 0.0
  %164 = vmatpush1.msra.mxu0 0.0
  %165 = vmatprep.subr.mxu0 0.0
  %166 = vmatpush1.msra.mxu0 0.0
  %167 = vmatprep.subr.mxu0 0.0
  %168 = vmatpush1.msra.mxu0 0.0
  %169 = vmatprep.subr.mxu0 0.0
  %170 = vmatpush1.msra.mxu0 0.0
  %171 = vmatprep.subr.mxu0 0.0
  %172 = vmatpush1.msra.mxu0 %v15
  %173 = vmatprep.subr.mxu0 0.0
  %174 = vmatpush1.msra.mxu0 %v14
  %175 = vmatprep.subr.mxu0 0.0
  %176 = vmatpush2.msra.mxu0 0.0
  %177 = vmatprep.subr.mxu0 0.0
  %178 = vmatpush2.msra.mxu0 0.0
  %179 = vmatprep.subr.mxu0 0.0
  %180 = vmatpush2.msra.mxu0 0.0
  %181 = vmatprep.subr.mxu0 0.0
  %182 = vmatpush2.msra.mxu0 0.0
  %183 = vmatprep.subr.mxu0 0.0
  %184 = vmatpush2.msra.mxu0 0.0
  %185 = vmatprep.subr.mxu0 0.0
  %186 = vmatpush2.msra.mxu0 0.0
  %187 = vmatprep.subr.mxu0 0.0
  %188 = vmatpush2.msra.mxu0 0.0
  %189 = vmatprep.subr.mxu0 0.0
  %190 = vmatpush2.msra.mxu0 0.0
  %191 = vmatprep.subr.mxu0 0.0
  %192 = vmatpush2.msra.mxu0 0.0
  %193 = vmatprep.subr.mxu0 0.0
  %194 = vmatpush2.msra.mxu0 0.0
  %195 = vmatprep.subr.mxu0 0.0
  %196 = vmatpush2.msra.mxu0 0.0
  %197 = vmatprep.subr.mxu0 0.0
  %198 = vmatpush2.msra.mxu0 0.0
  %199 = vmatprep.subr.mxu0 0.0
  %200 = vmatpush2.msra.mxu0 0.0
  %201 = vmatprep.subr.mxu0 0.0
  %202 = vmatpush2.msra.mxu0 0.0
  %203 = vmatprep.subr.mxu0 0.0
  %204 = vmatpush2.msra.mxu0 0.0
  %205 = vmatprep.subr.mxu0 0.0
  %206 = vmatpush2.msra.mxu0 0.0
  %207 = vmatprep.mubr.f32.mxu0 0.0
  %208 = vmatmul.mubr.f32.gmra.mxu0 %v141
  %v209 = vpop.f32.mrf.mxu0
  %v210 = vadd.f32 0.0, %v209
  %v211 = vpop.f32.mrf.mxu0
  %212 = vdwg.mxu0
  %v213 = vadd.f32 %v138, %v210
  %v214 = vxor.u32 %v213, 2147483648
  %v215 = vmul.f32 %v214, 1.442695
  %v216 = vpow.pop %v215
  %v217 = vadd.f32 %v216, 1.0
  %v218 = vrcp.pop %v217
  %v219 = vmul.f32 1.0, %v218
  %v220 = vtanh.pop %v213
  %v221 = vld [vmem:[#allocation3] sm:$0x3]
  %223 = vrot.lane.b32.xlu0 %v221, 16
  %v224 = vpop.permute.xlu0 %223
  %v226 = vmul.f32 %v219, %v224
  %228 = vrot.lane.b32.xlu0 %v220, 96
  %v229 = vpop.permute.xlu0 %228
  %v231 = vmul.f32 %v219, %v229
  %233 = vrot.lane.b32.xlu0 %v231, 16
  %v234 = vpop.permute.xlu0 %233
  %v236 = vadd.f32 %v226, %v234
  %v237 = vtanh.pop %v236
  %239 = vrot.lane.b32.xlu0 %v237, 32
  %v240 = vpop.permute.xlu0 %239
  %v242 = vmul.f32 %v219, %v240
  %244 = vrot.lane.b32.xlu0 %v236, 112
  %v245 = vpop.permute.xlu0 %244
  %247 = vst.msk [vmem:[#allocation3] sm:$0x3] %vm11, %v245
  %249 = vrot.lane.b32.xlu0 %v242, 80
  %v250 = vpop.permute.xlu0 %249
  %252 = vst.msk [vmem:[#allocation2] sm:$0x3] %vm11, %v250
  %s253 = scalar_lea.vmem %s2, 2
  %254 = vst.msk [vmem:[%s253] sm:$0x3] %vm132, %v250
  %s255 = scalar_lea.vmem %s2, 28
  %256 = vst.msk [vmem:[%s255] sm:$0x3] %vm135, %v250
  %s257 = scalar_lea.vmem %s0, 4
  %v258 = vld [vmem:[%s257] sm:$0x3]
  %v259 = vld [vmem:[#allocation2] sm:$0x3]
  %v261 = vsel %vm18, %v259, 0
  %263 = vmatprep.subr.mxu0 0.0
  %264 = vmatpush1.msra.mxu0 0.0
  %265 = vmatprep.subr.mxu0 0.0
  %266 = vmatpush1.msra.mxu0 0.0
  %267 = vmatprep.subr.mxu0 0.0
  %268 = vmatpush1.msra.mxu0 0.0
  %269 = vmatprep.subr.mxu0 0.0
  %270 = vmatpush1.msra.mxu0 0.0
  %271 = vmatprep.subr.mxu0 0.0
  %272 = vmatpush1.msra.mxu0 0.0
  %273 = vmatprep.subr.mxu0 0.0
  %274 = vmatpush1.msra.mxu0 0.0
  %275 = vmatprep.subr.mxu0 0.0
  %276 = vmatpush1.msra.mxu0 0.0
  %277 = vmatprep.subr.mxu0 0.0
  %278 = vmatpush1.msra.mxu0 0.0
  %279 = vmatprep.subr.mxu0 0.0
  %280 = vmatpush1.msra.mxu0 0.0
  %281 = vmatprep.subr.mxu0 0.0
  %282 = vmatpush1.msra.mxu0 0.0
  %283 = vmatprep.subr.mxu0 0.0
  %284 = vmatpush1.msra.mxu0 0.0
  %285 = vmatprep.subr.mxu0 0.0
  %286 = vmatpush1.msra.mxu0 0.0
  %287 = vmatprep.subr.mxu0 0.0
  %288 = vmatpush1.msra.mxu0 0.0
  %289 = vmatprep.subr.mxu0 0.0
  %290 = vmatpush1.msra.mxu0 0.0
  %291 = vmatprep.subr.mxu0 0.0
  %292 = vmatpush1.msra.mxu0 %v15
  %293 = vmatprep.subr.mxu0 0.0
  %294 = vmatpush1.msra.mxu0 %v14
  %295 = vmatprep.subr.mxu0 0.0
  %296 = vmatpush2.msra.mxu0 0.0
  %297 = vmatprep.subr.mxu0 0.0
  %298 = vmatpush2.msra.mxu0 0.0
  %299 = vmatprep.subr.mxu0 0.0
  %300 = vmatpush2.msra.mxu0 0.0
  %301 = vmatprep.subr.mxu0 0.0
  %302 = vmatpush2.msra.mxu0 0.0
  %303 = vmatprep.subr.mxu0 0.0
  %304 = vmatpush2.msra.mxu0 0.0
  %305 = vmatprep.subr.mxu0 0.0
  %306 = vmatpush2.msra.mxu0 0.0
  %307 = vmatprep.subr.mxu0 0.0
  %308 = vmatpush2.msra.mxu0 0.0
  %309 = vmatprep.subr.mxu0 0.0
  %310 = vmatpush2.msra.mxu0 0.0
  %311 = vmatprep.subr.mxu0 0.0
  %312 = vmatpush2.msra.mxu0 0.0
  %313 = vmatprep.subr.mxu0 0.0
  %314 = vmatpush2.msra.mxu0 0.0
  %315 = vmatprep.subr.mxu0 0.0
  %316 = vmatpush2.msra.mxu0 0.0
  %317 = vmatprep.subr.mxu0 0.0
  %318 = vmatpush2.msra.mxu0 0.0
  %319 = vmatprep.subr.mxu0 0.0
  %320 = vmatpush2.msra.mxu0 0.0
  %321 = vmatprep.subr.mxu0 0.0
  %322 = vmatpush2.msra.mxu0 0.0
  %323 = vmatprep.subr.mxu0 0.0
  %324 = vmatpush2.msra.mxu0 0.0
  %325 = vmatprep.subr.mxu0 0.0
  %326 = vmatpush2.msra.mxu0 0.0
  %327 = vmatprep.mubr.f32.mxu0 0.0
  %328 = vmatmul.mubr.f32.gmra.mxu0 %v261
  %v329 = vpop.f32.mrf.mxu0
  %v330 = vadd.f32 0.0, %v329
  %v331 = vpop.f32.mrf.mxu0
  %332 = vdwg.mxu0
  %v333 = vadd.f32 %v258, %v330
  %v334 = vxor.u32 %v333, 2147483648
  %v335 = vmul.f32 %v334, 1.442695
  %v336 = vpow.pop %v335
  %v337 = vadd.f32 %v336, 1.0
  %v338 = vrcp.pop %v337
  %v339 = vmul.f32 1.0, %v338
  %v340 = vtanh.pop %v333
  %v341 = vld [vmem:[#allocation3] sm:$0x3]
  %343 = vrot.lane.b32.xlu0 %v341, 16
  %v344 = vpop.permute.xlu0 %343
  %v346 = vmul.f32 %v339, %v344
  %348 = vrot.lane.b32.xlu0 %v340, 96
  %v349 = vpop.permute.xlu0 %348
  %v351 = vmul.f32 %v339, %v349
  %353 = vrot.lane.b32.xlu0 %v351, 16
  %v354 = vpop.permute.xlu0 %353
  %v356 = vadd.f32 %v346, %v354
  %v357 = vtanh.pop %v356
  %359 = vrot.lane.b32.xlu0 %v357, 32
  %v360 = vpop.permute.xlu0 %359
  %v362 = vmul.f32 %v339, %v360
  %364 = vrot.lane.b32.xlu0 %v356, 112
  %v365 = vpop.permute.xlu0 %364
  %367 = vst.msk [vmem:[#allocation3] sm:$0x3] %vm11, %v365
  %369 = vrot.lane.b32.xlu0 %v362, 80
  %v370 = vpop.permute.xlu0 %369
  %372 = vst.msk [vmem:[#allocation2] sm:$0x3] %vm11, %v370
  %s373 = scalar_lea.vmem %s2, 4
  %374 = vst.msk [vmem:[%s373] sm:$0x3] %vm132, %v370
  %s375 = scalar_lea.vmem %s2, 26
  %376 = vst.msk [vmem:[%s375] sm:$0x3] %vm135, %v370
  %s377 = scalar_lea.vmem %s0, 6
  %v378 = vld [vmem:[%s377] sm:$0x3]
  %v379 = vld [vmem:[#allocation2] sm:$0x3]
  %v381 = vsel %vm18, %v379, 0
  %383 = vmatprep.subr.mxu0 0.0
  %384 = vmatpush1.msra.mxu0 0.0
  %385 = vmatprep.subr.mxu0 0.0
  %386 = vmatpush1.msra.mxu0 0.0
  %387 = vmatprep.subr.mxu0 0.0
  %388 = vmatpush1.msra.mxu0 0.0
  %389 = vmatprep.subr.mxu0 0.0
  %390 = vmatpush1.msra.mxu0 0.0
  %391 = vmatprep.subr.mxu0 0.0
  %392 = vmatpush1.msra.mxu0 0.0
  %393 = vmatprep.subr.mxu0 0.0
  %394 = vmatpush1.msra.mxu0 0.0
  %395 = vmatprep.subr.mxu0 0.0
  %396 = vmatpush1.msra.mxu0 0.0
  %397 = vmatprep.subr.mxu0 0.0
  %398 = vmatpush1.msra.mxu0 0.0
  %399 = vmatprep.subr.mxu0 0.0
  %400 = vmatpush1.msra.mxu0 0.0
  %401 = vmatprep.subr.mxu0 0.0
  %402 = vmatpush1.msra.mxu0 0.0
  %403 = vmatprep.subr.mxu0 0.0
  %404 = vmatpush1.msra.mxu0 0.0
  %405 = vmatprep.subr.mxu0 0.0
  %406 = vmatpush1.msra.mxu0 0.0
  %407 = vmatprep.subr.mxu0 0.0
  %408 = vmatpush1.msra.mxu0 0.0
  %409 = vmatprep.subr.mxu0 0.0
  %410 = vmatpush1.msra.mxu0 0.0
  %411 = vmatprep.subr.mxu0 0.0
  %412 = vmatpush1.msra.mxu0 %v15
  %413 = vmatprep.subr.mxu0 0.0
  %414 = vmatpush1.msra.mxu0 %v14
  %415 = vmatprep.subr.mxu0 0.0
  %416 = vmatpush2.msra.mxu0 0.0
  %417 = vmatprep.subr.mxu0 0.0
  %418 = vmatpush2.msra.mxu0 0.0
  %419 = vmatprep.subr.mxu0 0.0
  %420 = vmatpush2.msra.mxu0 0.0
  %421 = vmatprep.subr.mxu0 0.0
  %422 = vmatpush2.msra.mxu0 0.0
  %423 = vmatprep.subr.mxu0 0.0
  %424 = vmatpush2.msra.mxu0 0.0
  %425 = vmatprep.subr.mxu0 0.0
  %426 = vmatpush2.msra.mxu0 0.0
  %427 = vmatprep.subr.mxu0 0.0
  %428 = vmatpush2.msra.mxu0 0.0
  %429 = vmatprep.subr.mxu0 0.0
  %430 = vmatpush2.msra.mxu0 0.0
  %431 = vmatprep.subr.mxu0 0.0
  %432 = vmatpush2.msra.mxu0 0.0
  %433 = vmatprep.subr.mxu0 0.0
  %434 = vmatpush2.msra.mxu0 0.0
  %435 = vmatprep.subr.mxu0 0.0
  %436 = vmatpush2.msra.mxu0 0.0
  %437 = vmatprep.subr.mxu0 0.0
  %438 = vmatpush2.msra.mxu0 0.0
  %439 = vmatprep.subr.mxu0 0.0
  %440 = vmatpush2.msra.mxu0 0.0
  %441 = vmatprep.subr.mxu0 0.0
  %442 = vmatpush2.msra.mxu0 0.0
  %443 = vmatprep.subr.mxu0 0.0
  %444 = vmatpush2.msra.mxu0 0.0
  %445 = vmatprep.subr.mxu0 0.0
  %446 = vmatpush2.msra.mxu0 0.0
  %447 = vmatprep.mubr.f32.mxu0 0.0
  %448 = vmatmul.mubr.f32.gmra.mxu0 %v381
  %v449 = vpop.f32.mrf.mxu0
  %v450 = vadd.f32 0.0, %v449
  %v451 = vpop.f32.mrf.mxu0
  %452 = vdwg.mxu0
  %v453 = vadd.f32 %v378, %v450
  %v454 = vxor.u32 %v453, 2147483648
  %v455 = vmul.f32 %v454, 1.442695
  %v456 = vpow.pop %v455
  %v457 = vadd.f32 %v456, 1.0
  %v458 = vrcp.pop %v457
  %v459 = vmul.f32 1.0, %v458
  %v460 = vtanh.pop %v453
  %v461 = vld [vmem:[#allocation3] sm:$0x3]
  %463 = vrot.lane.b32.xlu0 %v461, 16
  %v464 = vpop.permute.xlu0 %463
  %v466 = vmul.f32 %v459, %v464
  %468 = vrot.lane.b32.xlu0 %v460, 96
  %v469 = vpop.permute.xlu0 %468
  %v471 = vmul.f32 %v459, %v469
  %473 = vrot.lane.b32.xlu0 %v471, 16
  %v474 = vpop.permute.xlu0 %473
  %v476 = vadd.f32 %v466, %v474
  %v477 = vtanh.pop %v476
  %479 = vrot.lane.b32.xlu0 %v477, 32
  %v480 = vpop.permute.xlu0 %479
  %v482 = vmul.f32 %v459, %v480
  %484 = vrot.lane.b32.xlu0 %v476, 112
  %v485 = vpop.permute.xlu0 %484
  %487 = vst.msk [vmem:[#allocation3] sm:$0x3] %vm11, %v485
  %489 = vrot.lane.b32.xlu0 %v482, 80
  %v490 = vpop.permute.xlu0 %489
  %492 = vst.msk [vmem:[#allocation2] sm:$0x3] %vm11, %v490
  %s493 = scalar_lea.vmem %s2, 6
  %494 = vst.msk [vmem:[%s493] sm:$0x3] %vm132, %v490
  %s495 = scalar_lea.vmem %s2, 24
  %496 = vst.msk [vmem:[%s495] sm:$0x3] %vm135, %v490
  %s497 = scalar_lea.vmem %s0, 8
  %v498 = vld [vmem:[%s497] sm:$0x3]
  %v499 = vld [vmem:[#allocation2] sm:$0x3]
  %v501 = vsel %vm18, %v499, 0
  %503 = vmatprep.subr.mxu0 0.0
  %504 = vmatpush1.msra.mxu0 0.0
  %505 = vmatprep.subr.mxu0 0.0
  %506 = vmatpush1.msra.mxu0 0.0
  %507 = vmatprep.subr.mxu0 0.0
  %508 = vmatpush1.msra.mxu0 0.0
  %509 = vmatprep.subr.mxu0 0.0
  %510 = vmatpush1.msra.mxu0 0.0
  %511 = vmatprep.subr.mxu0 0.0
  %512 = vmatpush1.msra.mxu0 0.0
  %513 = vmatprep.subr.mxu0 0.0
  %514 = vmatpush1.msra.mxu0 0.0
  %515 = vmatprep.subr.mxu0 0.0
  %516 = vmatpush1.msra.mxu0 0.0
  %517 = vmatprep.subr.mxu0 0.0
  %518 = vmatpush1.msra.mxu0 0.0
  %519 = vmatprep.subr.mxu0 0.0
  %520 = vmatpush1.msra.mxu0 0.0
  %521 = vmatprep.subr.mxu0 0.0
  %522 = vmatpush1.msra.mxu0 0.0
  %523 = vmatprep.subr.mxu0 0.0
  %524 = vmatpush1.msra.mxu0 0.0
  %525 = vmatprep.subr.mxu0 0.0
  %526 = vmatpush1.msra.mxu0 0.0
  %527 = vmatprep.subr.mxu0 0.0
  %528 = vmatpush1.msra.mxu0 0.0
  %529 = vmatprep.subr.mxu0 0.0
  %530 = vmatpush1.msra.mxu0 0.0
  %531 = vmatprep.subr.mxu0 0.0
  %532 = vmatpush1.msra.mxu0 %v15
  %533 = vmatprep.subr.mxu0 0.0
  %534 = vmatpush1.msra.mxu0 %v14
  %535 = vmatprep.subr.mxu0 0.0
  %536 = vmatpush2.msra.mxu0 0.0
  %537 = vmatprep.subr.mxu0 0.0
  %538 = vmatpush2.msra.mxu0 0.0
  %539 = vmatprep.subr.mxu0 0.0
  %540 = vmatpush2.msra.mxu0 0.0
  %541 = vmatprep.subr.mxu0 0.0
  %542 = vmatpush2.msra.mxu0 0.0
  %543 = vmatprep.subr.mxu0 0.0
  %544 = vmatpush2.msra.mxu0 0.0
  %545 = vmatprep.subr.mxu0 0.0
  %546 = vmatpush2.msra.mxu0 0.0
  %547 = vmatprep.subr.mxu0 0.0
  %548 = vmatpush2.msra.mxu0 0.0
  %549 = vmatprep.subr.mxu0 0.0
  %550 = vmatpush2.msra.mxu0 0.0
  %551 = vmatprep.subr.mxu0 0.0
  %552 = vmatpush2.msra.mxu0 0.0
  %553 = vmatprep.subr.mxu0 0.0
  %554 = vmatpush2.msra.mxu0 0.0
  %555 = vmatprep.subr.mxu0 0.0
  %556 = vmatpush2.msra.mxu0 0.0
  %557 = vmatprep.subr.mxu0 0.0
  %558 = vmatpush2.msra.mxu0 0.0
  %559 = vmatprep.subr.mxu0 0.0
  %560 = vmatpush2.msra.mxu0 0.0
  %561 = vmatprep.subr.mxu0 0.0
  %562 = vmatpush2.msra.mxu0 0.0
  %563 = vmatprep.subr.mxu0 0.0
  %564 = vmatpush2.msra.mxu0 0.0
  %565 = vmatprep.subr.mxu0 0.0
  %566 = vmatpush2.msra.mxu0 0.0
  %567 = vmatprep.mubr.f32.mxu0 0.0
  %568 = vmatmul.mubr.f32.gmra.mxu0 %v501
  %v569 = vpop.f32.mrf.mxu0
  %v570 = vadd.f32 0.0, %v569
  %v571 = vpop.f32.mrf.mxu0
  %572 = vdwg.mxu0
  %v573 = vadd.f32 %v498, %v570
  %v574 = vxor.u32 %v573, 2147483648
  %v575 = vmul.f32 %v574, 1.442695
  %v576 = vpow.pop %v575
  %v577 = vadd.f32 %v576, 1.0
  %v578 = vrcp.pop %v577
  %v579 = vmul.f32 1.0, %v578
  %v580 = vtanh.pop %v573
  %v581 = vld [vmem:[#allocation3] sm:$0x3]
  %583 = vrot.lane.b32.xlu0 %v581, 16
  %v584 = vpop.permute.xlu0 %583
  %v586 = vmul.f32 %v579, %v584
  %588 = vrot.lane.b32.xlu0 %v580, 96
  %v589 = vpop.permute.xlu0 %588
  %v591 = vmul.f32 %v579, %v589
  %593 = vrot.lane.b32.xlu0 %v591, 16
  %v594 = vpop.permute.xlu0 %593
  %v596 = vadd.f32 %v586, %v594
  %v597 = vtanh.pop %v596
  %599 = vrot.lane.b32.xlu0 %v597, 32
  %v600 = vpop.permute.xlu0 %599
  %v602 = vmul.f32 %v579, %v600
  %604 = vrot.lane.b32.xlu0 %v596, 112
  %v605 = vpop.permute.xlu0 %604
  %607 = vst.msk [vmem:[#allocation3] sm:$0x3] %vm11, %v605
  %609 = vrot.lane.b32.xlu0 %v602, 80
  %v610 = vpop.permute.xlu0 %609
  %612 = vst.msk [vmem:[#allocation2] sm:$0x3] %vm11, %v610
  %s613 = scalar_lea.vmem %s2, 8
  %614 = vst.msk [vmem:[%s613] sm:$0x3] %vm132, %v610
  %s615 = scalar_lea.vmem %s2, 22
  %616 = vst.msk [vmem:[%s615] sm:$0x3] %vm135, %v610
  %s617 = scalar_lea.vmem %s0, 10
  %v618 = vld [vmem:[%s617] sm:$0x3]
  %v619 = vld [vmem:[#allocation2] sm:$0x3]
  %v621 = vsel %vm18, %v619, 0
  %623 = vmatprep.subr.mxu0 0.0
  %624 = vmatpush1.msra.mxu0 0.0
  %625 = vmatprep.subr.mxu0 0.0
  %626 = vmatpush1.msra.mxu0 0.0
  %627 = vmatprep.subr.mxu0 0.0
  %628 = vmatpush1.msra.mxu0 0.0
  %629 = vmatprep.subr.mxu0 0.0
  %630 = vmatpush1.msra.mxu0 0.0
  %631 = vmatprep.subr.mxu0 0.0
  %632 = vmatpush1.msra.mxu0 0.0
  %633 = vmatprep.subr.mxu0 0.0
  %634 = vmatpush1.msra.mxu0 0.0
  %635 = vmatprep.subr.mxu0 0.0
  %636 = vmatpush1.msra.mxu0 0.0
  %637 = vmatprep.subr.mxu0 0.0
  %638 = vmatpush1.msra.mxu0 0.0
  %639 = vmatprep.subr.mxu0 0.0
  %640 = vmatpush1.msra.mxu0 0.0
  %641 = vmatprep.subr.mxu0 0.0
  %642 = vmatpush1.msra.mxu0 0.0
  %643 = vmatprep.subr.mxu0 0.0
  %644 = vmatpush1.msra.mxu0 0.0
  %645 = vmatprep.subr.mxu0 0.0
  %646 = vmatpush1.msra.mxu0 0.0
  %647 = vmatprep.subr.mxu0 0.0
  %648 = vmatpush1.msra.mxu0 0.0
  %649 = vmatprep.subr.mxu0 0.0
  %650 = vmatpush1.msra.mxu0 0.0
  %651 = vmatprep.subr.mxu0 0.0
  %652 = vmatpush1.msra.mxu0 %v15
  %653 = vmatprep.subr.mxu0 0.0
  %654 = vmatpush1.msra.mxu0 %v14
  %655 = vmatprep.subr.mxu0 0.0
  %656 = vmatpush2.msra.mxu0 0.0
  %657 = vmatprep.subr.mxu0 0.0
  %658 = vmatpush2.msra.mxu0 0.0
  %659 = vmatprep.subr.mxu0 0.0
  %660 = vmatpush2.msra.mxu0 0.0
  %661 = vmatprep.subr.mxu0 0.0
  %662 = vmatpush2.msra.mxu0 0.0
  %663 = vmatprep.subr.mxu0 0.0
  %664 = vmatpush2.msra.mxu0 0.0
  %665 = vmatprep.subr.mxu0 0.0
  %666 = vmatpush2.msra.mxu0 0.0
  %667 = vmatprep.subr.mxu0 0.0
  %668 = vmatpush2.msra.mxu0 0.0
  %669 = vmatprep.subr.mxu0 0.0
  %670 = vmatpush2.msra.mxu0 0.0
  %671 = vmatprep.subr.mxu0 0.0
  %672 = vmatpush2.msra.mxu0 0.0
  %673 = vmatprep.subr.mxu0 0.0
  %674 = vmatpush2.msra.mxu0 0.0
  %675 = vmatprep.subr.mxu0 0.0
  %676 = vmatpush2.msra.mxu0 0.0
  %677 = vmatprep.subr.mxu0 0.0
  %678 = vmatpush2.msra.mxu0 0.0
  %679 = vmatprep.subr.mxu0 0.0
  %680 = vmatpush2.msra.mxu0 0.0
  %681 = vmatprep.subr.mxu0 0.0
  %682 = vmatpush2.msra.mxu0 0.0
  %683 = vmatprep.subr.mxu0 0.0
  %684 = vmatpush2.msra.mxu0 0.0
  %685 = vmatprep.subr.mxu0 0.0
  %686 = vmatpush2.msra.mxu0 0.0
  %687 = vmatprep.mubr.f32.mxu0 0.0
  %688 = vmatmul.mubr.f32.gmra.mxu0 %v621
  %v689 = vpop.f32.mrf.mxu0
  %v690 = vadd.f32 0.0, %v689
  %v691 = vpop.f32.mrf.mxu0
  %692 = vdwg.mxu0
  %v693 = vadd.f32 %v618, %v690
  %v694 = vxor.u32 %v693, 2147483648
  %v695 = vmul.f32 %v694, 1.442695
  %v696 = vpow.pop %v695
  %v697 = vadd.f32 %v696, 1.0
  %v698 = vrcp.pop %v697
  %v699 = vmul.f32 1.0, %v698
  %v700 = vtanh.pop %v693
  %v701 = vld [vmem:[#allocation3] sm:$0x3]
  %703 = vrot.lane.b32.xlu0 %v701, 16
  %v704 = vpop.permute.xlu0 %703
  %v706 = vmul.f32 %v699, %v704
  %708 = vrot.lane.b32.xlu0 %v700, 96
  %v709 = vpop.permute.xlu0 %708
  %v711 = vmul.f32 %v699, %v709
  %713 = vrot.lane.b32.xlu0 %v711, 16
  %v714 = vpop.permute.xlu0 %713
  %v716 = vadd.f32 %v706, %v714
  %v717 = vtanh.pop %v716
  %719 = vrot.lane.b32.xlu0 %v717, 32
  %v720 = vpop.permute.xlu0 %719
  %v722 = vmul.f32 %v699, %v720
  %724 = vrot.lane.b32.xlu0 %v716, 112
  %v725 = vpop.permute.xlu0 %724
  %727 = vst.msk [vmem:[#allocation3] sm:$0x3] %vm11, %v725
  %729 = vrot.lane.b32.xlu0 %v722, 80
  %v730 = vpop.permute.xlu0 %729
  %732 = vst.msk [vmem:[#allocation2] sm:$0x3] %vm11, %v730
  %s733 = scalar_lea.vmem %s2, 10
  %734 = vst.msk [vmem:[%s733] sm:$0x3] %vm132, %v730
  %s735 = scalar_lea.vmem %s2, 20
  %736 = vst.msk [vmem:[%s735] sm:$0x3] %vm135, %v730
  %s737 = scalar_lea.vmem %s0, 12
  %v738 = vld [vmem:[%s737] sm:$0x3]
  %v739 = vld [vmem:[#allocation2] sm:$0x3]
  %v741 = vsel %vm18, %v739, 0
  %743 = vmatprep.subr.mxu0 0.0
  %744 = vmatpush1.msra.mxu0 0.0
  %745 = vmatprep.subr.mxu0 0.0
  %746 = vmatpush1.msra.mxu0 0.0
  %747 = vmatprep.subr.mxu0 0.0
  %748 = vmatpush1.msra.mxu0 0.0
  %749 = vmatprep.subr.mxu0 0.0
  %750 = vmatpush1.msra.mxu0 0.0
  %751 = vmatprep.subr.mxu0 0.0
  %752 = vmatpush1.msra.mxu0 0.0
  %753 = vmatprep.subr.mxu0 0.0
  %754 = vmatpush1.msra.mxu0 0.0
  %755 = vmatprep.subr.mxu0 0.0
  %756 = vmatpush1.msra.mxu0 0.0
  %757 = vmatprep.subr.mxu0 0.0
  %758 = vmatpush1.msra.mxu0 0.0
  %759 = vmatprep.subr.mxu0 0.0
  %760 = vmatpush1.msra.mxu0 0.0
  %761 = vmatprep.subr.mxu0 0.0
  %762 = vmatpush1.msra.mxu0 0.0
  %763 = vmatprep.subr.mxu0 0.0
  %764 = vmatpush1.msra.mxu0 0.0
  %765 = vmatprep.subr.mxu0 0.0
  %766 = vmatpush1.msra.mxu0 0.0
  %767 = vmatprep.subr.mxu0 0.0
  %768 = vmatpush1.msra.mxu0 0.0
  %769 = vmatprep.subr.mxu0 0.0
  %770 = vmatpush1.msra.mxu0 0.0
  %771 = vmatprep.subr.mxu0 0.0
  %772 = vmatpush1.msra.mxu0 %v15
  %773 = vmatprep.subr.mxu0 0.0
  %774 = vmatpush1.msra.mxu0 %v14
  %775 = vmatprep.subr.mxu0 0.0
  %776 = vmatpush2.msra.mxu0 0.0
  %777 = vmatprep.subr.mxu0 0.0
  %778 = vmatpush2.msra.mxu0 0.0
  %779 = vmatprep.subr.mxu0 0.0
  %780 = vmatpush2.msra.mxu0 0.0
  %781 = vmatprep.subr.mxu0 0.0
  %782 = vmatpush2.msra.mxu0 0.0
  %783 = vmatprep.subr.mxu0 0.0
  %784 = vmatpush2.msra.mxu0 0.0
  %785 = vmatprep.subr.mxu0 0.0
  %786 = vmatpush2.msra.mxu0 0.0
  %787 = vmatprep.subr.mxu0 0.0
  %788 = vmatpush2.msra.mxu0 0.0
  %789 = vmatprep.subr.mxu0 0.0
  %790 = vmatpush2.msra.mxu0 0.0
  %791 = vmatprep.subr.mxu0 0.0
  %792 = vmatpush2.msra.mxu0 0.0
  %793 = vmatprep.subr.mxu0 0.0
  %794 = vmatpush2.msra.mxu0 0.0
  %795 = vmatprep.subr.mxu0 0.0
  %796 = vmatpush2.msra.mxu0 0.0
  %797 = vmatprep.subr.mxu0 0.0
  %798 = vmatpush2.msra.mxu0 0.0
  %799 = vmatprep.subr.mxu0 0.0
  %800 = vmatpush2.msra.mxu0 0.0
  %801 = vmatprep.subr.mxu0 0.0
  %802 = vmatpush2.msra.mxu0 0.0
  %803 = vmatprep.subr.mxu0 0.0
  %804 = vmatpush2.msra.mxu0 0.0
  %805 = vmatprep.subr.mxu0 0.0
  %806 = vmatpush2.msra.mxu0 0.0
  %807 = vmatprep.mubr.f32.mxu0 0.0
  %808 = vmatmul.mubr.f32.gmra.mxu0 %v741
  %v809 = vpop.f32.mrf.mxu0
  %v810 = vadd.f32 0.0, %v809
  %v811 = vpop.f32.mrf.mxu0
  %812 = vdwg.mxu0
  %v813 = vadd.f32 %v738, %v810
  %v814 = vxor.u32 %v813, 2147483648
  %v815 = vmul.f32 %v814, 1.442695
  %v816 = vpow.pop %v815
  %v817 = vadd.f32 %v816, 1.0
  %v818 = vrcp.pop %v817
  %v819 = vmul.f32 1.0, %v818
  %v820 = vtanh.pop %v813
  %v821 = vld [vmem:[#allocation3] sm:$0x3]
  %823 = vrot.lane.b32.xlu0 %v821, 16
  %v824 = vpop.permute.xlu0 %823
  %v826 = vmul.f32 %v819, %v824
  %828 = vrot.lane.b32.xlu0 %v820, 96
  %v829 = vpop.permute.xlu0 %828
  %v831 = vmul.f32 %v819, %v829
  %833 = vrot.lane.b32.xlu0 %v831, 16
  %v834 = vpop.permute.xlu0 %833
  %v836 = vadd.f32 %v826, %v834
  %v837 = vtanh.pop %v836
  %839 = vrot.lane.b32.xlu0 %v837, 32
  %v840 = vpop.permute.xlu0 %839
  %v842 = vmul.f32 %v819, %v840
  %844 = vrot.lane.b32.xlu0 %v836, 112
  %v845 = vpop.permute.xlu0 %844
  %847 = vst.msk [vmem:[#allocation3] sm:$0x3] %vm11, %v845
  %849 = vrot.lane.b32.xlu0 %v842, 80
  %v850 = vpop.permute.xlu0 %849
  %852 = vst.msk [vmem:[#allocation2] sm:$0x3] %vm11, %v850
  %s853 = scalar_lea.vmem %s2, 12
  %854 = vst.msk [vmem:[%s853] sm:$0x3] %vm132, %v850
  %s855 = scalar_lea.vmem %s2, 18
  %856 = vst.msk [vmem:[%s855] sm:$0x3] %vm135, %v850
  %s857 = scalar_lea.vmem %s0, 14
  %v858 = vld [vmem:[%s857] sm:$0x3]
  %v859 = vld [vmem:[#allocation2] sm:$0x3]
  %v861 = vsel %vm18, %v859, 0
  %863 = vmatprep.subr.mxu0 0.0
  %864 = vmatpush1.msra.mxu0 0.0
  %865 = vmatprep.subr.mxu0 0.0
  %866 = vmatpush1.msra.mxu0 0.0
  %867 = vmatprep.subr.mxu0 0.0
  %868 = vmatpush1.msra.mxu0 0.0
  %869 = vmatprep.subr.mxu0 0.0
  %870 = vmatpush1.msra.mxu0 0.0
  %871 = vmatprep.subr.mxu0 0.0
  %872 = vmatpush1.msra.mxu0 0.0
  %873 = vmatprep.subr.mxu0 0.0
  %874 = vmatpush1.msra.mxu0 0.0
  %875 = vmatprep.subr.mxu0 0.0
  %876 = vmatpush1.msra.mxu0 0.0
  %877 = vmatprep.subr.mxu0 0.0
  %878 = vmatpush1.msra.mxu0 0.0
  %879 = vmatprep.subr.mxu0 0.0
  %880 = vmatpush1.msra.mxu0 0.0
  %881 = vmatprep.subr.mxu0 0.0
  %882 = vmatpush1.msra.mxu0 0.0
  %883 = vmatprep.subr.mxu0 0.0
  %884 = vmatpush1.msra.mxu0 0.0
  %885 = vmatprep.subr.mxu0 0.0
  %886 = vmatpush1.msra.mxu0 0.0
  %887 = vmatprep.subr.mxu0 0.0
  %888 = vmatpush1.msra.mxu0 0.0
  %889 = vmatprep.subr.mxu0 0.0
  %890 = vmatpush1.msra.mxu0 0.0
  %891 = vmatprep.subr.mxu0 0.0
  %892 = vmatpush1.msra.mxu0 %v15
  %893 = vmatprep.subr.mxu0 0.0
  %894 = vmatpush1.msra.mxu0 %v14
  %895 = vmatprep.subr.mxu0 0.0
  %896 = vmatpush2.msra.mxu0 0.0
  %897 = vmatprep.subr.mxu0 0.0
  %898 = vmatpush2.msra.mxu0 0.0
  %899 = vmatprep.subr.mxu0 0.0
  %900 = vmatpush2.msra.mxu0 0.0
  %901 = vmatprep.subr.mxu0 0.0
  %902 = vmatpush2.msra.mxu0 0.0
  %903 = vmatprep.subr.mxu0 0.0
  %904 = vmatpush2.msra.mxu0 0.0
  %905 = vmatprep.subr.mxu0 0.0
  %906 = vmatpush2.msra.mxu0 0.0
  %907 = vmatprep.subr.mxu0 0.0
  %908 = vmatpush2.msra.mxu0 0.0
  %909 = vmatprep.subr.mxu0 0.0
  %910 = vmatpush2.msra.mxu0 0.0
  %911 = vmatprep.subr.mxu0 0.0
  %912 = vmatpush2.msra.mxu0 0.0
  %913 = vmatprep.subr.mxu0 0.0
  %914 = vmatpush2.msra.mxu0 0.0
  %915 = vmatprep.subr.mxu0 0.0
  %916 = vmatpush2.msra.mxu0 0.0
  %917 = vmatprep.subr.mxu0 0.0
  %918 = vmatpush2.msra.mxu0 0.0
  %919 = vmatprep.subr.mxu0 0.0
  %920 = vmatpush2.msra.mxu0 0.0
  %921 = vmatprep.subr.mxu0 0.0
  %922 = vmatpush2.msra.mxu0 0.0
  %923 = vmatprep.subr.mxu0 0.0
  %924 = vmatpush2.msra.mxu0 0.0
  %925 = vmatprep.subr.mxu0 0.0
  %926 = vmatpush2.msra.mxu0 0.0
  %927 = vmatprep.mubr.f32.mxu0 0.0
  %928 = vmatmul.mubr.f32.gmra.mxu0 %v861
  %v929 = vpop.f32.mrf.mxu0
  %v930 = vadd.f32 0.0, %v929
  %v931 = vpop.f32.mrf.mxu0
  %932 = vdwg.mxu0
  %v933 = vadd.f32 %v858, %v930
  %v934 = vxor.u32 %v933, 2147483648
  %v935 = vmul.f32 %v934, 1.442695
  %v936 = vpow.pop %v935
  %v937 = vadd.f32 %v936, 1.0
  %v938 = vrcp.pop %v937
  %v939 = vmul.f32 1.0, %v938
  %v940 = vtanh.pop %v933
  %v941 = vld [vmem:[#allocation3] sm:$0x3]
  %943 = vrot.lane.b32.xlu0 %v941, 16
  %v944 = vpop.permute.xlu0 %943
  %v946 = vmul.f32 %v939, %v944
  %948 = vrot.lane.b32.xlu0 %v940, 96
  %v949 = vpop.permute.xlu0 %948
  %v951 = vmul.f32 %v939, %v949
  %953 = vrot.lane.b32.xlu0 %v951, 16
  %v954 = vpop.permute.xlu0 %953
  %v956 = vadd.f32 %v946, %v954
  %v957 = vtanh.pop %v956
  %959 = vrot.lane.b32.xlu0 %v957, 32
  %v960 = vpop.permute.xlu0 %959
  %v962 = vmul.f32 %v939, %v960
  %964 = vrot.lane.b32.xlu0 %v956, 112
  %v965 = vpop.permute.xlu0 %964
  %967 = vst.msk [vmem:[#allocation3] sm:$0x3] %vm11, %v965
  %969 = vrot.lane.b32.xlu0 %v962, 80
  %v970 = vpop.permute.xlu0 %969
  %972 = vst.msk [vmem:[#allocation2] sm:$0x3] %vm11, %v970
  %s973 = scalar_lea.vmem %s2, 14
  %974 = vst.msk [vmem:[%s973] sm:$0x3] %vm132, %v970
  %s975 = scalar_lea.vmem %s2, 16
  %976 = vst.msk [vmem:[%s975] sm:$0x3] %vm135, %v970
  %s977 = scalar_lea.vmem %s0, 16
  %v978 = vld [vmem:[%s977] sm:$0x3]
  %v979 = vld [vmem:[#allocation2] sm:$0x3]
  %v981 = vsel %vm18, %v979, 0
  %983 = vmatprep.subr.mxu0 0.0
  %984 = vmatpush1.msra.mxu0 0.0
  %985 = vmatprep.subr.mxu0 0.0
  %986 = vmatpush1.msra.mxu0 0.0
  %987 = vmatprep.subr.mxu0 0.0
  %988 = vmatpush1.msra.mxu0 0.0
  %989 = vmatprep.subr.mxu0 0.0
  %990 = vmatpush1.msra.mxu0 0.0
  %991 = vmatprep.subr.mxu0 0.0
  %992 = vmatpush1.msra.mxu0 0.0
  %993 = vmatprep.subr.mxu0 0.0
  %994 = vmatpush1.msra.mxu0 0.0
  %995 = vmatprep.subr.mxu0 0.0
  %996 = vmatpush1.msra.mxu0 0.0
  %997 = vmatprep.subr.mxu0 0.0
  %998 = vmatpush1.msra.mxu0 0.0
  %999 = vmatprep.subr.mxu0 0.0
  %1000 = vmatpush1.msra.mxu0 0.0
  %1001 = vmatprep.subr.mxu0 0.0
  %1002 = vmatpush1.msra.mxu0 0.0
  %1003 = vmatprep.subr.mxu0 0.0
  %1004 = vmatpush1.msra.mxu0 0.0
  %1005 = vmatprep.subr.mxu0 0.0
  %1006 = vmatpush1.msra.mxu0 0.0
  %1007 = vmatprep.subr.mxu0 0.0
  %1008 = vmatpush1.msra.mxu0 0.0
  %1009 = vmatprep.subr.mxu0 0.0
  %1010 = vmatpush1.msra.mxu0 0.0
  %1011 = vmatprep.subr.mxu0 0.0
  %1012 = vmatpush1.msra.mxu0 %v15
  %1013 = vmatprep.subr.mxu0 0.0
  %1014 = vmatpush1.msra.mxu0 %v14
  %1015 = vmatprep.subr.mxu0 0.0
  %1016 = vmatpush2.msra.mxu0 0.0
  %1017 = vmatprep.subr.mxu0 0.0
  %1018 = vmatpush2.msra.mxu0 0.0
  %1019 = vmatprep.subr.mxu0 0.0
  %1020 = vmatpush2.msra.mxu0 0.0
  %1021 = vmatprep.subr.mxu0 0.0
  %1022 = vmatpush2.msra.mxu0 0.0
  %1023 = vmatprep.subr.mxu0 0.0
  %1024 = vmatpush2.msra.mxu0 0.0
  %1025 = vmatprep.subr.mxu0 0.0
  %1026 = vmatpush2.msra.mxu0 0.0
  %1027 = vmatprep.subr.mxu0 0.0
  %1028 = vmatpush2.msra.mxu0 0.0
  %1029 = vmatprep.subr.mxu0 0.0
  %1030 = vmatpush2.msra.mxu0 0.0
  %1031 = vmatprep.subr.mxu0 0.0
  %1032 = vmatpush2.msra.mxu0 0.0
  %1033 = vmatprep.subr.mxu0 0.0
  %1034 = vmatpush2.msra.mxu0 0.0
  %1035 = vmatprep.subr.mxu0 0.0
  %1036 = vmatpush2.msra.mxu0 0.0
  %1037 = vmatprep.subr.mxu0 0.0
  %1038 = vmatpush2.msra.mxu0 0.0
  %1039 = vmatprep.subr.mxu0 0.0
  %1040 = vmatpush2.msra.mxu0 0.0
  %1041 = vmatprep.subr.mxu0 0.0
  %1042 = vmatpush2.msra.mxu0 0.0
  %1043 = vmatprep.subr.mxu0 0.0
  %1044 = vmatpush2.msra.mxu0 0.0
  %1045 = vmatprep.subr.mxu0 0.0
  %1046 = vmatpush2.msra.mxu0 0.0
  %1047 = vmatprep.mubr.f32.mxu0 0.0
  %1048 = vmatmul.mubr.f32.gmra.mxu0 %v981
  %v1049 = vpop.f32.mrf.mxu0
  %v1050 = vadd.f32 0.0, %v1049
  %v1051 = vpop.f32.mrf.mxu0
  %1052 = vdwg.mxu0
  %v1053 = vadd.f32 %v978, %v1050
  %v1054 = vxor.u32 %v1053, 2147483648
  %v1055 = vmul.f32 %v1054, 1.442695
  %v1056 = vpow.pop %v1055
  %v1057 = vadd.f32 %v1056, 1.0
  %v1058 = vrcp.pop %v1057
  %v1059 = vmul.f32 1.0, %v1058
  %v1060 = vtanh.pop %v1053
  %v1061 = vld [vmem:[#allocation3] sm:$0x3]
  %1063 = vrot.lane.b32.xlu0 %v1061, 16
  %v1064 = vpop.permute.xlu0 %1063
  %v1066 = vmul.f32 %v1059, %v1064
  %1068 = vrot.lane.b32.xlu0 %v1060, 96
  %v1069 = vpop.permute.xlu0 %1068
  %v1071 = vmul.f32 %v1059, %v1069
  %1073 = vrot.lane.b32.xlu0 %v1071, 16
  %v1074 = vpop.permute.xlu0 %1073
  %v1076 = vadd.f32 %v1066, %v1074
  %v1077 = vtanh.pop %v1076
  %1079 = vrot.lane.b32.xlu0 %v1077, 32
  %v1080 = vpop.permute.xlu0 %1079
  %v1082 = vmul.f32 %v1059, %v1080
  %1084 = vrot.lane.b32.xlu0 %v1076, 112
  %v1085 = vpop.permute.xlu0 %1084
  %1087 = vst.msk [vmem:[#allocation3] sm:$0x3] %vm11, %v1085
  %1089 = vrot.lane.b32.xlu0 %v1082, 80
  %v1090 = vpop.permute.xlu0 %1089
  %1092 = vst.msk [vmem:[#allocation2] sm:$0x3] %vm11, %v1090
  %1093 = vst.msk [vmem:[%s975] sm:$0x3] %vm132, %v1090
  %1094 = vst.msk [vmem:[%s973] sm:$0x3] %vm135, %v1090
  %s1095 = scalar_lea.vmem %s0, 18
  %v1096 = vld [vmem:[%s1095] sm:$0x3]
  %v1097 = vld [vmem:[#allocation2] sm:$0x3]
  %v1099 = vsel %vm18, %v1097, 0
  %1101 = vmatprep.subr.mxu0 0.0
  %1102 = vmatpush1.msra.mxu0 0.0
  %1103 = vmatprep.subr.mxu0 0.0
  %1104 = vmatpush1.msra.mxu0 0.0
  %1105 = vmatprep.subr.mxu0 0.0
  %1106 = vmatpush1.msra.mxu0 0.0
  %1107 = vmatprep.subr.mxu0 0.0
  %1108 = vmatpush1.msra.mxu0 0.0
  %1109 = vmatprep.subr.mxu0 0.0
  %1110 = vmatpush1.msra.mxu0 0.0
  %1111 = vmatprep.subr.mxu0 0.0
  %1112 = vmatpush1.msra.mxu0 0.0
  %1113 = vmatprep.subr.mxu0 0.0
  %1114 = vmatpush1.msra.mxu0 0.0
  %1115 = vmatprep.subr.mxu0 0.0
  %1116 = vmatpush1.msra.mxu0 0.0
  %1117 = vmatprep.subr.mxu0 0.0
  %1118 = vmatpush1.msra.mxu0 0.0
  %1119 = vmatprep.subr.mxu0 0.0
  %1120 = vmatpush1.msra.mxu0 0.0
  %1121 = vmatprep.subr.mxu0 0.0
  %1122 = vmatpush1.msra.mxu0 0.0
  %1123 = vmatprep.subr.mxu0 0.0
  %1124 = vmatpush1.msra.mxu0 0.0
  %1125 = vmatprep.subr.mxu0 0.0
  %1126 = vmatpush1.msra.mxu0 0.0
  %1127 = vmatprep.subr.mxu0 0.0
  %1128 = vmatpush1.msra.mxu0 0.0
  %1129 = vmatprep.subr.mxu0 0.0
  %1130 = vmatpush1.msra.mxu0 %v15
  %1131 = vmatprep.subr.mxu0 0.0
  %1132 = vmatpush1.msra.mxu0 %v14
  %1133 = vmatprep.subr.mxu0 0.0
  %1134 = vmatpush2.msra.mxu0 0.0
  %1135 = vmatprep.subr.mxu0 0.0
  %1136 = vmatpush2.msra.mxu0 0.0
  %1137 = vmatprep.subr.mxu0 0.0
  %1138 = vmatpush2.msra.mxu0 0.0
  %1139 = vmatprep.subr.mxu0 0.0
  %1140 = vmatpush2.msra.mxu0 0.0
  %1141 = vmatprep.subr.mxu0 0.0
  %1142 = vmatpush2.msra.mxu0 0.0
  %1143 = vmatprep.subr.mxu0 0.0
  %1144 = vmatpush2.msra.mxu0 0.0
  %1145 = vmatprep.subr.mxu0 0.0
  %1146 = vmatpush2.msra.mxu0 0.0
  %1147 = vmatprep.subr.mxu0 0.0
  %1148 = vmatpush2.msra.mxu0 0.0
  %1149 = vmatprep.subr.mxu0 0.0
  %1150 = vmatpush2.msra.mxu0 0.0
  %1151 = vmatprep.subr.mxu0 0.0
  %1152 = vmatpush2.msra.mxu0 0.0
  %1153 = vmatprep.subr.mxu0 0.0
  %1154 = vmatpush2.msra.mxu0 0.0
  %1155 = vmatprep.subr.mxu0 0.0
  %1156 = vmatpush2.msra.mxu0 0.0
  %1157 = vmatprep.subr.mxu0 0.0
  %1158 = vmatpush2.msra.mxu0 0.0
  %1159 = vmatprep.subr.mxu0 0.0
  %1160 = vmatpush2.msra.mxu0 0.0
  %1161 = vmatprep.subr.mxu0 0.0
  %1162 = vmatpush2.msra.mxu0 0.0
  %1163 = vmatprep.subr.mxu0 0.0
  %1164 = vmatpush2.msra.mxu0 0.0
  %1165 = vmatprep.mubr.f32.mxu0 0.0
  %1166 = vmatmul.mubr.f32.gmra.mxu0 %v1099
  %v1167 = vpop.f32.mrf.mxu0
  %v1168 = vadd.f32 0.0, %v1167
  %v1169 = vpop.f32.mrf.mxu0
  %1170 = vdwg.mxu0
  %v1171 = vadd.f32 %v1096, %v1168
  %v1172 = vxor.u32 %v1171, 2147483648
  %v1173 = vmul.f32 %v1172, 1.442695
  %v1174 = vpow.pop %v1173
  %v1175 = vadd.f32 %v1174, 1.0
  %v1176 = vrcp.pop %v1175
  %v1177 = vmul.f32 1.0, %v1176
  %v1178 = vtanh.pop %v1171
  %v1179 = vld [vmem:[#allocation3] sm:$0x3]
  %1181 = vrot.lane.b32.xlu0 %v1179, 16
  %v1182 = vpop.permute.xlu0 %1181
  %v1184 = vmul.f32 %v1177, %v1182
  %1186 = vrot.lane.b32.xlu0 %v1178, 96
  %v1187 = vpop.permute.xlu0 %1186
  %v1189 = vmul.f32 %v1177, %v1187
  %1191 = vrot.lane.b32.xlu0 %v1189, 16
  %v1192 = vpop.permute.xlu0 %1191
  %v1194 = vadd.f32 %v1184, %v1192
  %v1195 = vtanh.pop %v1194
  %1197 = vrot.lane.b32.xlu0 %v1195, 32
  %v1198 = vpop.permute.xlu0 %1197
  %v1200 = vmul.f32 %v1177, %v1198
  %1202 = vrot.lane.b32.xlu0 %v1194, 112
  %v1203 = vpop.permute.xlu0 %1202
  %1205 = vst.msk [vmem:[#allocation3] sm:$0x3] %vm11, %v1203
  %1207 = vrot.lane.b32.xlu0 %v1200, 80
  %v1208 = vpop.permute.xlu0 %1207
  %1210 = vst.msk [vmem:[#allocation2] sm:$0x3] %vm11, %v1208
  %1211 = vst.msk [vmem:[%s855] sm:$0x3] %vm132, %v1208
  %1212 = vst.msk [vmem:[%s853] sm:$0x3] %vm135, %v1208
  %s1213 = scalar_lea.vmem %s0, 20
  %v1214 = vld [vmem:[%s1213] sm:$0x3]
  %v1215 = vld [vmem:[#allocation2] sm:$0x3]
  %v1217 = vsel %vm18, %v1215, 0
  %1219 = vmatprep.subr.mxu0 0.0
  %1220 = vmatpush1.msra.mxu0 0.0
  %1221 = vmatprep.subr.mxu0 0.0
  %1222 = vmatpush1.msra.mxu0 0.0
  %1223 = vmatprep.subr.mxu0 0.0
  %1224 = vmatpush1.msra.mxu0 0.0
  %1225 = vmatprep.subr.mxu0 0.0
  %1226 = vmatpush1.msra.mxu0 0.0
  %1227 = vmatprep.subr.mxu0 0.0
  %1228 = vmatpush1.msra.mxu0 0.0
  %1229 = vmatprep.subr.mxu0 0.0
  %1230 = vmatpush1.msra.mxu0 0.0
  %1231 = vmatprep.subr.mxu0 0.0
  %1232 = vmatpush1.msra.mxu0 0.0
  %1233 = vmatprep.subr.mxu0 0.0
  %1234 = vmatpush1.msra.mxu0 0.0
  %1235 = vmatprep.subr.mxu0 0.0
  %1236 = vmatpush1.msra.mxu0 0.0
  %1237 = vmatprep.subr.mxu0 0.0
  %1238 = vmatpush1.msra.mxu0 0.0
  %1239 = vmatprep.subr.mxu0 0.0
  %1240 = vmatpush1.msra.mxu0 0.0
  %1241 = vmatprep.subr.mxu0 0.0
  %1242 = vmatpush1.msra.mxu0 0.0
  %1243 = vmatprep.subr.mxu0 0.0
  %1244 = vmatpush1.msra.mxu0 0.0
  %1245 = vmatprep.subr.mxu0 0.0
  %1246 = vmatpush1.msra.mxu0 0.0
  %1247 = vmatprep.subr.mxu0 0.0
  %1248 = vmatpush1.msra.mxu0 %v15
  %1249 = vmatprep.subr.mxu0 0.0
  %1250 = vmatpush1.msra.mxu0 %v14
  %1251 = vmatprep.subr.mxu0 0.0
  %1252 = vmatpush2.msra.mxu0 0.0
  %1253 = vmatprep.subr.mxu0 0.0
  %1254 = vmatpush2.msra.mxu0 0.0
  %1255 = vmatprep.subr.mxu0 0.0
  %1256 = vmatpush2.msra.mxu0 0.0
  %1257 = vmatprep.subr.mxu0 0.0
  %1258 = vmatpush2.msra.mxu0 0.0
  %1259 = vmatprep.subr.mxu0 0.0
  %1260 = vmatpush2.msra.mxu0 0.0
  %1261 = vmatprep.subr.mxu0 0.0
  %1262 = vmatpush2.msra.mxu0 0.0
  %1263 = vmatprep.subr.mxu0 0.0
  %1264 = vmatpush2.msra.mxu0 0.0
  %1265 = vmatprep.subr.mxu0 0.0
  %1266 = vmatpush2.msra.mxu0 0.0
  %1267 = vmatprep.subr.mxu0 0.0
  %1268 = vmatpush2.msra.mxu0 0.0
  %1269 = vmatprep.subr.mxu0 0.0
  %1270 = vmatpush2.msra.mxu0 0.0
  %1271 = vmatprep.subr.mxu0 0.0
  %1272 = vmatpush2.msra.mxu0 0.0
  %1273 = vmatprep.subr.mxu0 0.0
  %1274 = vmatpush2.msra.mxu0 0.0
  %1275 = vmatprep.subr.mxu0 0.0
  %1276 = vmatpush2.msra.mxu0 0.0
  %1277 = vmatprep.subr.mxu0 0.0
  %1278 = vmatpush2.msra.mxu0 0.0
  %1279 = vmatprep.subr.mxu0 0.0
  %1280 = vmatpush2.msra.mxu0 0.0
  %1281 = vmatprep.subr.mxu0 0.0
  %1282 = vmatpush2.msra.mxu0 0.0
  %1283 = vmatprep.mubr.f32.mxu0 0.0
  %1284 = vmatmul.mubr.f32.gmra.mxu0 %v1217
  %v1285 = vpop.f32.mrf.mxu0
  %v1286 = vadd.f32 0.0, %v1285
  %v1287 = vpop.f32.mrf.mxu0
  %1288 = vdwg.mxu0
  %v1289 = vadd.f32 %v1214, %v1286
  %v1290 = vxor.u32 %v1289, 2147483648
  %v1291 = vmul.f32 %v1290, 1.442695
  %v1292 = vpow.pop %v1291
  %v1293 = vadd.f32 %v1292, 1.0
  %v1294 = vrcp.pop %v1293
  %v1295 = vmul.f32 1.0, %v1294
  %v1296 = vtanh.pop %v1289
  %v1297 = vld [vmem:[#allocation3] sm:$0x3]
  %1299 = vrot.lane.b32.xlu0 %v1297, 16
  %v1300 = vpop.permute.xlu0 %1299
  %v1302 = vmul.f32 %v1295, %v1300
  %1304 = vrot.lane.b32.xlu0 %v1296, 96
  %v1305 = vpop.permute.xlu0 %1304
  %v1307 = vmul.f32 %v1295, %v1305
  %1309 = vrot.lane.b32.xlu0 %v1307, 16
  %v1310 = vpop.permute.xlu0 %1309
  %v1312 = vadd.f32 %v1302, %v1310
  %v1313 = vtanh.pop %v1312
  %1315 = vrot.lane.b32.xlu0 %v1313, 32
  %v1316 = vpop.permute.xlu0 %1315
  %v1318 = vmul.f32 %v1295, %v1316
  %1320 = vrot.lane.b32.xlu0 %v1312, 112
  %v1321 = vpop.permute.xlu0 %1320
  %1323 = vst.msk [vmem:[#allocation3] sm:$0x3] %vm11, %v1321
  %1325 = vrot.lane.b32.xlu0 %v1318, 80
  %v1326 = vpop.permute.xlu0 %1325
  %1328 = vst.msk [vmem:[#allocation2] sm:$0x3] %vm11, %v1326
  %1329 = vst.msk [vmem:[%s735] sm:$0x3] %vm132, %v1326
  %1330 = vst.msk [vmem:[%s733] sm:$0x3] %vm135, %v1326
  %s1331 = scalar_lea.vmem %s0, 22
  %v1332 = vld [vmem:[%s1331] sm:$0x3]
  %v1333 = vld [vmem:[#allocation2] sm:$0x3]
  %v1335 = vsel %vm18, %v1333, 0
  %1337 = vmatprep.subr.mxu0 0.0
  %1338 = vmatpush1.msra.mxu0 0.0
  %1339 = vmatprep.subr.mxu0 0.0
  %1340 = vmatpush1.msra.mxu0 0.0
  %1341 = vmatprep.subr.mxu0 0.0
  %1342 = vmatpush1.msra.mxu0 0.0
  %1343 = vmatprep.subr.mxu0 0.0
  %1344 = vmatpush1.msra.mxu0 0.0
  %1345 = vmatprep.subr.mxu0 0.0
  %1346 = vmatpush1.msra.mxu0 0.0
  %1347 = vmatprep.subr.mxu0 0.0
  %1348 = vmatpush1.msra.mxu0 0.0
  %1349 = vmatprep.subr.mxu0 0.0
  %1350 = vmatpush1.msra.mxu0 0.0
  %1351 = vmatprep.subr.mxu0 0.0
  %1352 = vmatpush1.msra.mxu0 0.0
  %1353 = vmatprep.subr.mxu0 0.0
  %1354 = vmatpush1.msra.mxu0 0.0
  %1355 = vmatprep.subr.mxu0 0.0
  %1356 = vmatpush1.msra.mxu0 0.0
  %1357 = vmatprep.subr.mxu0 0.0
  %1358 = vmatpush1.msra.mxu0 0.0
  %1359 = vmatprep.subr.mxu0 0.0
  %1360 = vmatpush1.msra.mxu0 0.0
  %1361 = vmatprep.subr.mxu0 0.0
  %1362 = vmatpush1.msra.mxu0 0.0
  %1363 = vmatprep.subr.mxu0 0.0
  %1364 = vmatpush1.msra.mxu0 0.0
  %1365 = vmatprep.subr.mxu0 0.0
  %1366 = vmatpush1.msra.mxu0 %v15
  %1367 = vmatprep.subr.mxu0 0.0
  %1368 = vmatpush1.msra.mxu0 %v14
  %1369 = vmatprep.subr.mxu0 0.0
  %1370 = vmatpush2.msra.mxu0 0.0
  %1371 = vmatprep.subr.mxu0 0.0
  %1372 = vmatpush2.msra.mxu0 0.0
  %1373 = vmatprep.subr.mxu0 0.0
  %1374 = vmatpush2.msra.mxu0 0.0
  %1375 = vmatprep.subr.mxu0 0.0
  %1376 = vmatpush2.msra.mxu0 0.0
  %1377 = vmatprep.subr.mxu0 0.0
  %1378 = vmatpush2.msra.mxu0 0.0
  %1379 = vmatprep.subr.mxu0 0.0
  %1380 = vmatpush2.msra.mxu0 0.0
  %1381 = vmatprep.subr.mxu0 0.0
  %1382 = vmatpush2.msra.mxu0 0.0
  %1383 = vmatprep.subr.mxu0 0.0
  %1384 = vmatpush2.msra.mxu0 0.0
  %1385 = vmatprep.subr.mxu0 0.0
  %1386 = vmatpush2.msra.mxu0 0.0
  %1387 = vmatprep.subr.mxu0 0.0
  %1388 = vmatpush2.msra.mxu0 0.0
  %1389 = vmatprep.subr.mxu0 0.0
  %1390 = vmatpush2.msra.mxu0 0.0
  %1391 = vmatprep.subr.mxu0 0.0
  %1392 = vmatpush2.msra.mxu0 0.0
  %1393 = vmatprep.subr.mxu0 0.0
  %1394 = vmatpush2.msra.mxu0 0.0
  %1395 = vmatprep.subr.mxu0 0.0
  %1396 = vmatpush2.msra.mxu0 0.0
  %1397 = vmatprep.subr.mxu0 0.0
  %1398 = vmatpush2.msra.mxu0 0.0
  %1399 = vmatprep.subr.mxu0 0.0
  %1400 = vmatpush2.msra.mxu0 0.0
  %1401 = vmatprep.mubr.f32.mxu0 0.0
  %1402 = vmatmul.mubr.f32.gmra.mxu0 %v1335
  %v1403 = vpop.f32.mrf.mxu0
  %v1404 = vadd.f32 0.0, %v1403
  %v1405 = vpop.f32.mrf.mxu0
  %1406 = vdwg.mxu0
  %v1407 = vadd.f32 %v1332, %v1404
  %v1408 = vxor.u32 %v1407, 2147483648
  %v1409 = vmul.f32 %v1408, 1.442695
  %v1410 = vpow.pop %v1409
  %v1411 = vadd.f32 %v1410, 1.0
  %v1412 = vrcp.pop %v1411
  %v1413 = vmul.f32 1.0, %v1412
  %v1414 = vtanh.pop %v1407
  %v1415 = vld [vmem:[#allocation3] sm:$0x3]
  %1417 = vrot.lane.b32.xlu0 %v1415, 16
  %v1418 = vpop.permute.xlu0 %1417
  %v1420 = vmul.f32 %v1413, %v1418
  %1422 = vrot.lane.b32.xlu0 %v1414, 96
  %v1423 = vpop.permute.xlu0 %1422
  %v1425 = vmul.f32 %v1413, %v1423
  %1427 = vrot.lane.b32.xlu0 %v1425, 16
  %v1428 = vpop.permute.xlu0 %1427
  %v1430 = vadd.f32 %v1420, %v1428
  %v1431 = vtanh.pop %v1430
  %1433 = vrot.lane.b32.xlu0 %v1431, 32
  %v1434 = vpop.permute.xlu0 %1433
  %v1436 = vmul.f32 %v1413, %v1434
  %1438 = vrot.lane.b32.xlu0 %v1430, 112
  %v1439 = vpop.permute.xlu0 %1438
  %1441 = vst.msk [vmem:[#allocation3] sm:$0x3] %vm11, %v1439
  %1443 = vrot.lane.b32.xlu0 %v1436, 80
  %v1444 = vpop.permute.xlu0 %1443
  %1446 = vst.msk [vmem:[#allocation2] sm:$0x3] %vm11, %v1444
  %1447 = vst.msk [vmem:[%s615] sm:$0x3] %vm132, %v1444
  %1448 = vst.msk [vmem:[%s613] sm:$0x3] %vm135, %v1444
  %s1449 = scalar_lea.vmem %s0, 24
  %v1450 = vld [vmem:[%s1449] sm:$0x3]
  %v1451 = vld [vmem:[#allocation2] sm:$0x3]
  %v1453 = vsel %vm18, %v1451, 0
  %1455 = vmatprep.subr.mxu0 0.0
  %1456 = vmatpush1.msra.mxu0 0.0
  %1457 = vmatprep.subr.mxu0 0.0
  %1458 = vmatpush1.msra.mxu0 0.0
  %1459 = vmatprep.subr.mxu0 0.0
  %1460 = vmatpush1.msra.mxu0 0.0
  %1461 = vmatprep.subr.mxu0 0.0
  %1462 = vmatpush1.msra.mxu0 0.0
  %1463 = vmatprep.subr.mxu0 0.0
  %1464 = vmatpush1.msra.mxu0 0.0
  %1465 = vmatprep.subr.mxu0 0.0
  %1466 = vmatpush1.msra.mxu0 0.0
  %1467 = vmatprep.subr.mxu0 0.0
  %1468 = vmatpush1.msra.mxu0 0.0
  %1469 = vmatprep.subr.mxu0 0.0
  %1470 = vmatpush1.msra.mxu0 0.0
  %1471 = vmatprep.subr.mxu0 0.0
  %1472 = vmatpush1.msra.mxu0 0.0
  %1473 = vmatprep.subr.mxu0 0.0
  %1474 = vmatpush1.msra.mxu0 0.0
  %1475 = vmatprep.subr.mxu0 0.0
  %1476 = vmatpush1.msra.mxu0 0.0
  %1477 = vmatprep.subr.mxu0 0.0
  %1478 = vmatpush1.msra.mxu0 0.0
  %1479 = vmatprep.subr.mxu0 0.0
  %1480 = vmatpush1.msra.mxu0 0.0
  %1481 = vmatprep.subr.mxu0 0.0
  %1482 = vmatpush1.msra.mxu0 0.0
  %1483 = vmatprep.subr.mxu0 0.0
  %1484 = vmatpush1.msra.mxu0 %v15
  %1485 = vmatprep.subr.mxu0 0.0
  %1486 = vmatpush1.msra.mxu0 %v14
  %1487 = vmatprep.subr.mxu0 0.0
  %1488 = vmatpush2.msra.mxu0 0.0
  %1489 = vmatprep.subr.mxu0 0.0
  %1490 = vmatpush2.msra.mxu0 0.0
  %1491 = vmatprep.subr.mxu0 0.0
  %1492 = vmatpush2.msra.mxu0 0.0
  %1493 = vmatprep.subr.mxu0 0.0
  %1494 = vmatpush2.msra.mxu0 0.0
  %1495 = vmatprep.subr.mxu0 0.0
  %1496 = vmatpush2.msra.mxu0 0.0
  %1497 = vmatprep.subr.mxu0 0.0
  %1498 = vmatpush2.msra.mxu0 0.0
  %1499 = vmatprep.subr.mxu0 0.0
  %1500 = vmatpush2.msra.mxu0 0.0
  %1501 = vmatprep.subr.mxu0 0.0
  %1502 = vmatpush2.msra.mxu0 0.0
  %1503 = vmatprep.subr.mxu0 0.0
  %1504 = vmatpush2.msra.mxu0 0.0
  %1505 = vmatprep.subr.mxu0 0.0
  %1506 = vmatpush2.msra.mxu0 0.0
  %1507 = vmatprep.subr.mxu0 0.0
  %1508 = vmatpush2.msra.mxu0 0.0
  %1509 = vmatprep.subr.mxu0 0.0
  %1510 = vmatpush2.msra.mxu0 0.0
  %1511 = vmatprep.subr.mxu0 0.0
  %1512 = vmatpush2.msra.mxu0 0.0
  %1513 = vmatprep.subr.mxu0 0.0
  %1514 = vmatpush2.msra.mxu0 0.0
  %1515 = vmatprep.subr.mxu0 0.0
  %1516 = vmatpush2.msra.mxu0 0.0
  %1517 = vmatprep.subr.mxu0 0.0
  %1518 = vmatpush2.msra.mxu0 0.0
  %1519 = vmatprep.mubr.f32.mxu0 0.0
  %1520 = vmatmul.mubr.f32.gmra.mxu0 %v1453
  %v1521 = vpop.f32.mrf.mxu0
  %v1522 = vadd.f32 0.0, %v1521
  %v1523 = vpop.f32.mrf.mxu0
  %1524 = vdwg.mxu0
  %v1525 = vadd.f32 %v1450, %v1522
  %v1526 = vxor.u32 %v1525, 2147483648
  %v1527 = vmul.f32 %v1526, 1.442695
  %v1528 = vpow.pop %v1527
  %v1529 = vadd.f32 %v1528, 1.0
  %v1530 = vrcp.pop %v1529
  %v1531 = vmul.f32 1.0, %v1530
  %v1532 = vtanh.pop %v1525
  %v1533 = vld [vmem:[#allocation3] sm:$0x3]
  %1535 = vrot.lane.b32.xlu0 %v1533, 16
  %v1536 = vpop.permute.xlu0 %1535
  %v1538 = vmul.f32 %v1531, %v1536
  %1540 = vrot.lane.b32.xlu0 %v1532, 96
  %v1541 = vpop.permute.xlu0 %1540
  %v1543 = vmul.f32 %v1531, %v1541
  %1545 = vrot.lane.b32.xlu0 %v1543, 16
  %v1546 = vpop.permute.xlu0 %1545
  %v1548 = vadd.f32 %v1538, %v1546
  %v1549 = vtanh.pop %v1548
  %1551 = vrot.lane.b32.xlu0 %v1549, 32
  %v1552 = vpop.permute.xlu0 %1551
  %v1554 = vmul.f32 %v1531, %v1552
  %1556 = vrot.lane.b32.xlu0 %v1548, 112
  %v1557 = vpop.permute.xlu0 %1556
  %1559 = vst.msk [vmem:[#allocation3] sm:$0x3] %vm11, %v1557
  %1561 = vrot.lane.b32.xlu0 %v1554, 80
  %v1562 = vpop.permute.xlu0 %1561
  %1564 = vst.msk [vmem:[#allocation2] sm:$0x3] %vm11, %v1562
  %1565 = vst.msk [vmem:[%s495] sm:$0x3] %vm132, %v1562
  %1566 = vst.msk [vmem:[%s493] sm:$0x3] %vm135, %v1562
  %s1567 = scalar_lea.vmem %s0, 26
  %v1568 = vld [vmem:[%s1567] sm:$0x3]
  %v1569 = vld [vmem:[#allocation2] sm:$0x3]
  %v1571 = vsel %vm18, %v1569, 0
  %1573 = vmatprep.subr.mxu0 0.0
  %1574 = vmatpush1.msra.mxu0 0.0
  %1575 = vmatprep.subr.mxu0 0.0
  %1576 = vmatpush1.msra.mxu0 0.0
  %1577 = vmatprep.subr.mxu0 0.0
  %1578 = vmatpush1.msra.mxu0 0.0
  %1579 = vmatprep.subr.mxu0 0.0
  %1580 = vmatpush1.msra.mxu0 0.0
  %1581 = vmatprep.subr.mxu0 0.0
  %1582 = vmatpush1.msra.mxu0 0.0
  %1583 = vmatprep.subr.mxu0 0.0
  %1584 = vmatpush1.msra.mxu0 0.0
  %1585 = vmatprep.subr.mxu0 0.0
  %1586 = vmatpush1.msra.mxu0 0.0
  %1587 = vmatprep.subr.mxu0 0.0
  %1588 = vmatpush1.msra.mxu0 0.0
  %1589 = vmatprep.subr.mxu0 0.0
  %1590 = vmatpush1.msra.mxu0 0.0
  %1591 = vmatprep.subr.mxu0 0.0
  %1592 = vmatpush1.msra.mxu0 0.0
  %1593 = vmatprep.subr.mxu0 0.0
  %1594 = vmatpush1.msra.mxu0 0.0
  %1595 = vmatprep.subr.mxu0 0.0
  %1596 = vmatpush1.msra.mxu0 0.0
  %1597 = vmatprep.subr.mxu0 0.0
  %1598 = vmatpush1.msra.mxu0 0.0
  %1599 = vmatprep.subr.mxu0 0.0
  %1600 = vmatpush1.msra.mxu0 0.0
  %1601 = vmatprep.subr.mxu0 0.0
  %1602 = vmatpush1.msra.mxu0 %v15
  %1603 = vmatprep.subr.mxu0 0.0
  %1604 = vmatpush1.msra.mxu0 %v14
  %1605 = vmatprep.subr.mxu0 0.0
  %1606 = vmatpush2.msra.mxu0 0.0
  %1607 = vmatprep.subr.mxu0 0.0
  %1608 = vmatpush2.msra.mxu0 0.0
  %1609 = vmatprep.subr.mxu0 0.0
  %1610 = vmatpush2.msra.mxu0 0.0
  %1611 = vmatprep.subr.mxu0 0.0
  %1612 = vmatpush2.msra.mxu0 0.0
  %1613 = vmatprep.subr.mxu0 0.0
  %1614 = vmatpush2.msra.mxu0 0.0
  %1615 = vmatprep.subr.mxu0 0.0
  %1616 = vmatpush2.msra.mxu0 0.0
  %1617 = vmatprep.subr.mxu0 0.0
  %1618 = vmatpush2.msra.mxu0 0.0
  %1619 = vmatprep.subr.mxu0 0.0
  %1620 = vmatpush2.msra.mxu0 0.0
  %1621 = vmatprep.subr.mxu0 0.0
  %1622 = vmatpush2.msra.mxu0 0.0
  %1623 = vmatprep.subr.mxu0 0.0
  %1624 = vmatpush2.msra.mxu0 0.0
  %1625 = vmatprep.subr.mxu0 0.0
  %1626 = vmatpush2.msra.mxu0 0.0
  %1627 = vmatprep.subr.mxu0 0.0
  %1628 = vmatpush2.msra.mxu0 0.0
  %1629 = vmatprep.subr.mxu0 0.0
  %1630 = vmatpush2.msra.mxu0 0.0
  %1631 = vmatprep.subr.mxu0 0.0
  %1632 = vmatpush2.msra.mxu0 0.0
  %1633 = vmatprep.subr.mxu0 0.0
  %1634 = vmatpush2.msra.mxu0 0.0
  %1635 = vmatprep.subr.mxu0 0.0
  %1636 = vmatpush2.msra.mxu0 0.0
  %1637 = vmatprep.mubr.f32.mxu0 0.0
  %1638 = vmatmul.mubr.f32.gmra.mxu0 %v1571
  %v1639 = vpop.f32.mrf.mxu0
  %v1640 = vadd.f32 0.0, %v1639
  %v1641 = vpop.f32.mrf.mxu0
  %1642 = vdwg.mxu0
  %v1643 = vadd.f32 %v1568, %v1640
  %v1644 = vxor.u32 %v1643, 2147483648
  %v1645 = vmul.f32 %v1644, 1.442695
  %v1646 = vpow.pop %v1645
  %v1647 = vadd.f32 %v1646, 1.0
  %v1648 = vrcp.pop %v1647
  %v1649 = vmul.f32 1.0, %v1648
  %v1650 = vtanh.pop %v1643
  %v1651 = vld [vmem:[#allocation3] sm:$0x3]
  %1653 = vrot.lane.b32.xlu0 %v1651, 16
  %v1654 = vpop.permute.xlu0 %1653
  %v1656 = vmul.f32 %v1649, %v1654
  %1658 = vrot.lane.b32.xlu0 %v1650, 96
  %v1659 = vpop.permute.xlu0 %1658
  %v1661 = vmul.f32 %v1649, %v1659
  %1663 = vrot.lane.b32.xlu0 %v1661, 16
  %v1664 = vpop.permute.xlu0 %1663
  %v1666 = vadd.f32 %v1656, %v1664
  %v1667 = vtanh.pop %v1666
  %1669 = vrot.lane.b32.xlu0 %v1667, 32
  %v1670 = vpop.permute.xlu0 %1669
  %v1672 = vmul.f32 %v1649, %v1670
  %1674 = vrot.lane.b32.xlu0 %v1666, 112
  %v1675 = vpop.permute.xlu0 %1674
  %1677 = vst.msk [vmem:[#allocation3] sm:$0x3] %vm11, %v1675
  %1679 = vrot.lane.b32.xlu0 %v1672, 80
  %v1680 = vpop.permute.xlu0 %1679
  %1682 = vst.msk [vmem:[#allocation2] sm:$0x3] %vm11, %v1680
  %1683 = vst.msk [vmem:[%s375] sm:$0x3] %vm132, %v1680
  %1684 = vst.msk [vmem:[%s373] sm:$0x3] %vm135, %v1680
  %s1685 = scalar_lea.vmem %s0, 28
  %v1686 = vld [vmem:[%s1685] sm:$0x3]
  %v1687 = vld [vmem:[#allocation2] sm:$0x3]
  %v1689 = vsel %vm18, %v1687, 0
  %1691 = vmatprep.subr.mxu0 0.0
  %1692 = vmatpush1.msra.mxu0 0.0
  %1693 = vmatprep.subr.mxu0 0.0
  %1694 = vmatpush1.msra.mxu0 0.0
  %1695 = vmatprep.subr.mxu0 0.0
  %1696 = vmatpush1.msra.mxu0 0.0
  %1697 = vmatprep.subr.mxu0 0.0
  %1698 = vmatpush1.msra.mxu0 0.0
  %1699 = vmatprep.subr.mxu0 0.0
  %1700 = vmatpush1.msra.mxu0 0.0
  %1701 = vmatprep.subr.mxu0 0.0
  %1702 = vmatpush1.msra.mxu0 0.0
  %1703 = vmatprep.subr.mxu0 0.0
  %1704 = vmatpush1.msra.mxu0 0.0
  %1705 = vmatprep.subr.mxu0 0.0
  %1706 = vmatpush1.msra.mxu0 0.0
  %1707 = vmatprep.subr.mxu0 0.0
  %1708 = vmatpush1.msra.mxu0 0.0
  %1709 = vmatprep.subr.mxu0 0.0
  %1710 = vmatpush1.msra.mxu0 0.0
  %1711 = vmatprep.subr.mxu0 0.0
  %1712 = vmatpush1.msra.mxu0 0.0
  %1713 = vmatprep.subr.mxu0 0.0
  %1714 = vmatpush1.msra.mxu0 0.0
  %1715 = vmatprep.subr.mxu0 0.0
  %1716 = vmatpush1.msra.mxu0 0.0
  %1717 = vmatprep.subr.mxu0 0.0
  %1718 = vmatpush1.msra.mxu0 0.0
  %1719 = vmatprep.subr.mxu0 0.0
  %1720 = vmatpush1.msra.mxu0 %v15
  %1721 = vmatprep.subr.mxu0 0.0
  %1722 = vmatpush1.msra.mxu0 %v14
  %1723 = vmatprep.subr.mxu0 0.0
  %1724 = vmatpush2.msra.mxu0 0.0
  %1725 = vmatprep.subr.mxu0 0.0
  %1726 = vmatpush2.msra.mxu0 0.0
  %1727 = vmatprep.subr.mxu0 0.0
  %1728 = vmatpush2.msra.mxu0 0.0
  %1729 = vmatprep.subr.mxu0 0.0
  %1730 = vmatpush2.msra.mxu0 0.0
  %1731 = vmatprep.subr.mxu0 0.0
  %1732 = vmatpush2.msra.mxu0 0.0
  %1733 = vmatprep.subr.mxu0 0.0
  %1734 = vmatpush2.msra.mxu0 0.0
  %1735 = vmatprep.subr.mxu0 0.0
  %1736 = vmatpush2.msra.mxu0 0.0
  %1737 = vmatprep.subr.mxu0 0.0
  %1738 = vmatpush2.msra.mxu0 0.0
  %1739 = vmatprep.subr.mxu0 0.0
  %1740 = vmatpush2.msra.mxu0 0.0
  %1741 = vmatprep.subr.mxu0 0.0
  %1742 = vmatpush2.msra.mxu0 0.0
  %1743 = vmatprep.subr.mxu0 0.0
  %1744 = vmatpush2.msra.mxu0 0.0
  %1745 = vmatprep.subr.mxu0 0.0
  %1746 = vmatpush2.msra.mxu0 0.0
  %1747 = vmatprep.subr.mxu0 0.0
  %1748 = vmatpush2.msra.mxu0 0.0
  %1749 = vmatprep.subr.mxu0 0.0
  %1750 = vmatpush2.msra.mxu0 0.0
  %1751 = vmatprep.subr.mxu0 0.0
  %1752 = vmatpush2.msra.mxu0 0.0
  %1753 = vmatprep.subr.mxu0 0.0
  %1754 = vmatpush2.msra.mxu0 0.0
  %1755 = vmatprep.mubr.f32.mxu0 0.0
  %1756 = vmatmul.mubr.f32.gmra.mxu0 %v1689
  %v1757 = vpop.f32.mrf.mxu0
  %v1758 = vadd.f32 0.0, %v1757
  %v1759 = vpop.f32.mrf.mxu0
  %1760 = vdwg.mxu0
  %v1761 = vadd.f32 %v1686, %v1758
  %v1762 = vxor.u32 %v1761, 2147483648
  %v1763 = vmul.f32 %v1762, 1.442695
  %v1764 = vpow.pop %v1763
  %v1765 = vadd.f32 %v1764, 1.0
  %v1766 = vrcp.pop %v1765
  %v1767 = vmul.f32 1.0, %v1766
  %v1768 = vtanh.pop %v1761
  %v1769 = vld [vmem:[#allocation3] sm:$0x3]
  %1771 = vrot.lane.b32.xlu0 %v1769, 16
  %v1772 = vpop.permute.xlu0 %1771
  %v1774 = vmul.f32 %v1767, %v1772
  %1776 = vrot.lane.b32.xlu0 %v1768, 96
  %v1777 = vpop.permute.xlu0 %1776
  %v1779 = vmul.f32 %v1767, %v1777
  %1781 = vrot.lane.b32.xlu0 %v1779, 16
  %v1782 = vpop.permute.xlu0 %1781
  %v1784 = vadd.f32 %v1774, %v1782
  %v1785 = vtanh.pop %v1784
  %1787 = vrot.lane.b32.xlu0 %v1785, 32
  %v1788 = vpop.permute.xlu0 %1787
  %v1790 = vmul.f32 %v1767, %v1788
  %1792 = vrot.lane.b32.xlu0 %v1784, 112
  %v1793 = vpop.permute.xlu0 %1792
  %1795 = vst.msk [vmem:[#allocation3] sm:$0x3] %vm11, %v1793
  %1797 = vrot.lane.b32.xlu0 %v1790, 80
  %v1798 = vpop.permute.xlu0 %1797
  %1800 = vst.msk [vmem:[#allocation2] sm:$0x3] %vm11, %v1798
  %1801 = vst.msk [vmem:[%s255] sm:$0x3] %vm132, %v1798
  %1802 = vst.msk [vmem:[%s253] sm:$0x3] %vm135, %v1798
  %s1803 = scalar_lea.vmem %s0, 30
  %v1804 = vld [vmem:[%s1803] sm:$0x3]
  %v1805 = vld [vmem:[#allocation2] sm:$0x3]
  %v1807 = vsel %vm18, %v1805, 0
  %1809 = vmatprep.subr.mxu0 0.0
  %1810 = vmatpush1.msra.mxu0 0.0
  %1811 = vmatprep.subr.mxu0 0.0
  %1812 = vmatpush1.msra.mxu0 0.0
  %1813 = vmatprep.subr.mxu0 0.0
  %1814 = vmatpush1.msra.mxu0 0.0
  %1815 = vmatprep.subr.mxu0 0.0
  %1816 = vmatpush1.msra.mxu0 0.0
  %1817 = vmatprep.subr.mxu0 0.0
  %1818 = vmatpush1.msra.mxu0 0.0
  %1819 = vmatprep.subr.mxu0 0.0
  %1820 = vmatpush1.msra.mxu0 0.0
  %1821 = vmatprep.subr.mxu0 0.0
  %1822 = vmatpush1.msra.mxu0 0.0
  %1823 = vmatprep.subr.mxu0 0.0
  %1824 = vmatpush1.msra.mxu0 0.0
  %1825 = vmatprep.subr.mxu0 0.0
  %1826 = vmatpush1.msra.mxu0 0.0
  %1827 = vmatprep.subr.mxu0 0.0
  %1828 = vmatpush1.msra.mxu0 0.0
  %1829 = vmatprep.subr.mxu0 0.0
  %1830 = vmatpush1.msra.mxu0 0.0
  %1831 = vmatprep.subr.mxu0 0.0
  %1832 = vmatpush1.msra.mxu0 0.0
  %1833 = vmatprep.subr.mxu0 0.0
  %1834 = vmatpush1.msra.mxu0 0.0
  %1835 = vmatprep.subr.mxu0 0.0
  %1836 = vmatpush1.msra.mxu0 0.0
  %1837 = vmatprep.subr.mxu0 0.0
  %1838 = vmatpush1.msra.mxu0 %v15
  %1839 = vmatprep.subr.mxu0 0.0
  %1840 = vmatpush1.msra.mxu0 %v14
  %1841 = vmatprep.subr.mxu0 0.0
  %1842 = vmatpush2.msra.mxu0 0.0
  %1843 = vmatprep.subr.mxu0 0.0
  %1844 = vmatpush2.msra.mxu0 0.0
  %1845 = vmatprep.subr.mxu0 0.0
  %1846 = vmatpush2.msra.mxu0 0.0
  %1847 = vmatprep.subr.mxu0 0.0
  %1848 = vmatpush2.msra.mxu0 0.0
  %1849 = vmatprep.subr.mxu0 0.0
  %1850 = vmatpush2.msra.mxu0 0.0
  %1851 = vmatprep.subr.mxu0 0.0
  %1852 = vmatpush2.msra.mxu0 0.0
  %1853 = vmatprep.subr.mxu0 0.0
  %1854 = vmatpush2.msra.mxu0 0.0
  %1855 = vmatprep.subr.mxu0 0.0
  %1856 = vmatpush2.msra.mxu0 0.0
  %1857 = vmatprep.subr.mxu0 0.0
  %1858 = vmatpush2.msra.mxu0 0.0
  %1859 = vmatprep.subr.mxu0 0.0
  %1860 = vmatpush2.msra.mxu0 0.0
  %1861 = vmatprep.subr.mxu0 0.0
  %1862 = vmatpush2.msra.mxu0 0.0
  %1863 = vmatprep.subr.mxu0 0.0
  %1864 = vmatpush2.msra.mxu0 0.0
  %1865 = vmatprep.subr.mxu0 0.0
  %1866 = vmatpush2.msra.mxu0 0.0
  %1867 = vmatprep.subr.mxu0 0.0
  %1868 = vmatpush2.msra.mxu0 0.0
  %1869 = vmatprep.subr.mxu0 0.0
  %1870 = vmatpush2.msra.mxu0 0.0
  %1871 = vmatprep.subr.mxu0 0.0
  %1872 = vmatpush2.msra.mxu0 0.0
  %1873 = vmatprep.mubr.f32.mxu0 0.0
  %1874 = vmatmul.mubr.f32.gmra.mxu0 %v1807
  %v1875 = vpop.f32.mrf.mxu0
  %v1876 = vadd.f32 0.0, %v1875
  %v1877 = vpop.f32.mrf.mxu0
  %1878 = vdwg.mxu0
  %v1879 = vadd.f32 %v1804, %v1876
  %v1880 = vxor.u32 %v1879, 2147483648
  %v1881 = vmul.f32 %v1880, 1.442695
  %v1882 = vpow.pop %v1881
  %v1883 = vadd.f32 %v1882, 1.0
  %v1884 = vrcp.pop %v1883
  %v1885 = vmul.f32 1.0, %v1884
  %v1886 = vtanh.pop %v1879
  %v1887 = vld [vmem:[#allocation3] sm:$0x3]
  %1889 = vrot.lane.b32.xlu0 %v1887, 16
  %v1890 = vpop.permute.xlu0 %1889
  %v1892 = vmul.f32 %v1885, %v1890
  %1894 = vrot.lane.b32.xlu0 %v1886, 96
  %v1895 = vpop.permute.xlu0 %1894
  %v1897 = vmul.f32 %v1885, %v1895
  %1899 = vrot.lane.b32.xlu0 %v1897, 16
  %v1900 = vpop.permute.xlu0 %1899
  %v1902 = vadd.f32 %v1892, %v1900
  %v1903 = vtanh.pop %v1902
  %1905 = vrot.lane.b32.xlu0 %v1903, 32
  %v1906 = vpop.permute.xlu0 %1905
  %v1908 = vmul.f32 %v1885, %v1906
  %1910 = vrot.lane.b32.xlu0 %v1902, 112
  %v1911 = vpop.permute.xlu0 %1910
  %1913 = vst.msk [vmem:[#allocation3] sm:$0x3] %vm11, %v1911
  %1915 = vrot.lane.b32.xlu0 %v1908, 80
  %v1916 = vpop.permute.xlu0 %1915
  %1918 = vst.msk [vmem:[#allocation2] sm:$0x3] %vm11, %v1916
  %1919 = vst.msk [vmem:[%s134] sm:$0x3] %vm132, %v1916
  %1920 = vst.msk [vmem:[%s2] sm:$0x3] %vm135, %v1916
  // Predicated region
  $region10: #{listener_forward.3} parent=0 // pred_check
    _
  $region11: #{listener_forward.3} parent=0 // pred_check_branch
    %1922 = sbr.rel (0) target = $region13
  $region12: #{listener_forward.3} parent=0 // pred_region
    _
  $region13: #{listener_forward.3} parent=0 // pred_fallthru
    _
  // Predicated region
  $region14: #{listener_forward.3} parent=0 // pred_check
    _
  $region15: #{listener_forward.3} parent=0 // pred_check_branch
    %1924 = sbr.rel (0) target = $region17
  $region16: #{listener_forward.3} parent=0 // pred_region
    _
  $region17: #{listener_forward.3} parent=0 // pred_fallthru
    _

</llo_original>
